<compile_context>
chip_gen: v6e
topology: v6e:2x2x1
jax: 0.10.0
libtpu: 0.0.40
codegen_flags: <defaults>
</compile_context>

<pallas_src>
import functools

import jax
import jax.numpy as jnp
from jax.experimental import pallas as pl
from jax.experimental.pallas import tpu as pltpu

DROPOUT_P = 0.2


def _round_up(x, m):
    return ((x + m - 1) // m) * m


def ffn_kernel(x_ref, w1_ref, b1_ref, w2_ref, b2_ref, *rest, dropout_p):
    # x_ref: (tm, C) bf16   w1_ref: (C, H) bf16   b1_ref: (1, H) f32
    # w2_ref: (H, C) bf16   b2_ref: (1, C) f32    [bits_ref: (tm, C) u32]   o_ref: (tm, C) f32
    if dropout_p > 0.0:
        bits_ref, o_ref = rest
    else:
        (o_ref,) = rest

    # First matmul on the MXU: bf16 operands, f32 accumulation.
    h = jnp.dot(x_ref[...], w1_ref[...], preferred_element_type=jnp.float32)
    # Bias + ReLU in f32 on the VPU.
    h = jnp.maximum(h + b1_ref[...], 0.0)
    # Second matmul: cast the activated hidden back to bf16 for the MXU.
    y = jnp.dot(h.astype(w2_ref.dtype), w2_ref[...],
                preferred_element_type=jnp.float32)
    y = y + b2_ref[...]

    if dropout_p > 0.0:
        # Training-mode (inverted) dropout: keep with prob (1-p), scale kept by 1/(1-p).
        # Threshold truncation biases keep-prob by ~2e-10 -- negligible.
        keep_thresh = jnp.uint32(int((1.0 - dropout_p) * (2.0 ** 32)))
        keep = bits_ref[...] < keep_thresh
        y = jnp.where(keep, y * (1.0 / (1.0 - dropout_p)), 0.0)

    o_ref[...] = y.astype(o_ref.dtype)


def feedforward(x, w1, b1, w2, b2, *, key=None, dropout_p=DROPOUT_P, tm=256,
                mxu_dtype=jnp.bfloat16):
    """x: [B, T, C] float32.  w1: [C, 4C], b1: [4C], w2: [4C, C], b2: [C].  Returns [B, T, C] f32."""
    B, T, C = x.shape
    H = w1.shape[1]
    M = B * T

    # Token tile: big (>=256) at real sizes, shrunk (multiple of 8) for tiny demos.
    tm = min(tm, _round_up(M, 8))
    Mp = _round_up(M, tm)  # pad token count to a whole number of tiles

    x2 = x.reshape(M, C).astype(mxu_dtype)
    if Mp != M:
        x2 = jnp.pad(x2, ((0, Mp - M), (0, 0)))

    w1c = w1.astype(mxu_dtype)
    w2c = w2.astype(mxu_dtype)
    b1r = b1.reshape(1, H).astype(jnp.float32)
    b2r = b2.reshape(1, C).astype(jnp.float32)

    in_specs = [
        pl.BlockSpec((tm, C), lambda i: (i, 0)),   # x tile
        pl.BlockSpec((C, H), lambda i: (0, 0)),    # W1 (constant index -> fetched once, resident)
        pl.BlockSpec((1, H), lambda i: (0, 0)),    # b1
        pl.BlockSpec((H, C), lambda i: (0, 0)),    # W2 (resident)
        pl.BlockSpec((1, C), lambda i: (0, 0)),    # b2
    ]
    args = [x2, w1c, b1r, w2c, b2r]

    if dropout_p > 0.0:
        if key is None:
            key = jax.random.PRNGKey(0)
        # Note: the mask depends on the padded token count (tile size), so exact dropout
        # patterns are not reproducible across tile configurations -- fine for training.
        bits = jax.random.bits(key, (Mp, C), dtype=jnp.uint32)
        in_specs.append(pl.BlockSpec((tm, C), lambda i: (i, 0)))
        args.append(bits)

    kernel = functools.partial(ffn_kernel, dropout_p=dropout_p)

    out = pl.pallas_call(
        kernel,
        out_shape=jax.ShapeDtypeStruct((Mp, C), jnp.float32),
        grid=(Mp // tm,),
        in_specs=in_specs,
        out_specs=pl.BlockSpec((tm, C), lambda i: (i, 0)),
        compiler_params=pltpu.CompilerParams(
            # Token-tile axis is fully independent -> shard across TensorCores on v7x.
            dimension_semantics=("parallel",),
            # Weight-resident + large tile: raise scoped VMEM (safe on v5e/v6e/v7x).
            vmem_limit_bytes=48 * 1024 * 1024,
        ),
    )(*args)

    return out[:M].reshape(B, T, C)


if __name__ == "__main__":
    # Small shapes consistent with the module: n_embed=384 (lane-dense, 3*128), hidden=4*384.
    B, T, C = 2, 64, 384
    H = 4 * C

    key = jax.random.PRNGKey(0)
    kx, k1, k2, k3, k4, kd = jax.random.split(key, 6)

    x = jax.random.normal(kx, (B, T, C), dtype=jnp.float32)
    # Deterministic parameter init (uniform, PyTorch-Linear-style bound 1/sqrt(fan_in)).
    w1 = jax.random.uniform(k1, (C, H), jnp.float32, -1.0 / C ** 0.5, 1.0 / C ** 0.5)
    b1 = jax.random.uniform(k2, (H,), jnp.float32, -1.0 / C ** 0.5, 1.0 / C ** 0.5)
    w2 = jax.random.uniform(k3, (H, C), jnp.float32, -1.0 / H ** 0.5, 1.0 / H ** 0.5)
    b2 = jax.random.uniform(k4, (C,), jnp.float32, -1.0 / H ** 0.5, 1.0 / H ** 0.5)

    # Correctness check of the matmul/ReLU path (dropout disabled -> deterministic).
    y_nodrop = feedforward(x, w1, b1, w2, b2, dropout_p=0.0)
    y_nodrop = jax.block_until_ready(y_nodrop)

    x2 = x.reshape(-1, C)
    ref_h = jnp.maximum(
        jnp.dot(x2.astype(jnp.bfloat16), w1.astype(jnp.bfloat16),
                preferred_element_type=jnp.float32) + b1, 0.0)
    ref = jnp.dot(ref_h.astype(jnp.bfloat16), w2.astype(jnp.bfloat16),
                  preferred_element_type=jnp.float32) + b2
    assert jnp.allclose(y_nodrop.reshape(-1, C), ref, atol=2e-2, rtol=2e-2)

    # Full forward semantics (training-mode dropout p=0.2).
    y = feedforward(x, w1, b1, w2, b2, key=kd, dropout_p=DROPOUT_P)
    y = jax.block_until_ready(y)
    assert y.shape == (B, T, C)
    zero_frac = float(jnp.mean(y == 0.0))
    assert 0.1 < zero_frac < 0.3, f"dropout zero fraction off: {zero_frac}"

    print("KERNEL_OK")
</pallas_src>

<mosaic_0001>
module attributes {stable_mosaic.version = 11 : i64} {
  func.func @ffn_kernel(%arg0: i32, %arg1: memref<128x384xbf16, #tpu.memory_space<vmem>>, %arg2: memref<384x1536xbf16, #tpu.memory_space<vmem>>, %arg3: memref<1x1536xf32, #tpu.memory_space<vmem>>, %arg4: memref<1536x384xbf16, #tpu.memory_space<vmem>>, %arg5: memref<1x384xf32, #tpu.memory_space<vmem>>, %arg6: memref<128x384xf32, #tpu.memory_space<vmem>>) attributes {dimension_semantics = [#tpu.dimension_semantics<parallel>], iteration_bounds = array<i64: 1>, scalar_prefetch = 0 : i64, scratch_operands = 0 : i64, tpu.core_type = #tpu.core_type<tc>, window_params = [{transform_indices = @transform_0, window_bounds = array<i64: 128, 384>}, {pipeline_mode = #tpu.pipeline_mode<synchronous>, transform_indices = @transform_1, window_bounds = array<i64: 384, 1536>}, {pipeline_mode = #tpu.pipeline_mode<synchronous>, transform_indices = @transform_2, window_bounds = array<i64: 1, 1536>}, {pipeline_mode = #tpu.pipeline_mode<synchronous>, transform_indices = @transform_3, window_bounds = array<i64: 1536, 384>}, {pipeline_mode = #tpu.pipeline_mode<synchronous>, transform_indices = @transform_4, window_bounds = array<i64: 1, 384>}, {transform_indices = @transform_5, window_bounds = array<i64: 128, 384>}]} {
    %c0 = arith.constant 0 : index
    %c0_0 = arith.constant 0 : index
    %0 = vector.load %arg1[%c0, %c0_0] : memref<128x384xbf16, #tpu.memory_space<vmem>>, vector<128x384xbf16>
    %c0_1 = arith.constant 0 : index
    %c0_2 = arith.constant 0 : index
    %1 = vector.load %arg2[%c0_1, %c0_2] : memref<384x1536xbf16, #tpu.memory_space<vmem>>, vector<384x1536xbf16>
    %cst = arith.constant dense<0.000000e+00> : vector<128x1536xf32>
    %2 = tpu.matmul %0, %1, %cst {dimension_numbers = #tpu.dot_dimension_numbers<[1], [0], [0], [1], [0, 0, 1, 1], [], []>} : vector<128x384xbf16>, vector<384x1536xbf16>, vector<128x1536xf32> -> vector<128x1536xf32>
    %c0_3 = arith.constant 0 : index
    %c0_4 = arith.constant 0 : index
    %3 = vector.load %arg3[%c0_3, %c0_4] : memref<1x1536xf32, #tpu.memory_space<vmem>>, vector<1x1536xf32>
    %4 = vector.broadcast %3 : vector<1x1536xf32> to vector<128x1536xf32>
    %5 = arith.addf %2, %4 : vector<128x1536xf32>
    %cst_5 = arith.constant 0.000000e+00 : f32
    %6 = vector.broadcast %cst_5 : f32 to vector<128x1536xf32>
    %7 = arith.maximumf %5, %6 : vector<128x1536xf32>
    %8 = arith.truncf %7 : vector<128x1536xf32> to vector<128x1536xbf16>
    %c0_6 = arith.constant 0 : index
    %c0_7 = arith.constant 0 : index
    %9 = vector.load %arg4[%c0_6, %c0_7] : memref<1536x384xbf16, #tpu.memory_space<vmem>>, vector<1536x384xbf16>
    %cst_8 = arith.constant dense<0.000000e+00> : vector<128x384xf32>
    %10 = tpu.matmul %8, %9, %cst_8 {dimension_numbers = #tpu.dot_dimension_numbers<[1], [0], [0], [1], [0, 0, 1, 1], [], []>} : vector<128x1536xbf16>, vector<1536x384xbf16>, vector<128x384xf32> -> vector<128x384xf32>
    %c0_9 = arith.constant 0 : index
    %c0_10 = arith.constant 0 : index
    %11 = vector.load %arg5[%c0_9, %c0_10] : memref<1x384xf32, #tpu.memory_space<vmem>>, vector<1x384xf32>
    %12 = vector.broadcast %11 : vector<1x384xf32> to vector<128x384xf32>
    %13 = arith.addf %10, %12 : vector<128x384xf32>
    %c0_11 = arith.constant 0 : index
    %c0_12 = arith.constant 0 : index
    %14 = vector.load %arg6[%c0_11, %c0_12] : memref<128x384xf32, #tpu.memory_space<vmem>>, vector<128x384xf32>
    tpu.vector_store %arg6[%c0_11, %c0_12], %13 {strides = array<i32>} : memref<128x384xf32, #tpu.memory_space<vmem>>, vector<128x384xf32>,
    return
  }
  func.func @transform_0(%arg0: i32) -> (i32, i32) {
    %c0_i32 = arith.constant 0 : i32
    %c0_i32_0 = arith.constant 0 : i32
    return %arg0, %c0_i32 : i32, i32
  }
  func.func @transform_1(%arg0: i32) -> (i32, i32) {
    %c0_i32 = arith.constant 0 : i32
    %c0_i32_0 = arith.constant 0 : i32
    %c0_i32_1 = arith.constant 0 : i32
    return %c0_i32, %c0_i32_0 : i32, i32
  }
  func.func @transform_2(%arg0: i32) -> (i32, i32) {
    %c0_i32 = arith.constant 0 : i32
    %c0_i32_0 = arith.constant 0 : i32
    %c0_i32_1 = arith.constant 0 : i32
    return %c0_i32, %c0_i32_0 : i32, i32
  }
  func.func @transform_3(%arg0: i32) -> (i32, i32) {
    %c0_i32 = arith.constant 0 : i32
    %c0_i32_0 = arith.constant 0 : i32
    %c0_i32_1 = arith.constant 0 : i32
    return %c0_i32, %c0_i32_0 : i32, i32
  }
  func.func @transform_4(%arg0: i32) -> (i32, i32) {
    %c0_i32 = arith.constant 0 : i32
    %c0_i32_0 = arith.constant 0 : i32
    %c0_i32_1 = arith.constant 0 : i32
    return %c0_i32, %c0_i32_0 : i32, i32
  }
  func.func @transform_5(%arg0: i32) -> (i32, i32) {
    %c0_i32 = arith.constant 0 : i32
    %c0_i32_0 = arith.constant 0 : i32
    return %arg0, %c0_i32 : i32, i32
  }
}

</mosaic_0001>

<llo_original>
// kernel: tpu_custom_call.1
$region0: #{tpu_custom_call.1}
  #allocation0 [shape = 'u32[]', space=smem, size = 0x4, offset = 0x4, fixed_abs, tag = 'smem constant byte address 0x4 - core index']
  #allocation1 [shape = 'u32[144,128]{1,0:T(1,128)}', space=vmem, size = 0x12000, scoped, tag = 'internal scratch']
  %s0 = inlined_call_operand.hbm [shape: bf16[128,384], index: 0, kind: input, shape index: {}]
  %s1 = inlined_call_operand.hbm [shape: bf16[384,1536], index: 1, kind: input, shape index: {}]
  %s2 = inlined_call_operand.hbm [shape: f32[1,1536], index: 2, kind: input, shape index: {}]
  %s3 = inlined_call_operand.hbm [shape: bf16[1536,384], index: 3, kind: input, shape index: {}]
  %s4 = inlined_call_operand.hbm [shape: f32[1,384], index: 4, kind: input, shape index: {}]
  %s5 = inlined_call_operand.hbm [shape: f32[128,384], index: 5, kind: output, shape index: {}]
  %s6 = sld [smem:[#allocation0]]
  $region50: #{tpu_custom_call.1} parent=0
    _
  %s8 = ssub.s32 1, %s6
  %s9 = scalar_select 0, %s8, %s6
  $region1: #{tpu_custom_call.1} parent=0
    #allocation2 [shape = 'u8[98304]{0}', space=vmem, size = 0x18000, scoped, tag = 'input window, operand 0, single buffered']
    #allocation3 [shape = 's32[1]{0}', space=sflag, size = 0x4, scoped, tag = 'scoped memory for tpu_custom_call.1']
    #allocation4 [shape = 's32[1]{0}', space=sflag, size = 0x4, scoped, tag = 'scoped memory for tpu_custom_call.1']
    #allocation5 [shape = 'u8[1179648]{0}', space=vmem, size = 0x120000, scoped, tag = 'input window, operand 1, single buffered']
    #allocation6 [shape = 's32[1]{0}', space=sflag, size = 0x4, scoped, tag = 'scoped memory for tpu_custom_call.1']
    #allocation7 [shape = 'u8[6144]{0}', space=vmem, size = 0x1800, scoped, tag = 'input window, operand 2, single buffered']
    #allocation8 [shape = 'u8[1179648]{0}', space=vmem, size = 0x120000, scoped, tag = 'input window, operand 3, single buffered']
    #allocation9 [shape = 's32[1]{0}', space=sflag, size = 0x4, scoped, tag = 'scoped memory for tpu_custom_call.1']
    #allocation10 [shape = 'u8[1536]{0}', space=vmem, size = 0x800, scoped, tag = 'input window, operand 4, single buffered']
    #allocation11 [shape = 'u8[196608]{0}', space=vmem, size = 0x30000, scoped, tag = 'output window, operand 0, single buffered']
    %10 = vsyncpa [#allocation3], 0
    %11 = vsyncpa [#allocation6], 0
    %12 = vsyncpa [#allocation9], 0
    %13 = vsyncpa [#allocation4], 0
    // Predicated region
    $region2: #{tpu_custom_call.1} parent=1 // pred_check
      _
    $region3: #{tpu_custom_call.1} parent=1 // pred_check_branch
      %15 = sbr.rel (0) target = $region5
    $region4: #{tpu_custom_call.1} parent=1 // pred_region
      %s17 = ssub.s32 3072, 3072
      %18 = vsyncadd [#allocation3], %s17
      %s19 = sshll.u32 [#allocation2], 4
      %s20 = int_to_ptr.vmem [resolvable:$true] %s19
      %25 = dma.hbm_to_vmem [thread:$0]  %s0, 3072, %s20, [#allocation3], 192, 192, 12
    $region5: #{tpu_custom_call.1} parent=1 // pred_fallthru
      _
    // Predicated region
    $region6: #{tpu_custom_call.1} parent=1 // pred_check
      _
    $region7: #{tpu_custom_call.1} parent=1 // pred_check_branch
      %27 = sbr.rel (0) target = $region9
    $region8: #{tpu_custom_call.1} parent=1 // pred_region
      %s29 = ssub.s32 36864, 36864
      %30 = vsyncadd [#allocation6], %s29
      %s31 = sshll.u32 [#allocation5], 4
      %s32 = int_to_ptr.vmem [resolvable:$true] %s31
      %37 = dma.hbm_to_vmem [thread:$0]  %s1, 36864, %s32, [#allocation6], 768, 768, 48
    $region9: #{tpu_custom_call.1} parent=1 // pred_fallthru
      _
    // Predicated region
    $region10: #{tpu_custom_call.1} parent=1 // pred_check
      _
    $region11: #{tpu_custom_call.1} parent=1 // pred_check_branch
      %39 = sbr.rel (0) target = $region13
    $region12: #{tpu_custom_call.1} parent=1 // pred_region
      %s41 = ssub.s32 192, 192
      %42 = vsyncadd [#allocation6], %s41
      %s44 = sshll.u32 [#allocation7], 4
      %s45 = int_to_ptr.vmem [resolvable:$true] %s44
      %47 = dma.hbm_to_vmem [thread:$0]  %s2, 192, %s45, [#allocation6]
    $region13: #{tpu_custom_call.1} parent=1 // pred_fallthru
      _
    // Predicated region
    $region14: #{tpu_custom_call.1} parent=1 // pred_check
      _
    $region15: #{tpu_custom_call.1} parent=1 // pred_check_branch
      %49 = sbr.rel (0) target = $region17
    $region16: #{tpu_custom_call.1} parent=1 // pred_region
      %s51 = ssub.s32 36864, 36864
      %52 = vsyncadd [#allocation9], %s51
      %s53 = sshll.u32 [#allocation8], 4
      %s54 = int_to_ptr.vmem [resolvable:$true] %s53
      %59 = dma.hbm_to_vmem [thread:$0]  %s3, 36864, %s54, [#allocation9], 192, 192, 12
    $region17: #{tpu_custom_call.1} parent=1 // pred_fallthru
      _
    // Predicated region
    $region18: #{tpu_custom_call.1} parent=1 // pred_check
      _
    $region19: #{tpu_custom_call.1} parent=1 // pred_check_branch
      %61 = sbr.rel (0) target = $region21
    $region20: #{tpu_custom_call.1} parent=1 // pred_region
      %s63 = ssub.s32 48, 48
      %64 = vsyncadd [#allocation9], %s63
      %s66 = sshll.u32 [#allocation10], 4
      %s67 = int_to_ptr.vmem [resolvable:$true] %s66
      %69 = dma.hbm_to_vmem [thread:$0]  %s4, 48, %s67, [#allocation9]
    $region21: #{tpu_custom_call.1} parent=1 // pred_fallthru
      _
    // Predicated region
    $region22: #{tpu_custom_call.1} parent=1 // pred_check
      _
    $region23: #{tpu_custom_call.1} parent=1 // pred_check_branch
      %71 = sbr.rel (0) target = $region25
    $region24: #{tpu_custom_call.1} parent=1 // pred_region
      %72 = dma.done [#allocation3], 3072
    $region25: #{tpu_custom_call.1} parent=1 // pred_fallthru
      _
    // Predicated region
    $region26: #{tpu_custom_call.1} parent=1 // pred_check
      _
    $region27: #{tpu_custom_call.1} parent=1 // pred_check_branch
      %74 = sbr.rel (0) target = $region29
    $region28: #{tpu_custom_call.1} parent=1 // pred_region
      %75 = dma.done [#allocation6], 36864
    $region29: #{tpu_custom_call.1} parent=1 // pred_fallthru
      _
    // Predicated region
    $region30: #{tpu_custom_call.1} parent=1 // pred_check
      _
    $region31: #{tpu_custom_call.1} parent=1 // pred_check_branch
      %77 = sbr.rel (0) target = $region33
    $region32: #{tpu_custom_call.1} parent=1 // pred_region
      %78 = dma.done [#allocation6], 192
    $region33: #{tpu_custom_call.1} parent=1 // pred_fallthru
      _
    // Predicated region
    $region34: #{tpu_custom_call.1} parent=1 // pred_check
      _
    $region35: #{tpu_custom_call.1} parent=1 // pred_check_branch
      %80 = sbr.rel (0) target = $region37
    $region36: #{tpu_custom_call.1} parent=1 // pred_region
      %81 = dma.done [#allocation9], 36864
    $region37: #{tpu_custom_call.1} parent=1 // pred_fallthru
      _
    // Predicated region
    $region38: #{tpu_custom_call.1} parent=1 // pred_check
      _
    $region39: #{tpu_custom_call.1} parent=1 // pred_check_branch
      %83 = sbr.rel (0) target = $region41
    $region40: #{tpu_custom_call.1} parent=1 // pred_region
      %84 = dma.done [#allocation9], 48
    $region41: #{tpu_custom_call.1} parent=1 // pred_fallthru
      _
    %v86 = vld [vmem:[#allocation2] sm:$0xff]
    %v87 = vld [vmem:[#allocation2 + $0x8] sm:$0xf]
    %v88 = vld [vmem:[#allocation2 + $0xc] sm:$0xff]
    %v89 = vld [vmem:[#allocation2 + $0x14] sm:$0xf]
    %v90 = vld [vmem:[#allocation2 + $0x18] sm:$0xff]
    %v91 = vld [vmem:[#allocation2 + $0x20] sm:$0xf]
    %v92 = vld [vmem:[#allocation2 + $0x24] sm:$0xff]
    %v93 = vld [vmem:[#allocation2 + $0x2c] sm:$0xf]
    %v94 = vld [vmem:[#allocation2 + $0x30] sm:$0xff]
    %v95 = vld [vmem:[#allocation2 + $0x38] sm:$0xf]
    %v96 = vld [vmem:[#allocation2 + $0x3c] sm:$0xff]
    %v97 = vld [vmem:[#allocation2 + $0x44] sm:$0xf]
    %v98 = vld [vmem:[#allocation2 + $0x48] sm:$0xff]
    %v99 = vld [vmem:[#allocation2 + $0x50] sm:$0xf]
    %v100 = vld [vmem:[#allocation2 + $0x54] sm:$0xff]
    %v101 = vld [vmem:[#allocation2 + $0x5c] sm:$0xf]
    %v102 = vld [vmem:[#allocation2 + $0x60] sm:$0xff]
    %v103 = vld [vmem:[#allocation2 + $0x68] sm:$0xf]
    %v104 = vld [vmem:[#allocation2 + $0x6c] sm:$0xff]
    %v105 = vld [vmem:[#allocation2 + $0x74] sm:$0xf]
    %v106 = vld [vmem:[#allocation2 + $0x78] sm:$0xff]
    %v107 = vld [vmem:[#allocation2 + $0x80] sm:$0xf]
    %v108 = vld [vmem:[#allocation2 + $0x84] sm:$0xff]
    %v109 = vld [vmem:[#allocation2 + $0x8c] sm:$0xf]
    %v110 = vld [vmem:[#allocation2 + $0x90] sm:$0xff]
    %v111 = vld [vmem:[#allocation2 + $0x98] sm:$0xf]
    %v112 = vld [vmem:[#allocation2 + $0x9c] sm:$0xff]
    %v113 = vld [vmem:[#allocation2 + $0xa4] sm:$0xf]
    %v114 = vld [vmem:[#allocation2 + $0xa8] sm:$0xff]
    %v115 = vld [vmem:[#allocation2 + $0xb0] sm:$0xf]
    %v116 = vld [vmem:[#allocation2 + $0xb4] sm:$0xff]
    %v117 = vld [vmem:[#allocation2 + $0xbc] sm:$0xf]
    %v118 = vld [vmem:[#allocation5] sm:$0xff]
    %v119 = vld [vmem:[#allocation5 + $0x8] sm:$0xff]
    %v120 = vld [vmem:[#allocation5 + $0x10] sm:$0xff]
    %v121 = vld [vmem:[#allocation5 + $0x18] sm:$0xff]
    %v122 = vld [vmem:[#allocation5 + $0x20] sm:$0xff]
    %v123 = vld [vmem:[#allocation5 + $0x28] sm:$0xff]
    %v124 = vld [vmem:[#allocation5 + $0x30] sm:$0xff]
    %v125 = vld [vmem:[#allocation5 + $0x38] sm:$0xff]
    %v126 = vld [vmem:[#allocation5 + $0x40] sm:$0xff]
    %v127 = vld [vmem:[#allocation5 + $0x48] sm:$0xff]
    %v128 = vld [vmem:[#allocation5 + $0x50] sm:$0xff]
    %v129 = vld [vmem:[#allocation5 + $0x58] sm:$0xff]
    %v130 = vld [vmem:[#allocation5 + $0x60] sm:$0xff]
    %v131 = vld [vmem:[#allocation5 + $0x68] sm:$0xff]
    %v132 = vld [vmem:[#allocation5 + $0x70] sm:$0xff]
    %v133 = vld [vmem:[#allocation5 + $0x78] sm:$0xff]
    %v134 = vld [vmem:[#allocation5 + $0x80] sm:$0xff]
    %v135 = vld [vmem:[#allocation5 + $0x88] sm:$0xff]
    %v136 = vld [vmem:[#allocation5 + $0x90] sm:$0xff]
    %v137 = vld [vmem:[#allocation5 + $0x98] sm:$0xff]
    %v138 = vld [vmem:[#allocation5 + $0xa0] sm:$0xff]
    %v139 = vld [vmem:[#allocation5 + $0xa8] sm:$0xff]
    %v140 = vld [vmem:[#allocation5 + $0xb0] sm:$0xff]
    %v141 = vld [vmem:[#allocation5 + $0xb8] sm:$0xff]
    %v142 = vld [vmem:[#allocation5 + $0xc0] sm:$0xff]
    %v143 = vld [vmem:[#allocation5 + $0xc8] sm:$0xff]
    %v144 = vld [vmem:[#allocation5 + $0xd0] sm:$0xff]
    %v145 = vld [vmem:[#allocation5 + $0xd8] sm:$0xff]
    %v146 = vld [vmem:[#allocation5 + $0xe0] sm:$0xff]
    %v147 = vld [vmem:[#allocation5 + $0xe8] sm:$0xff]
    %v148 = vld [vmem:[#allocation5 + $0xf0] sm:$0xff]
    %v149 = vld [vmem:[#allocation5 + $0xf8] sm:$0xff]
    %v150 = vld [vmem:[#allocation5 + $0x100] sm:$0xff]
    %v151 = vld [vmem:[#allocation5 + $0x108] sm:$0xff]
    %v152 = vld [vmem:[#allocation5 + $0x110] sm:$0xff]
    %v153 = vld [vmem:[#allocation5 + $0x118] sm:$0xff]
    %v154 = vld [vmem:[#allocation5 + $0x120] sm:$0xff]
    %v155 = vld [vmem:[#allocation5 + $0x128] sm:$0xff]
    %v156 = vld [vmem:[#allocation5 + $0x130] sm:$0xff]
    %v157 = vld [vmem:[#allocation5 + $0x138] sm:$0xff]
    %v158 = vld [vmem:[#allocation5 + $0x140] sm:$0xff]
    %v159 = vld [vmem:[#allocation5 + $0x148] sm:$0xff]
    %v160 = vld [vmem:[#allocation5 + $0x150] sm:$0xff]
    %v161 = vld [vmem:[#allocation5 + $0x158] sm:$0xff]
    %v162 = vld [vmem:[#allocation5 + $0x160] sm:$0xff]
    %v163 = vld [vmem:[#allocation5 + $0x168] sm:$0xff]
    %v164 = vld [vmem:[#allocation5 + $0x170] sm:$0xff]
    %v165 = vld [vmem:[#allocation5 + $0x178] sm:$0xff]
    %v166 = vld [vmem:[#allocation5 + $0x180] sm:$0xff]
    %v167 = vld [vmem:[#allocation5 + $0x188] sm:$0xff]
    %v168 = vld [vmem:[#allocation5 + $0x190] sm:$0xff]
    %v169 = vld [vmem:[#allocation5 + $0x198] sm:$0xff]
    %v170 = vld [vmem:[#allocation5 + $0x1a0] sm:$0xff]
    %v171 = vld [vmem:[#allocation5 + $0x1a8] sm:$0xff]
    %v172 = vld [vmem:[#allocation5 + $0x1b0] sm:$0xff]
    %v173 = vld [vmem:[#allocation5 + $0x1b8] sm:$0xff]
    %v174 = vld [vmem:[#allocation5 + $0x1c0] sm:$0xff]
    %v175 = vld [vmem:[#allocation5 + $0x1c8] sm:$0xff]
    %v176 = vld [vmem:[#allocation5 + $0x1d0] sm:$0xff]
    %v177 = vld [vmem:[#allocation5 + $0x1d8] sm:$0xff]
    %v178 = vld [vmem:[#allocation5 + $0x1e0] sm:$0xff]
    %v179 = vld [vmem:[#allocation5 + $0x1e8] sm:$0xff]
    %v180 = vld [vmem:[#allocation5 + $0x1f0] sm:$0xff]
    %v181 = vld [vmem:[#allocation5 + $0x1f8] sm:$0xff]
    %v182 = vld [vmem:[#allocation5 + $0x200] sm:$0xff]
    %v183 = vld [vmem:[#allocation5 + $0x208] sm:$0xff]
    %v184 = vld [vmem:[#allocation5 + $0x210] sm:$0xff]
    %v185 = vld [vmem:[#allocation5 + $0x218] sm:$0xff]
    %v186 = vld [vmem:[#allocation5 + $0x220] sm:$0xff]
    %v187 = vld [vmem:[#allocation5 + $0x228] sm:$0xff]
    %v188 = vld [vmem:[#allocation5 + $0x230] sm:$0xff]
    %v189 = vld [vmem:[#allocation5 + $0x238] sm:$0xff]
    %v190 = vld [vmem:[#allocation5 + $0x240] sm:$0xff]
    %v191 = vld [vmem:[#allocation5 + $0x248] sm:$0xff]
    %v192 = vld [vmem:[#allocation5 + $0x250] sm:$0xff]
    %v193 = vld [vmem:[#allocation5 + $0x258] sm:$0xff]
    %v194 = vld [vmem:[#allocation5 + $0x260] sm:$0xff]
    %v195 = vld [vmem:[#allocation5 + $0x268] sm:$0xff]
    %v196 = vld [vmem:[#allocation5 + $0x270] sm:$0xff]
    %v197 = vld [vmem:[#allocation5 + $0x278] sm:$0xff]
    %v198 = vld [vmem:[#allocation5 + $0x280] sm:$0xff]
    %v199 = vld [vmem:[#allocation5 + $0x288] sm:$0xff]
    %v200 = vld [vmem:[#allocation5 + $0x290] sm:$0xff]
    %v201 = vld [vmem:[#allocation5 + $0x298] sm:$0xff]
    %v202 = vld [vmem:[#allocation5 + $0x2a0] sm:$0xff]
    %v203 = vld [vmem:[#allocation5 + $0x2a8] sm:$0xff]
    %v204 = vld [vmem:[#allocation5 + $0x2b0] sm:$0xff]
    %v205 = vld [vmem:[#allocation5 + $0x2b8] sm:$0xff]
    %v206 = vld [vmem:[#allocation5 + $0x2c0] sm:$0xff]
    %v207 = vld [vmem:[#allocation5 + $0x2c8] sm:$0xff]
    %v208 = vld [vmem:[#allocation5 + $0x2d0] sm:$0xff]
    %v209 = vld [vmem:[#allocation5 + $0x2d8] sm:$0xff]
    %v210 = vld [vmem:[#allocation5 + $0x2e0] sm:$0xff]
    %v211 = vld [vmem:[#allocation5 + $0x2e8] sm:$0xff]
    %v212 = vld [vmem:[#allocation5 + $0x2f0] sm:$0xff]
    %v213 = vld [vmem:[#allocation5 + $0x2f8] sm:$0xff]
    %v214 = vld [vmem:[#allocation5 + $0x300] sm:$0xff]
    %v215 = vld [vmem:[#allocation5 + $0x308] sm:$0xff]
    %v216 = vld [vmem:[#allocation5 + $0x310] sm:$0xff]
    %v217 = vld [vmem:[#allocation5 + $0x318] sm:$0xff]
    %v218 = vld [vmem:[#allocation5 + $0x320] sm:$0xff]
    %v219 = vld [vmem:[#allocation5 + $0x328] sm:$0xff]
    %v220 = vld [vmem:[#allocation5 + $0x330] sm:$0xff]
    %v221 = vld [vmem:[#allocation5 + $0x338] sm:$0xff]
    %v222 = vld [vmem:[#allocation5 + $0x340] sm:$0xff]
    %v223 = vld [vmem:[#allocation5 + $0x348] sm:$0xff]
    %v224 = vld [vmem:[#allocation5 + $0x350] sm:$0xff]
    %v225 = vld [vmem:[#allocation5 + $0x358] sm:$0xff]
    %v226 = vld [vmem:[#allocation5 + $0x360] sm:$0xff]
    %v227 = vld [vmem:[#allocation5 + $0x368] sm:$0xff]
    %v228 = vld [vmem:[#allocation5 + $0x370] sm:$0xff]
    %v229 = vld [vmem:[#allocation5 + $0x378] sm:$0xff]
    %v230 = vld [vmem:[#allocation5 + $0x380] sm:$0xff]
    %v231 = vld [vmem:[#allocation5 + $0x388] sm:$0xff]
    %v232 = vld [vmem:[#allocation5 + $0x390] sm:$0xff]
    %v233 = vld [vmem:[#allocation5 + $0x398] sm:$0xff]
    %v234 = vld [vmem:[#allocation5 + $0x3a0] sm:$0xff]
    %v235 = vld [vmem:[#allocation5 + $0x3a8] sm:$0xff]
    %v236 = vld [vmem:[#allocation5 + $0x3b0] sm:$0xff]
    %v237 = vld [vmem:[#allocation5 + $0x3b8] sm:$0xff]
    %v238 = vld [vmem:[#allocation5 + $0x3c0] sm:$0xff]
    %v239 = vld [vmem:[#allocation5 + $0x3c8] sm:$0xff]
    %v240 = vld [vmem:[#allocation5 + $0x3d0] sm:$0xff]
    %v241 = vld [vmem:[#allocation5 + $0x3d8] sm:$0xff]
    %v242 = vld [vmem:[#allocation5 + $0x3e0] sm:$0xff]
    %v243 = vld [vmem:[#allocation5 + $0x3e8] sm:$0xff]
    %v244 = vld [vmem:[#allocation5 + $0x3f0] sm:$0xff]
    %v245 = vld [vmem:[#allocation5 + $0x3f8] sm:$0xff]
    %v246 = vld [vmem:[#allocation5 + $0x400] sm:$0xff]
    %v247 = vld [vmem:[#allocation5 + $0x408] sm:$0xff]
    %v248 = vld [vmem:[#allocation5 + $0x410] sm:$0xff]
    %v249 = vld [vmem:[#allocation5 + $0x418] sm:$0xff]
    %v250 = vld [vmem:[#allocation5 + $0x420] sm:$0xff]
    %v251 = vld [vmem:[#allocation5 + $0x428] sm:$0xff]
    %v252 = vld [vmem:[#allocation5 + $0x430] sm:$0xff]
    %v253 = vld [vmem:[#allocation5 + $0x438] sm:$0xff]
    %v254 = vld [vmem:[#allocation5 + $0x440] sm:$0xff]
    %v255 = vld [vmem:[#allocation5 + $0x448] sm:$0xff]
    %v256 = vld [vmem:[#allocation5 + $0x450] sm:$0xff]
    %v257 = vld [vmem:[#allocation5 + $0x458] sm:$0xff]
    %v258 = vld [vmem:[#allocation5 + $0x460] sm:$0xff]
    %v259 = vld [vmem:[#allocation5 + $0x468] sm:$0xff]
    %v260 = vld [vmem:[#allocation5 + $0x470] sm:$0xff]
    %v261 = vld [vmem:[#allocation5 + $0x478] sm:$0xff]
    %v262 = vld [vmem:[#allocation5 + $0x480] sm:$0xff]
    %v263 = vld [vmem:[#allocation5 + $0x488] sm:$0xff]
    %v264 = vld [vmem:[#allocation5 + $0x490] sm:$0xff]
    %v265 = vld [vmem:[#allocation5 + $0x498] sm:$0xff]
    %v266 = vld [vmem:[#allocation5 + $0x4a0] sm:$0xff]
    %v267 = vld [vmem:[#allocation5 + $0x4a8] sm:$0xff]
    %v268 = vld [vmem:[#allocation5 + $0x4b0] sm:$0xff]
    %v269 = vld [vmem:[#allocation5 + $0x4b8] sm:$0xff]
    %v270 = vld [vmem:[#allocation5 + $0x4c0] sm:$0xff]
    %v271 = vld [vmem:[#allocation5 + $0x4c8] sm:$0xff]
    %v272 = vld [vmem:[#allocation5 + $0x4d0] sm:$0xff]
    %v273 = vld [vmem:[#allocation5 + $0x4d8] sm:$0xff]
    %v274 = vld [vmem:[#allocation5 + $0x4e0] sm:$0xff]
    %v275 = vld [vmem:[#allocation5 + $0x4e8] sm:$0xff]
    %v276 = vld [vmem:[#allocation5 + $0x4f0] sm:$0xff]
    %v277 = vld [vmem:[#allocation5 + $0x4f8] sm:$0xff]
    %v278 = vld [vmem:[#allocation5 + $0x500] sm:$0xff]
    %v279 = vld [vmem:[#allocation5 + $0x508] sm:$0xff]
    %v280 = vld [vmem:[#allocation5 + $0x510] sm:$0xff]
    %v281 = vld [vmem:[#allocation5 + $0x518] sm:$0xff]
    %v282 = vld [vmem:[#allocation5 + $0x520] sm:$0xff]
    %v283 = vld [vmem:[#allocation5 + $0x528] sm:$0xff]
    %v284 = vld [vmem:[#allocation5 + $0x530] sm:$0xff]
    %v285 = vld [vmem:[#allocation5 + $0x538] sm:$0xff]
    %v286 = vld [vmem:[#allocation5 + $0x540] sm:$0xff]
    %v287 = vld [vmem:[#allocation5 + $0x548] sm:$0xff]
    %v288 = vld [vmem:[#allocation5 + $0x550] sm:$0xff]
    %v289 = vld [vmem:[#allocation5 + $0x558] sm:$0xff]
    %v290 = vld [vmem:[#allocation5 + $0x560] sm:$0xff]
    %v291 = vld [vmem:[#allocation5 + $0x568] sm:$0xff]
    %v292 = vld [vmem:[#allocation5 + $0x570] sm:$0xff]
    %v293 = vld [vmem:[#allocation5 + $0x578] sm:$0xff]
    %v294 = vld [vmem:[#allocation5 + $0x580] sm:$0xff]
    %v295 = vld [vmem:[#allocation5 + $0x588] sm:$0xff]
    %v296 = vld [vmem:[#allocation5 + $0x590] sm:$0xff]
    %v297 = vld [vmem:[#allocation5 + $0x598] sm:$0xff]
    %v298 = vld [vmem:[#allocation5 + $0x5a0] sm:$0xff]
    %v299 = vld [vmem:[#allocation5 + $0x5a8] sm:$0xff]
    %v300 = vld [vmem:[#allocation5 + $0x5b0] sm:$0xff]
    %v301 = vld [vmem:[#allocation5 + $0x5b8] sm:$0xff]
    %v302 = vld [vmem:[#allocation5 + $0x5c0] sm:$0xff]
    %v303 = vld [vmem:[#allocation5 + $0x5c8] sm:$0xff]
    %v304 = vld [vmem:[#allocation5 + $0x5d0] sm:$0xff]
    %v305 = vld [vmem:[#allocation5 + $0x5d8] sm:$0xff]
    %v306 = vld [vmem:[#allocation5 + $0x5e0] sm:$0xff]
    %v307 = vld [vmem:[#allocation5 + $0x5e8] sm:$0xff]
    %v308 = vld [vmem:[#allocation5 + $0x5f0] sm:$0xff]
    %v309 = vld [vmem:[#allocation5 + $0x5f8] sm:$0xff]
    %v310 = vld [vmem:[#allocation5 + $0x600] sm:$0xff]
    %v311 = vld [vmem:[#allocation5 + $0x608] sm:$0xff]
    %v312 = vld [vmem:[#allocation5 + $0x610] sm:$0xff]
    %v313 = vld [vmem:[#allocation5 + $0x618] sm:$0xff]
    %v314 = vld [vmem:[#allocation5 + $0x620] sm:$0xff]
    %v315 = vld [vmem:[#allocation5 + $0x628] sm:$0xff]
    %v316 = vld [vmem:[#allocation5 + $0x630] sm:$0xff]
    %v317 = vld [vmem:[#allocation5 + $0x638] sm:$0xff]
    %v318 = vld [vmem:[#allocation5 + $0x640] sm:$0xff]
    %v319 = vld [vmem:[#allocation5 + $0x648] sm:$0xff]
    %v320 = vld [vmem:[#allocation5 + $0x650] sm:$0xff]
    %v321 = vld [vmem:[#allocation5 + $0x658] sm:$0xff]
    %v322 = vld [vmem:[#allocation5 + $0x660] sm:$0xff]
    %v323 = vld [vmem:[#allocation5 + $0x668] sm:$0xff]
    %v324 = vld [vmem:[#allocation5 + $0x670] sm:$0xff]
    %v325 = vld [vmem:[#allocation5 + $0x678] sm:$0xff]
    %v326 = vld [vmem:[#allocation5 + $0x680] sm:$0xff]
    %v327 = vld [vmem:[#allocation5 + $0x688] sm:$0xff]
    %v328 = vld [vmem:[#allocation5 + $0x690] sm:$0xff]
    %v329 = vld [vmem:[#allocation5 + $0x698] sm:$0xff]
    %v330 = vld [vmem:[#allocation5 + $0x6a0] sm:$0xff]
    %v331 = vld [vmem:[#allocation5 + $0x6a8] sm:$0xff]
    %v332 = vld [vmem:[#allocation5 + $0x6b0] sm:$0xff]
    %v333 = vld [vmem:[#allocation5 + $0x6b8] sm:$0xff]
    %v334 = vld [vmem:[#allocation5 + $0x6c0] sm:$0xff]
    %v335 = vld [vmem:[#allocation5 + $0x6c8] sm:$0xff]
    %v336 = vld [vmem:[#allocation5 + $0x6d0] sm:$0xff]
    %v337 = vld [vmem:[#allocation5 + $0x6d8] sm:$0xff]
    %v338 = vld [vmem:[#allocation5 + $0x6e0] sm:$0xff]
    %v339 = vld [vmem:[#allocation5 + $0x6e8] sm:$0xff]
    %v340 = vld [vmem:[#allocation5 + $0x6f0] sm:$0xff]
    %v341 = vld [vmem:[#allocation5 + $0x6f8] sm:$0xff]
    %v342 = vld [vmem:[#allocation5 + $0x700] sm:$0xff]
    %v343 = vld [vmem:[#allocation5 + $0x708] sm:$0xff]
    %v344 = vld [vmem:[#allocation5 + $0x710] sm:$0xff]
    %v345 = vld [vmem:[#allocation5 + $0x718] sm:$0xff]
    %v346 = vld [vmem:[#allocation5 + $0x720] sm:$0xff]
    %v347 = vld [vmem:[#allocation5 + $0x728] sm:$0xff]
    %v348 = vld [vmem:[#allocation5 + $0x730] sm:$0xff]
    %v349 = vld [vmem:[#allocation5 + $0x738] sm:$0xff]
    %v350 = vld [vmem:[#allocation5 + $0x740] sm:$0xff]
    %v351 = vld [vmem:[#allocation5 + $0x748] sm:$0xff]
    %v352 = vld [vmem:[#allocation5 + $0x750] sm:$0xff]
    %v353 = vld [vmem:[#allocation5 + $0x758] sm:$0xff]
    %v354 = vld [vmem:[#allocation5 + $0x760] sm:$0xff]
    %v355 = vld [vmem:[#allocation5 + $0x768] sm:$0xff]
    %v356 = vld [vmem:[#allocation5 + $0x770] sm:$0xff]
    %v357 = vld [vmem:[#allocation5 + $0x778] sm:$0xff]
    %v358 = vld [vmem:[#allocation5 + $0x780] sm:$0xff]
    %v359 = vld [vmem:[#allocation5 + $0x788] sm:$0xff]
    %v360 = vld [vmem:[#allocation5 + $0x790] sm:$0xff]
    %v361 = vld [vmem:[#allocation5 + $0x798] sm:$0xff]
    %v362 = vld [vmem:[#allocation5 + $0x7a0] sm:$0xff]
    %v363 = vld [vmem:[#allocation5 + $0x7a8] sm:$0xff]
    %v364 = vld [vmem:[#allocation5 + $0x7b0] sm:$0xff]
    %v365 = vld [vmem:[#allocation5 + $0x7b8] sm:$0xff]
    %v366 = vld [vmem:[#allocation5 + $0x7c0] sm:$0xff]
    %v367 = vld [vmem:[#allocation5 + $0x7c8] sm:$0xff]
    %v368 = vld [vmem:[#allocation5 + $0x7d0] sm:$0xff]
    %v369 = vld [vmem:[#allocation5 + $0x7d8] sm:$0xff]
    %v370 = vld [vmem:[#allocation5 + $0x7e0] sm:$0xff]
    %v371 = vld [vmem:[#allocation5 + $0x7e8] sm:$0xff]
    %v372 = vld [vmem:[#allocation5 + $0x7f0] sm:$0xff]
    %v373 = vld [vmem:[#allocation5 + $0x7f8] sm:$0xff]
    %v374 = vld [vmem:[#allocation5 + $0x800] sm:$0xff]
    %v375 = vld [vmem:[#allocation5 + $0x808] sm:$0xff]
    %v376 = vld [vmem:[#allocation5 + $0x810] sm:$0xff]
    %v377 = vld [vmem:[#allocation5 + $0x818] sm:$0xff]
    %v378 = vld [vmem:[#allocation5 + $0x820] sm:$0xff]
    %v379 = vld [vmem:[#allocation5 + $0x828] sm:$0xff]
    %v380 = vld [vmem:[#allocation5 + $0x830] sm:$0xff]
    %v381 = vld [vmem:[#allocation5 + $0x838] sm:$0xff]
    %v382 = vld [vmem:[#allocation5 + $0x840] sm:$0xff]
    %v383 = vld [vmem:[#allocation5 + $0x848] sm:$0xff]
    %v384 = vld [vmem:[#allocation5 + $0x850] sm:$0xff]
    %v385 = vld [vmem:[#allocation5 + $0x858] sm:$0xff]
    %v386 = vld [vmem:[#allocation5 + $0x860] sm:$0xff]
    %v387 = vld [vmem:[#allocation5 + $0x868] sm:$0xff]
    %v388 = vld [vmem:[#allocation5 + $0x870] sm:$0xff]
    %v389 = vld [vmem:[#allocation5 + $0x878] sm:$0xff]
    %v390 = vld [vmem:[#allocation5 + $0x880] sm:$0xff]
    %v391 = vld [vmem:[#allocation5 + $0x888] sm:$0xff]
    %v392 = vld [vmem:[#allocation5 + $0x890] sm:$0xff]
    %v393 = vld [vmem:[#allocation5 + $0x898] sm:$0xff]
    %v394 = vld [vmem:[#allocation5 + $0x8a0] sm:$0xff]
    %v395 = vld [vmem:[#allocation5 + $0x8a8] sm:$0xff]
    %v396 = vld [vmem:[#allocation5 + $0x8b0] sm:$0xff]
    %v397 = vld [vmem:[#allocation5 + $0x8b8] sm:$0xff]
    %v398 = vld [vmem:[#allocation5 + $0x8c0] sm:$0xff]
    %v399 = vld [vmem:[#allocation5 + $0x8c8] sm:$0xff]
    %v400 = vld [vmem:[#allocation5 + $0x8d0] sm:$0xff]
    %v401 = vld [vmem:[#allocation5 + $0x8d8] sm:$0xff]
    %v402 = vld [vmem:[#allocation5 + $0x8e0] sm:$0xff]
    %v403 = vld [vmem:[#allocation5 + $0x8e8] sm:$0xff]
    %v404 = vld [vmem:[#allocation5 + $0x8f0] sm:$0xff]
    %v405 = vld [vmem:[#allocation5 + $0x8f8] sm:$0xff]
    %v406 = vld [vmem:[#allocation7] sm:$0xff]
    %v407 = vld [vmem:[#allocation7 + $0x8] sm:$0xf]
    %v410 = vlaneseq
    %v411 = vshrl.u32 %v410, 7
    %v412 = vsub.s32 0, %v411
    %v413 = vrot.slane %v406, %v412
    %v414 = vlaneseq
    %v415 = vshrl.u32 %v414, 7
    %v416 = vsub.s32 1, %v415
    %v417 = vrot.slane %v406, %v416
    %v418 = vlaneseq
    %v419 = vshrl.u32 %v418, 7
    %v420 = vsub.s32 2, %v419
    %v421 = vrot.slane %v406, %v420
    %v422 = vlaneseq
    %v423 = vshrl.u32 %v422, 7
    %v424 = vsub.s32 3, %v423
    %v425 = vrot.slane %v406, %v424
    %v426 = vlaneseq
    %v427 = vshrl.u32 %v426, 7
    %v428 = vsub.s32 4, %v427
    %v429 = vrot.slane %v406, %v428
    %v430 = vlaneseq
    %v431 = vshrl.u32 %v430, 7
    %v432 = vsub.s32 5, %v431
    %v433 = vrot.slane %v406, %v432
    %v434 = vlaneseq
    %v435 = vshrl.u32 %v434, 7
    %v436 = vsub.s32 6, %v435
    %v437 = vrot.slane %v406, %v436
    %v438 = vlaneseq
    %v439 = vshrl.u32 %v438, 7
    %v440 = vsub.s32 7, %v439
    %v441 = vrot.slane %v406, %v440
    %v442 = vlaneseq
    %v443 = vshrl.u32 %v442, 7
    %v444 = vsub.s32 0, %v443
    %v445 = vrot.slane %v407, %v444
    %v446 = vlaneseq
    %v447 = vshrl.u32 %v446, 7
    %v448 = vsub.s32 1, %v447
    %v449 = vrot.slane %v407, %v448
    %v450 = vlaneseq
    %v451 = vshrl.u32 %v450, 7
    %v452 = vsub.s32 2, %v451
    %v453 = vrot.slane %v407, %v452
    %v454 = vlaneseq
    %v455 = vshrl.u32 %v454, 7
    %v456 = vsub.s32 3, %v455
    %v457 = vrot.slane %v407, %v456
    %v502 = vunpack.c.l.b16 %v86
    %v503 = vunpack.c.h.b16 %v86
    %v504 = vunpack.c.l.b16 %v87
    %v505 = vunpack.c.l.b16 %v88
    %v506 = vunpack.c.h.b16 %v88
    %v507 = vunpack.c.l.b16 %v89
    %v508 = vunpack.c.l.b16 %v90
    %v509 = vunpack.c.h.b16 %v90
    %v510 = vunpack.c.l.b16 %v91
    %v511 = vunpack.c.l.b16 %v92
    %v512 = vunpack.c.h.b16 %v92
    %v513 = vunpack.c.l.b16 %v93
    %v514 = vunpack.c.l.b16 %v94
    %v515 = vunpack.c.h.b16 %v94
    %v516 = vunpack.c.l.b16 %v95
    %v517 = vunpack.c.l.b16 %v96
    %v518 = vunpack.c.h.b16 %v96
    %v519 = vunpack.c.l.b16 %v97
    %v520 = vunpack.c.l.b16 %v98
    %v521 = vunpack.c.h.b16 %v98
    %v522 = vunpack.c.l.b16 %v99
    %v523 = vunpack.c.l.b16 %v100
    %v524 = vunpack.c.h.b16 %v100
    %v525 = vunpack.c.l.b16 %v101
    %v526 = vunpack.c.l.b16 %v102
    %v527 = vunpack.c.h.b16 %v102
    %v528 = vunpack.c.l.b16 %v103
    %v529 = vunpack.c.l.b16 %v104
    %v530 = vunpack.c.h.b16 %v104
    %v531 = vunpack.c.l.b16 %v105
    %v532 = vunpack.c.l.b16 %v106
    %v533 = vunpack.c.h.b16 %v106
    %v534 = vunpack.c.l.b16 %v107
    %v535 = vunpack.c.l.b16 %v108
    %v536 = vunpack.c.h.b16 %v108
    %v537 = vunpack.c.l.b16 %v109
    %v538 = vunpack.c.l.b16 %v110
    %v539 = vunpack.c.h.b16 %v110
    %v540 = vunpack.c.l.b16 %v111
    %v541 = vunpack.c.l.b16 %v112
    %v542 = vunpack.c.h.b16 %v112
    %v543 = vunpack.c.l.b16 %v113
    %v544 = vunpack.c.l.b16 %v114
    %v545 = vunpack.c.h.b16 %v114
    %v546 = vunpack.c.l.b16 %v115
    %v547 = vunpack.c.l.b16 %v116
    %v548 = vunpack.c.h.b16 %v116
    %v549 = vunpack.c.l.b16 %v117
    %v550 = vpack.c.b16 %v505, %v502
    %v551 = vpack.c.b16 %v506, %v503
    %v552 = vpack.c.b16 %v507, %v504
    %v553 = vpack.c.b16 %v511, %v508
    %v554 = vpack.c.b16 %v512, %v509
    %v555 = vpack.c.b16 %v513, %v510
    %v556 = vpack.c.b16 %v517, %v514
    %v557 = vpack.c.b16 %v518, %v515
    %v558 = vpack.c.b16 %v519, %v516
    %v559 = vpack.c.b16 %v523, %v520
    %v560 = vpack.c.b16 %v524, %v521
    %v561 = vpack.c.b16 %v525, %v522
    %v562 = vpack.c.b16 %v529, %v526
    %v563 = vpack.c.b16 %v530, %v527
    %v564 = vpack.c.b16 %v531, %v528
    %v565 = vpack.c.b16 %v535, %v532
    %v566 = vpack.c.b16 %v536, %v533
    %v567 = vpack.c.b16 %v537, %v534
    %v568 = vpack.c.b16 %v541, %v538
    %v569 = vpack.c.b16 %v542, %v539
    %v570 = vpack.c.b16 %v543, %v540
    %v571 = vpack.c.b16 %v547, %v544
    %v572 = vpack.c.b16 %v548, %v545
    %v573 = vpack.c.b16 %v549, %v546
    %v886 = vunpack.c.l.b16 %v118
    %v887 = vunpack.c.h.b16 %v118
    %v888 = vunpack.c.l.b16 %v119
    %v889 = vunpack.c.h.b16 %v119
    %v890 = vunpack.c.l.b16 %v120
    %v891 = vunpack.c.h.b16 %v120
    %v892 = vunpack.c.l.b16 %v121
    %v893 = vunpack.c.h.b16 %v121
    %v894 = vunpack.c.l.b16 %v122
    %v895 = vunpack.c.h.b16 %v122
    %v896 = vunpack.c.l.b16 %v123
    %v897 = vunpack.c.h.b16 %v123
    %v898 = vunpack.c.l.b16 %v124
    %v899 = vunpack.c.h.b16 %v124
    %v900 = vunpack.c.l.b16 %v125
    %v901 = vunpack.c.h.b16 %v125
    %v902 = vunpack.c.l.b16 %v126
    %v903 = vunpack.c.h.b16 %v126
    %v904 = vunpack.c.l.b16 %v127
    %v905 = vunpack.c.h.b16 %v127
    %v906 = vunpack.c.l.b16 %v128
    %v907 = vunpack.c.h.b16 %v128
    %v908 = vunpack.c.l.b16 %v129
    %v909 = vunpack.c.h.b16 %v129
    %v910 = vunpack.c.l.b16 %v130
    %v911 = vunpack.c.h.b16 %v130
    %v912 = vunpack.c.l.b16 %v131
    %v913 = vunpack.c.h.b16 %v131
    %v914 = vunpack.c.l.b16 %v132
    %v915 = vunpack.c.h.b16 %v132
    %v916 = vunpack.c.l.b16 %v133
    %v917 = vunpack.c.h.b16 %v133
    %v918 = vunpack.c.l.b16 %v134
    %v919 = vunpack.c.h.b16 %v134
    %v920 = vunpack.c.l.b16 %v135
    %v921 = vunpack.c.h.b16 %v135
    %v922 = vunpack.c.l.b16 %v136
    %v923 = vunpack.c.h.b16 %v136
    %v924 = vunpack.c.l.b16 %v137
    %v925 = vunpack.c.h.b16 %v137
    %v926 = vunpack.c.l.b16 %v138
    %v927 = vunpack.c.h.b16 %v138
    %v928 = vunpack.c.l.b16 %v139
    %v929 = vunpack.c.h.b16 %v139
    %v930 = vunpack.c.l.b16 %v140
    %v931 = vunpack.c.h.b16 %v140
    %v932 = vunpack.c.l.b16 %v141
    %v933 = vunpack.c.h.b16 %v141
    %v934 = vunpack.c.l.b16 %v142
    %v935 = vunpack.c.h.b16 %v142
    %v936 = vunpack.c.l.b16 %v143
    %v937 = vunpack.c.h.b16 %v143
    %v938 = vunpack.c.l.b16 %v144
    %v939 = vunpack.c.h.b16 %v144
    %v940 = vunpack.c.l.b16 %v145
    %v941 = vunpack.c.h.b16 %v145
    %v942 = vunpack.c.l.b16 %v146
    %v943 = vunpack.c.h.b16 %v146
    %v944 = vunpack.c.l.b16 %v147
    %v945 = vunpack.c.h.b16 %v147
    %v946 = vunpack.c.l.b16 %v148
    %v947 = vunpack.c.h.b16 %v148
    %v948 = vunpack.c.l.b16 %v149
    %v949 = vunpack.c.h.b16 %v149
    %v950 = vunpack.c.l.b16 %v150
    %v951 = vunpack.c.h.b16 %v150
    %v952 = vunpack.c.l.b16 %v151
    %v953 = vunpack.c.h.b16 %v151
    %v954 = vunpack.c.l.b16 %v152
    %v955 = vunpack.c.h.b16 %v152
    %v956 = vunpack.c.l.b16 %v153
    %v957 = vunpack.c.h.b16 %v153
    %v958 = vunpack.c.l.b16 %v154
    %v959 = vunpack.c.h.b16 %v154
    %v960 = vunpack.c.l.b16 %v155
    %v961 = vunpack.c.h.b16 %v155
    %v962 = vunpack.c.l.b16 %v156
    %v963 = vunpack.c.h.b16 %v156
    %v964 = vunpack.c.l.b16 %v157
    %v965 = vunpack.c.h.b16 %v157
    %v966 = vunpack.c.l.b16 %v158
    %v967 = vunpack.c.h.b16 %v158
    %v968 = vunpack.c.l.b16 %v159
    %v969 = vunpack.c.h.b16 %v159
    %v970 = vunpack.c.l.b16 %v160
    %v971 = vunpack.c.h.b16 %v160
    %v972 = vunpack.c.l.b16 %v161
    %v973 = vunpack.c.h.b16 %v161
    %v974 = vunpack.c.l.b16 %v162
    %v975 = vunpack.c.h.b16 %v162
    %v976 = vunpack.c.l.b16 %v163
    %v977 = vunpack.c.h.b16 %v163
    %v978 = vunpack.c.l.b16 %v164
    %v979 = vunpack.c.h.b16 %v164
    %v980 = vunpack.c.l.b16 %v165
    %v981 = vunpack.c.h.b16 %v165
    %v982 = vunpack.c.l.b16 %v166
    %v983 = vunpack.c.h.b16 %v166
    %v984 = vunpack.c.l.b16 %v167
    %v985 = vunpack.c.h.b16 %v167
    %v986 = vunpack.c.l.b16 %v168
    %v987 = vunpack.c.h.b16 %v168
    %v988 = vunpack.c.l.b16 %v169
    %v989 = vunpack.c.h.b16 %v169
    %v990 = vunpack.c.l.b16 %v170
    %v991 = vunpack.c.h.b16 %v170
    %v992 = vunpack.c.l.b16 %v171
    %v993 = vunpack.c.h.b16 %v171
    %v994 = vunpack.c.l.b16 %v172
    %v995 = vunpack.c.h.b16 %v172
    %v996 = vunpack.c.l.b16 %v173
    %v997 = vunpack.c.h.b16 %v173
    %v998 = vunpack.c.l.b16 %v174
    %v999 = vunpack.c.h.b16 %v174
    %v1000 = vunpack.c.l.b16 %v175
    %v1001 = vunpack.c.h.b16 %v175
    %v1002 = vunpack.c.l.b16 %v176
    %v1003 = vunpack.c.h.b16 %v176
    %v1004 = vunpack.c.l.b16 %v177
    %v1005 = vunpack.c.h.b16 %v177
    %v1006 = vunpack.c.l.b16 %v178
    %v1007 = vunpack.c.h.b16 %v178
    %v1008 = vunpack.c.l.b16 %v179
    %v1009 = vunpack.c.h.b16 %v179
    %v1010 = vunpack.c.l.b16 %v180
    %v1011 = vunpack.c.h.b16 %v180
    %v1012 = vunpack.c.l.b16 %v181
    %v1013 = vunpack.c.h.b16 %v181
    %v1014 = vunpack.c.l.b16 %v182
    %v1015 = vunpack.c.h.b16 %v182
    %v1016 = vunpack.c.l.b16 %v183
    %v1017 = vunpack.c.h.b16 %v183
    %v1018 = vunpack.c.l.b16 %v184
    %v1019 = vunpack.c.h.b16 %v184
    %v1020 = vunpack.c.l.b16 %v185
    %v1021 = vunpack.c.h.b16 %v185
    %v1022 = vunpack.c.l.b16 %v186
    %v1023 = vunpack.c.h.b16 %v186
    %v1024 = vunpack.c.l.b16 %v187
    %v1025 = vunpack.c.h.b16 %v187
    %v1026 = vunpack.c.l.b16 %v188
    %v1027 = vunpack.c.h.b16 %v188
    %v1028 = vunpack.c.l.b16 %v189
    %v1029 = vunpack.c.h.b16 %v189
    %v1030 = vunpack.c.l.b16 %v190
    %v1031 = vunpack.c.h.b16 %v190
    %v1032 = vunpack.c.l.b16 %v191
    %v1033 = vunpack.c.h.b16 %v191
    %v1034 = vunpack.c.l.b16 %v192
    %v1035 = vunpack.c.h.b16 %v192
    %v1036 = vunpack.c.l.b16 %v193
    %v1037 = vunpack.c.h.b16 %v193
    %v1038 = vunpack.c.l.b16 %v194
    %v1039 = vunpack.c.h.b16 %v194
    %v1040 = vunpack.c.l.b16 %v195
    %v1041 = vunpack.c.h.b16 %v195
    %v1042 = vunpack.c.l.b16 %v196
    %v1043 = vunpack.c.h.b16 %v196
    %v1044 = vunpack.c.l.b16 %v197
    %v1045 = vunpack.c.h.b16 %v197
    %v1046 = vunpack.c.l.b16 %v198
    %v1047 = vunpack.c.h.b16 %v198
    %v1048 = vunpack.c.l.b16 %v199
    %v1049 = vunpack.c.h.b16 %v199
    %v1050 = vunpack.c.l.b16 %v200
    %v1051 = vunpack.c.h.b16 %v200
    %v1052 = vunpack.c.l.b16 %v201
    %v1053 = vunpack.c.h.b16 %v201
    %v1054 = vunpack.c.l.b16 %v202
    %v1055 = vunpack.c.h.b16 %v202
    %v1056 = vunpack.c.l.b16 %v203
    %v1057 = vunpack.c.h.b16 %v203
    %v1058 = vunpack.c.l.b16 %v204
    %v1059 = vunpack.c.h.b16 %v204
    %v1060 = vunpack.c.l.b16 %v205
    %v1061 = vunpack.c.h.b16 %v205
    %v1062 = vunpack.c.l.b16 %v206
    %v1063 = vunpack.c.h.b16 %v206
    %v1064 = vunpack.c.l.b16 %v207
    %v1065 = vunpack.c.h.b16 %v207
    %v1066 = vunpack.c.l.b16 %v208
    %v1067 = vunpack.c.h.b16 %v208
    %v1068 = vunpack.c.l.b16 %v209
    %v1069 = vunpack.c.h.b16 %v209
    %v1070 = vunpack.c.l.b16 %v210
    %v1071 = vunpack.c.h.b16 %v210
    %v1072 = vunpack.c.l.b16 %v211
    %v1073 = vunpack.c.h.b16 %v211
    %v1074 = vunpack.c.l.b16 %v212
    %v1075 = vunpack.c.h.b16 %v212
    %v1076 = vunpack.c.l.b16 %v213
    %v1077 = vunpack.c.h.b16 %v213
    %v1078 = vunpack.c.l.b16 %v214
    %v1079 = vunpack.c.h.b16 %v214
    %v1080 = vunpack.c.l.b16 %v215
    %v1081 = vunpack.c.h.b16 %v215
    %v1082 = vunpack.c.l.b16 %v216
    %v1083 = vunpack.c.h.b16 %v216
    %v1084 = vunpack.c.l.b16 %v217
    %v1085 = vunpack.c.h.b16 %v217
    %v1086 = vunpack.c.l.b16 %v218
    %v1087 = vunpack.c.h.b16 %v218
    %v1088 = vunpack.c.l.b16 %v219
    %v1089 = vunpack.c.h.b16 %v219
    %v1090 = vunpack.c.l.b16 %v220
    %v1091 = vunpack.c.h.b16 %v220
    %v1092 = vunpack.c.l.b16 %v221
    %v1093 = vunpack.c.h.b16 %v221
    %v1094 = vunpack.c.l.b16 %v222
    %v1095 = vunpack.c.h.b16 %v222
    %v1096 = vunpack.c.l.b16 %v223
    %v1097 = vunpack.c.h.b16 %v223
    %v1098 = vunpack.c.l.b16 %v224
    %v1099 = vunpack.c.h.b16 %v224
    %v1100 = vunpack.c.l.b16 %v225
    %v1101 = vunpack.c.h.b16 %v225
    %v1102 = vunpack.c.l.b16 %v226
    %v1103 = vunpack.c.h.b16 %v226
    %v1104 = vunpack.c.l.b16 %v227
    %v1105 = vunpack.c.h.b16 %v227
    %v1106 = vunpack.c.l.b16 %v228
    %v1107 = vunpack.c.h.b16 %v228
    %v1108 = vunpack.c.l.b16 %v229
    %v1109 = vunpack.c.h.b16 %v229
    %v1110 = vunpack.c.l.b16 %v230
    %v1111 = vunpack.c.h.b16 %v230
    %v1112 = vunpack.c.l.b16 %v231
    %v1113 = vunpack.c.h.b16 %v231
    %v1114 = vunpack.c.l.b16 %v232
    %v1115 = vunpack.c.h.b16 %v232
    %v1116 = vunpack.c.l.b16 %v233
    %v1117 = vunpack.c.h.b16 %v233
    %v1118 = vunpack.c.l.b16 %v234
    %v1119 = vunpack.c.h.b16 %v234
    %v1120 = vunpack.c.l.b16 %v235
    %v1121 = vunpack.c.h.b16 %v235
    %v1122 = vunpack.c.l.b16 %v236
    %v1123 = vunpack.c.h.b16 %v236
    %v1124 = vunpack.c.l.b16 %v237
    %v1125 = vunpack.c.h.b16 %v237
    %v1126 = vunpack.c.l.b16 %v238
    %v1127 = vunpack.c.h.b16 %v238
    %v1128 = vunpack.c.l.b16 %v239
    %v1129 = vunpack.c.h.b16 %v239
    %v1130 = vunpack.c.l.b16 %v240
    %v1131 = vunpack.c.h.b16 %v240
    %v1132 = vunpack.c.l.b16 %v241
    %v1133 = vunpack.c.h.b16 %v241
    %v1134 = vunpack.c.l.b16 %v242
    %v1135 = vunpack.c.h.b16 %v242
    %v1136 = vunpack.c.l.b16 %v243
    %v1137 = vunpack.c.h.b16 %v243
    %v1138 = vunpack.c.l.b16 %v244
    %v1139 = vunpack.c.h.b16 %v244
    %v1140 = vunpack.c.l.b16 %v245
    %v1141 = vunpack.c.h.b16 %v245
    %v1142 = vunpack.c.l.b16 %v246
    %v1143 = vunpack.c.h.b16 %v246
    %v1144 = vunpack.c.l.b16 %v247
    %v1145 = vunpack.c.h.b16 %v247
    %v1146 = vunpack.c.l.b16 %v248
    %v1147 = vunpack.c.h.b16 %v248
    %v1148 = vunpack.c.l.b16 %v249
    %v1149 = vunpack.c.h.b16 %v249
    %v1150 = vunpack.c.l.b16 %v250
    %v1151 = vunpack.c.h.b16 %v250
    %v1152 = vunpack.c.l.b16 %v251
    %v1153 = vunpack.c.h.b16 %v251
    %v1154 = vunpack.c.l.b16 %v252
    %v1155 = vunpack.c.h.b16 %v252
    %v1156 = vunpack.c.l.b16 %v253
    %v1157 = vunpack.c.h.b16 %v253
    %v1158 = vunpack.c.l.b16 %v254
    %v1159 = vunpack.c.h.b16 %v254
    %v1160 = vunpack.c.l.b16 %v255
    %v1161 = vunpack.c.h.b16 %v255
    %v1162 = vunpack.c.l.b16 %v256
    %v1163 = vunpack.c.h.b16 %v256
    %v1164 = vunpack.c.l.b16 %v257
    %v1165 = vunpack.c.h.b16 %v257
    %v1166 = vunpack.c.l.b16 %v258
    %v1167 = vunpack.c.h.b16 %v258
    %v1168 = vunpack.c.l.b16 %v259
    %v1169 = vunpack.c.h.b16 %v259
    %v1170 = vunpack.c.l.b16 %v260
    %v1171 = vunpack.c.h.b16 %v260
    %v1172 = vunpack.c.l.b16 %v261
    %v1173 = vunpack.c.h.b16 %v261
    %v1174 = vunpack.c.l.b16 %v262
    %v1175 = vunpack.c.h.b16 %v262
    %v1176 = vunpack.c.l.b16 %v263
    %v1177 = vunpack.c.h.b16 %v263
    %v1178 = vunpack.c.l.b16 %v264
    %v1179 = vunpack.c.h.b16 %v264
    %v1180 = vunpack.c.l.b16 %v265
    %v1181 = vunpack.c.h.b16 %v265
    %v1182 = vunpack.c.l.b16 %v266
    %v1183 = vunpack.c.h.b16 %v266
    %v1184 = vunpack.c.l.b16 %v267
    %v1185 = vunpack.c.h.b16 %v267
    %v1186 = vunpack.c.l.b16 %v268
    %v1187 = vunpack.c.h.b16 %v268
    %v1188 = vunpack.c.l.b16 %v269
    %v1189 = vunpack.c.h.b16 %v269
    %v1190 = vunpack.c.l.b16 %v270
    %v1191 = vunpack.c.h.b16 %v270
    %v1192 = vunpack.c.l.b16 %v271
    %v1193 = vunpack.c.h.b16 %v271
    %v1194 = vunpack.c.l.b16 %v272
    %v1195 = vunpack.c.h.b16 %v272
    %v1196 = vunpack.c.l.b16 %v273
    %v1197 = vunpack.c.h.b16 %v273
    %v1198 = vunpack.c.l.b16 %v274
    %v1199 = vunpack.c.h.b16 %v274
    %v1200 = vunpack.c.l.b16 %v275
    %v1201 = vunpack.c.h.b16 %v275
    %v1202 = vunpack.c.l.b16 %v276
    %v1203 = vunpack.c.h.b16 %v276
    %v1204 = vunpack.c.l.b16 %v277
    %v1205 = vunpack.c.h.b16 %v277
    %v1206 = vunpack.c.l.b16 %v278
    %v1207 = vunpack.c.h.b16 %v278
    %v1208 = vunpack.c.l.b16 %v279
    %v1209 = vunpack.c.h.b16 %v279
    %v1210 = vunpack.c.l.b16 %v280
    %v1211 = vunpack.c.h.b16 %v280
    %v1212 = vunpack.c.l.b16 %v281
    %v1213 = vunpack.c.h.b16 %v281
    %v1214 = vunpack.c.l.b16 %v282
    %v1215 = vunpack.c.h.b16 %v282
    %v1216 = vunpack.c.l.b16 %v283
    %v1217 = vunpack.c.h.b16 %v283
    %v1218 = vunpack.c.l.b16 %v284
    %v1219 = vunpack.c.h.b16 %v284
    %v1220 = vunpack.c.l.b16 %v285
    %v1221 = vunpack.c.h.b16 %v285
    %v1222 = vunpack.c.l.b16 %v286
    %v1223 = vunpack.c.h.b16 %v286
    %v1224 = vunpack.c.l.b16 %v287
    %v1225 = vunpack.c.h.b16 %v287
    %v1226 = vunpack.c.l.b16 %v288
    %v1227 = vunpack.c.h.b16 %v288
    %v1228 = vunpack.c.l.b16 %v289
    %v1229 = vunpack.c.h.b16 %v289
    %v1230 = vunpack.c.l.b16 %v290
    %v1231 = vunpack.c.h.b16 %v290
    %v1232 = vunpack.c.l.b16 %v291
    %v1233 = vunpack.c.h.b16 %v291
    %v1234 = vunpack.c.l.b16 %v292
    %v1235 = vunpack.c.h.b16 %v292
    %v1236 = vunpack.c.l.b16 %v293
    %v1237 = vunpack.c.h.b16 %v293
    %v1238 = vunpack.c.l.b16 %v294
    %v1239 = vunpack.c.h.b16 %v294
    %v1240 = vunpack.c.l.b16 %v295
    %v1241 = vunpack.c.h.b16 %v295
    %v1242 = vunpack.c.l.b16 %v296
    %v1243 = vunpack.c.h.b16 %v296
    %v1244 = vunpack.c.l.b16 %v297
    %v1245 = vunpack.c.h.b16 %v297
    %v1246 = vunpack.c.l.b16 %v298
    %v1247 = vunpack.c.h.b16 %v298
    %v1248 = vunpack.c.l.b16 %v299
    %v1249 = vunpack.c.h.b16 %v299
    %v1250 = vunpack.c.l.b16 %v300
    %v1251 = vunpack.c.h.b16 %v300
    %v1252 = vunpack.c.l.b16 %v301
    %v1253 = vunpack.c.h.b16 %v301
    %v1254 = vunpack.c.l.b16 %v302
    %v1255 = vunpack.c.h.b16 %v302
    %v1256 = vunpack.c.l.b16 %v303
    %v1257 = vunpack.c.h.b16 %v303
    %v1258 = vunpack.c.l.b16 %v304
    %v1259 = vunpack.c.h.b16 %v304
    %v1260 = vunpack.c.l.b16 %v305
    %v1261 = vunpack.c.h.b16 %v305
    %v1262 = vunpack.c.l.b16 %v306
    %v1263 = vunpack.c.h.b16 %v306
    %v1264 = vunpack.c.l.b16 %v307
    %v1265 = vunpack.c.h.b16 %v307
    %v1266 = vunpack.c.l.b16 %v308
    %v1267 = vunpack.c.h.b16 %v308
    %v1268 = vunpack.c.l.b16 %v309
    %v1269 = vunpack.c.h.b16 %v309
    %v1270 = vunpack.c.l.b16 %v310
    %v1271 = vunpack.c.h.b16 %v310
    %v1272 = vunpack.c.l.b16 %v311
    %v1273 = vunpack.c.h.b16 %v311
    %v1274 = vunpack.c.l.b16 %v312
    %v1275 = vunpack.c.h.b16 %v312
    %v1276 = vunpack.c.l.b16 %v313
    %v1277 = vunpack.c.h.b16 %v313
    %v1278 = vunpack.c.l.b16 %v314
    %v1279 = vunpack.c.h.b16 %v314
    %v1280 = vunpack.c.l.b16 %v315
    %v1281 = vunpack.c.h.b16 %v315
    %v1282 = vunpack.c.l.b16 %v316
    %v1283 = vunpack.c.h.b16 %v316
    %v1284 = vunpack.c.l.b16 %v317
    %v1285 = vunpack.c.h.b16 %v317
    %v1286 = vunpack.c.l.b16 %v318
    %v1287 = vunpack.c.h.b16 %v318
    %v1288 = vunpack.c.l.b16 %v319
    %v1289 = vunpack.c.h.b16 %v319
    %v1290 = vunpack.c.l.b16 %v320
    %v1291 = vunpack.c.h.b16 %v320
    %v1292 = vunpack.c.l.b16 %v321
    %v1293 = vunpack.c.h.b16 %v321
    %v1294 = vunpack.c.l.b16 %v322
    %v1295 = vunpack.c.h.b16 %v322
    %v1296 = vunpack.c.l.b16 %v323
    %v1297 = vunpack.c.h.b16 %v323
    %v1298 = vunpack.c.l.b16 %v324
    %v1299 = vunpack.c.h.b16 %v324
    %v1300 = vunpack.c.l.b16 %v325
    %v1301 = vunpack.c.h.b16 %v325
    %v1302 = vunpack.c.l.b16 %v326
    %v1303 = vunpack.c.h.b16 %v326
    %v1304 = vunpack.c.l.b16 %v327
    %v1305 = vunpack.c.h.b16 %v327
    %v1306 = vunpack.c.l.b16 %v328
    %v1307 = vunpack.c.h.b16 %v328
    %v1308 = vunpack.c.l.b16 %v329
    %v1309 = vunpack.c.h.b16 %v329
    %v1310 = vunpack.c.l.b16 %v330
    %v1311 = vunpack.c.h.b16 %v330
    %v1312 = vunpack.c.l.b16 %v331
    %v1313 = vunpack.c.h.b16 %v331
    %v1314 = vunpack.c.l.b16 %v332
    %v1315 = vunpack.c.h.b16 %v332
    %v1316 = vunpack.c.l.b16 %v333
    %v1317 = vunpack.c.h.b16 %v333
    %v1318 = vunpack.c.l.b16 %v334
    %v1319 = vunpack.c.h.b16 %v334
    %v1320 = vunpack.c.l.b16 %v335
    %v1321 = vunpack.c.h.b16 %v335
    %v1322 = vunpack.c.l.b16 %v336
    %v1323 = vunpack.c.h.b16 %v336
    %v1324 = vunpack.c.l.b16 %v337
    %v1325 = vunpack.c.h.b16 %v337
    %v1326 = vunpack.c.l.b16 %v338
    %v1327 = vunpack.c.h.b16 %v338
    %v1328 = vunpack.c.l.b16 %v339
    %v1329 = vunpack.c.h.b16 %v339
    %v1330 = vunpack.c.l.b16 %v340
    %v1331 = vunpack.c.h.b16 %v340
    %v1332 = vunpack.c.l.b16 %v341
    %v1333 = vunpack.c.h.b16 %v341
    %v1334 = vunpack.c.l.b16 %v342
    %v1335 = vunpack.c.h.b16 %v342
    %v1336 = vunpack.c.l.b16 %v343
    %v1337 = vunpack.c.h.b16 %v343
    %v1338 = vunpack.c.l.b16 %v344
    %v1339 = vunpack.c.h.b16 %v344
    %v1340 = vunpack.c.l.b16 %v345
    %v1341 = vunpack.c.h.b16 %v345
    %v1342 = vunpack.c.l.b16 %v346
    %v1343 = vunpack.c.h.b16 %v346
    %v1344 = vunpack.c.l.b16 %v347
    %v1345 = vunpack.c.h.b16 %v347
    %v1346 = vunpack.c.l.b16 %v348
    %v1347 = vunpack.c.h.b16 %v348
    %v1348 = vunpack.c.l.b16 %v349
    %v1349 = vunpack.c.h.b16 %v349
    %v1350 = vunpack.c.l.b16 %v350
    %v1351 = vunpack.c.h.b16 %v350
    %v1352 = vunpack.c.l.b16 %v351
    %v1353 = vunpack.c.h.b16 %v351
    %v1354 = vunpack.c.l.b16 %v352
    %v1355 = vunpack.c.h.b16 %v352
    %v1356 = vunpack.c.l.b16 %v353
    %v1357 = vunpack.c.h.b16 %v353
    %v1358 = vunpack.c.l.b16 %v354
    %v1359 = vunpack.c.h.b16 %v354
    %v1360 = vunpack.c.l.b16 %v355
    %v1361 = vunpack.c.h.b16 %v355
    %v1362 = vunpack.c.l.b16 %v356
    %v1363 = vunpack.c.h.b16 %v356
    %v1364 = vunpack.c.l.b16 %v357
    %v1365 = vunpack.c.h.b16 %v357
    %v1366 = vunpack.c.l.b16 %v358
    %v1367 = vunpack.c.h.b16 %v358
    %v1368 = vunpack.c.l.b16 %v359
    %v1369 = vunpack.c.h.b16 %v359
    %v1370 = vunpack.c.l.b16 %v360
    %v1371 = vunpack.c.h.b16 %v360
    %v1372 = vunpack.c.l.b16 %v361
    %v1373 = vunpack.c.h.b16 %v361
    %v1374 = vunpack.c.l.b16 %v362
    %v1375 = vunpack.c.h.b16 %v362
    %v1376 = vunpack.c.l.b16 %v363
    %v1377 = vunpack.c.h.b16 %v363
    %v1378 = vunpack.c.l.b16 %v364
    %v1379 = vunpack.c.h.b16 %v364
    %v1380 = vunpack.c.l.b16 %v365
    %v1381 = vunpack.c.h.b16 %v365
    %v1382 = vunpack.c.l.b16 %v366
    %v1383 = vunpack.c.h.b16 %v366
    %v1384 = vunpack.c.l.b16 %v367
    %v1385 = vunpack.c.h.b16 %v367
    %v1386 = vunpack.c.l.b16 %v368
    %v1387 = vunpack.c.h.b16 %v368
    %v1388 = vunpack.c.l.b16 %v369
    %v1389 = vunpack.c.h.b16 %v369
    %v1390 = vunpack.c.l.b16 %v370
    %v1391 = vunpack.c.h.b16 %v370
    %v1392 = vunpack.c.l.b16 %v371
    %v1393 = vunpack.c.h.b16 %v371
    %v1394 = vunpack.c.l.b16 %v372
    %v1395 = vunpack.c.h.b16 %v372
    %v1396 = vunpack.c.l.b16 %v373
    %v1397 = vunpack.c.h.b16 %v373
    %v1398 = vunpack.c.l.b16 %v374
    %v1399 = vunpack.c.h.b16 %v374
    %v1400 = vunpack.c.l.b16 %v375
    %v1401 = vunpack.c.h.b16 %v375
    %v1402 = vunpack.c.l.b16 %v376
    %v1403 = vunpack.c.h.b16 %v376
    %v1404 = vunpack.c.l.b16 %v377
    %v1405 = vunpack.c.h.b16 %v377
    %v1406 = vunpack.c.l.b16 %v378
    %v1407 = vunpack.c.h.b16 %v378
    %v1408 = vunpack.c.l.b16 %v379
    %v1409 = vunpack.c.h.b16 %v379
    %v1410 = vunpack.c.l.b16 %v380
    %v1411 = vunpack.c.h.b16 %v380
    %v1412 = vunpack.c.l.b16 %v381
    %v1413 = vunpack.c.h.b16 %v381
    %v1414 = vunpack.c.l.b16 %v382
    %v1415 = vunpack.c.h.b16 %v382
    %v1416 = vunpack.c.l.b16 %v383
    %v1417 = vunpack.c.h.b16 %v383
    %v1418 = vunpack.c.l.b16 %v384
    %v1419 = vunpack.c.h.b16 %v384
    %v1420 = vunpack.c.l.b16 %v385
    %v1421 = vunpack.c.h.b16 %v385
    %v1422 = vunpack.c.l.b16 %v386
    %v1423 = vunpack.c.h.b16 %v386
    %v1424 = vunpack.c.l.b16 %v387
    %v1425 = vunpack.c.h.b16 %v387
    %v1426 = vunpack.c.l.b16 %v388
    %v1427 = vunpack.c.h.b16 %v388
    %v1428 = vunpack.c.l.b16 %v389
    %v1429 = vunpack.c.h.b16 %v389
    %v1430 = vunpack.c.l.b16 %v390
    %v1431 = vunpack.c.h.b16 %v390
    %v1432 = vunpack.c.l.b16 %v391
    %v1433 = vunpack.c.h.b16 %v391
    %v1434 = vunpack.c.l.b16 %v392
    %v1435 = vunpack.c.h.b16 %v392
    %v1436 = vunpack.c.l.b16 %v393
    %v1437 = vunpack.c.h.b16 %v393
    %v1438 = vunpack.c.l.b16 %v394
    %v1439 = vunpack.c.h.b16 %v394
    %v1440 = vunpack.c.l.b16 %v395
    %v1441 = vunpack.c.h.b16 %v395
    %v1442 = vunpack.c.l.b16 %v396
    %v1443 = vunpack.c.h.b16 %v396
    %v1444 = vunpack.c.l.b16 %v397
    %v1445 = vunpack.c.h.b16 %v397
    %v1446 = vunpack.c.l.b16 %v398
    %v1447 = vunpack.c.h.b16 %v398
    %v1448 = vunpack.c.l.b16 %v399
    %v1449 = vunpack.c.h.b16 %v399
    %v1450 = vunpack.c.l.b16 %v400
    %v1451 = vunpack.c.h.b16 %v400
    %v1452 = vunpack.c.l.b16 %v401
    %v1453 = vunpack.c.h.b16 %v401
    %v1454 = vunpack.c.l.b16 %v402
    %v1455 = vunpack.c.h.b16 %v402
    %v1456 = vunpack.c.l.b16 %v403
    %v1457 = vunpack.c.h.b16 %v403
    %v1458 = vunpack.c.l.b16 %v404
    %v1459 = vunpack.c.h.b16 %v404
    %v1460 = vunpack.c.l.b16 %v405
    %v1461 = vunpack.c.h.b16 %v405
    %v1462 = vpack.c.b16 %v898, %v886
    %v1463 = vpack.c.b16 %v899, %v887
    %v1464 = vpack.c.b16 %v900, %v888
    %v1465 = vpack.c.b16 %v901, %v889
    %v1466 = vpack.c.b16 %v902, %v890
    %v1467 = vpack.c.b16 %v903, %v891
    %v1468 = vpack.c.b16 %v904, %v892
    %v1469 = vpack.c.b16 %v905, %v893
    %v1470 = vpack.c.b16 %v906, %v894
    %v1471 = vpack.c.b16 %v907, %v895
    %v1472 = vpack.c.b16 %v908, %v896
    %v1473 = vpack.c.b16 %v909, %v897
    %v1474 = vpack.c.b16 %v922, %v910
    %v1475 = vpack.c.b16 %v923, %v911
    %v1476 = vpack.c.b16 %v924, %v912
    %v1477 = vpack.c.b16 %v925, %v913
    %v1478 = vpack.c.b16 %v926, %v914
    %v1479 = vpack.c.b16 %v927, %v915
    %v1480 = vpack.c.b16 %v928, %v916
    %v1481 = vpack.c.b16 %v929, %v917
    %v1482 = vpack.c.b16 %v930, %v918
    %v1483 = vpack.c.b16 %v931, %v919
    %v1484 = vpack.c.b16 %v932, %v920
    %v1485 = vpack.c.b16 %v933, %v921
    %v1486 = vpack.c.b16 %v946, %v934
    %v1487 = vpack.c.b16 %v947, %v935
    %v1488 = vpack.c.b16 %v948, %v936
    %v1489 = vpack.c.b16 %v949, %v937
    %v1490 = vpack.c.b16 %v950, %v938
    %v1491 = vpack.c.b16 %v951, %v939
    %v1492 = vpack.c.b16 %v952, %v940
    %v1493 = vpack.c.b16 %v953, %v941
    %v1494 = vpack.c.b16 %v954, %v942
    %v1495 = vpack.c.b16 %v955, %v943
    %v1496 = vpack.c.b16 %v956, %v944
    %v1497 = vpack.c.b16 %v957, %v945
    %v1498 = vpack.c.b16 %v970, %v958
    %v1499 = vpack.c.b16 %v971, %v959
    %v1500 = vpack.c.b16 %v972, %v960
    %v1501 = vpack.c.b16 %v973, %v961
    %v1502 = vpack.c.b16 %v974, %v962
    %v1503 = vpack.c.b16 %v975, %v963
    %v1504 = vpack.c.b16 %v976, %v964
    %v1505 = vpack.c.b16 %v977, %v965
    %v1506 = vpack.c.b16 %v978, %v966
    %v1507 = vpack.c.b16 %v979, %v967
    %v1508 = vpack.c.b16 %v980, %v968
    %v1509 = vpack.c.b16 %v981, %v969
    %v1510 = vpack.c.b16 %v994, %v982
    %v1511 = vpack.c.b16 %v995, %v983
    %v1512 = vpack.c.b16 %v996, %v984
    %v1513 = vpack.c.b16 %v997, %v985
    %v1514 = vpack.c.b16 %v998, %v986
    %v1515 = vpack.c.b16 %v999, %v987
    %v1516 = vpack.c.b16 %v1000, %v988
    %v1517 = vpack.c.b16 %v1001, %v989
    %v1518 = vpack.c.b16 %v1002, %v990
    %v1519 = vpack.c.b16 %v1003, %v991
    %v1520 = vpack.c.b16 %v1004, %v992
    %v1521 = vpack.c.b16 %v1005, %v993
    %v1522 = vpack.c.b16 %v1018, %v1006
    %v1523 = vpack.c.b16 %v1019, %v1007
    %v1524 = vpack.c.b16 %v1020, %v1008
    %v1525 = vpack.c.b16 %v1021, %v1009
    %v1526 = vpack.c.b16 %v1022, %v1010
    %v1527 = vpack.c.b16 %v1023, %v1011
    %v1528 = vpack.c.b16 %v1024, %v1012
    %v1529 = vpack.c.b16 %v1025, %v1013
    %v1530 = vpack.c.b16 %v1026, %v1014
    %v1531 = vpack.c.b16 %v1027, %v1015
    %v1532 = vpack.c.b16 %v1028, %v1016
    %v1533 = vpack.c.b16 %v1029, %v1017
    %v1534 = vpack.c.b16 %v1042, %v1030
    %v1535 = vpack.c.b16 %v1043, %v1031
    %v1536 = vpack.c.b16 %v1044, %v1032
    %v1537 = vpack.c.b16 %v1045, %v1033
    %v1538 = vpack.c.b16 %v1046, %v1034
    %v1539 = vpack.c.b16 %v1047, %v1035
    %v1540 = vpack.c.b16 %v1048, %v1036
    %v1541 = vpack.c.b16 %v1049, %v1037
    %v1542 = vpack.c.b16 %v1050, %v1038
    %v1543 = vpack.c.b16 %v1051, %v1039
    %v1544 = vpack.c.b16 %v1052, %v1040
    %v1545 = vpack.c.b16 %v1053, %v1041
    %v1546 = vpack.c.b16 %v1066, %v1054
    %v1547 = vpack.c.b16 %v1067, %v1055
    %v1548 = vpack.c.b16 %v1068, %v1056
    %v1549 = vpack.c.b16 %v1069, %v1057
    %v1550 = vpack.c.b16 %v1070, %v1058
    %v1551 = vpack.c.b16 %v1071, %v1059
    %v1552 = vpack.c.b16 %v1072, %v1060
    %v1553 = vpack.c.b16 %v1073, %v1061
    %v1554 = vpack.c.b16 %v1074, %v1062
    %v1555 = vpack.c.b16 %v1075, %v1063
    %v1556 = vpack.c.b16 %v1076, %v1064
    %v1557 = vpack.c.b16 %v1077, %v1065
    %v1558 = vpack.c.b16 %v1090, %v1078
    %v1559 = vpack.c.b16 %v1091, %v1079
    %v1560 = vpack.c.b16 %v1092, %v1080
    %v1561 = vpack.c.b16 %v1093, %v1081
    %v1562 = vpack.c.b16 %v1094, %v1082
    %v1563 = vpack.c.b16 %v1095, %v1083
    %v1564 = vpack.c.b16 %v1096, %v1084
    %v1565 = vpack.c.b16 %v1097, %v1085
    %v1566 = vpack.c.b16 %v1098, %v1086
    %v1567 = vpack.c.b16 %v1099, %v1087
    %v1568 = vpack.c.b16 %v1100, %v1088
    %v1569 = vpack.c.b16 %v1101, %v1089
    %v1570 = vpack.c.b16 %v1114, %v1102
    %v1571 = vpack.c.b16 %v1115, %v1103
    %v1572 = vpack.c.b16 %v1116, %v1104
    %v1573 = vpack.c.b16 %v1117, %v1105
    %v1574 = vpack.c.b16 %v1118, %v1106
    %v1575 = vpack.c.b16 %v1119, %v1107
    %v1576 = vpack.c.b16 %v1120, %v1108
    %v1577 = vpack.c.b16 %v1121, %v1109
    %v1578 = vpack.c.b16 %v1122, %v1110
    %v1579 = vpack.c.b16 %v1123, %v1111
    %v1580 = vpack.c.b16 %v1124, %v1112
    %v1581 = vpack.c.b16 %v1125, %v1113
    %v1582 = vpack.c.b16 %v1138, %v1126
    %v1583 = vpack.c.b16 %v1139, %v1127
    %v1584 = vpack.c.b16 %v1140, %v1128
    %v1585 = vpack.c.b16 %v1141, %v1129
    %v1586 = vpack.c.b16 %v1142, %v1130
    %v1587 = vpack.c.b16 %v1143, %v1131
    %v1588 = vpack.c.b16 %v1144, %v1132
    %v1589 = vpack.c.b16 %v1145, %v1133
    %v1590 = vpack.c.b16 %v1146, %v1134
    %v1591 = vpack.c.b16 %v1147, %v1135
    %v1592 = vpack.c.b16 %v1148, %v1136
    %v1593 = vpack.c.b16 %v1149, %v1137
    %v1594 = vpack.c.b16 %v1162, %v1150
    %v1595 = vpack.c.b16 %v1163, %v1151
    %v1596 = vpack.c.b16 %v1164, %v1152
    %v1597 = vpack.c.b16 %v1165, %v1153
    %v1598 = vpack.c.b16 %v1166, %v1154
    %v1599 = vpack.c.b16 %v1167, %v1155
    %v1600 = vpack.c.b16 %v1168, %v1156
    %v1601 = vpack.c.b16 %v1169, %v1157
    %v1602 = vpack.c.b16 %v1170, %v1158
    %v1603 = vpack.c.b16 %v1171, %v1159
    %v1604 = vpack.c.b16 %v1172, %v1160
    %v1605 = vpack.c.b16 %v1173, %v1161
    %v1606 = vpack.c.b16 %v1186, %v1174
    %v1607 = vpack.c.b16 %v1187, %v1175
    %v1608 = vpack.c.b16 %v1188, %v1176
    %v1609 = vpack.c.b16 %v1189, %v1177
    %v1610 = vpack.c.b16 %v1190, %v1178
    %v1611 = vpack.c.b16 %v1191, %v1179
    %v1612 = vpack.c.b16 %v1192, %v1180
    %v1613 = vpack.c.b16 %v1193, %v1181
    %v1614 = vpack.c.b16 %v1194, %v1182
    %v1615 = vpack.c.b16 %v1195, %v1183
    %v1616 = vpack.c.b16 %v1196, %v1184
    %v1617 = vpack.c.b16 %v1197, %v1185
    %v1618 = vpack.c.b16 %v1210, %v1198
    %v1619 = vpack.c.b16 %v1211, %v1199
    %v1620 = vpack.c.b16 %v1212, %v1200
    %v1621 = vpack.c.b16 %v1213, %v1201
    %v1622 = vpack.c.b16 %v1214, %v1202
    %v1623 = vpack.c.b16 %v1215, %v1203
    %v1624 = vpack.c.b16 %v1216, %v1204
    %v1625 = vpack.c.b16 %v1217, %v1205
    %v1626 = vpack.c.b16 %v1218, %v1206
    %v1627 = vpack.c.b16 %v1219, %v1207
    %v1628 = vpack.c.b16 %v1220, %v1208
    %v1629 = vpack.c.b16 %v1221, %v1209
    %v1630 = vpack.c.b16 %v1234, %v1222
    %v1631 = vpack.c.b16 %v1235, %v1223
    %v1632 = vpack.c.b16 %v1236, %v1224
    %v1633 = vpack.c.b16 %v1237, %v1225
    %v1634 = vpack.c.b16 %v1238, %v1226
    %v1635 = vpack.c.b16 %v1239, %v1227
    %v1636 = vpack.c.b16 %v1240, %v1228
    %v1637 = vpack.c.b16 %v1241, %v1229
    %v1638 = vpack.c.b16 %v1242, %v1230
    %v1639 = vpack.c.b16 %v1243, %v1231
    %v1640 = vpack.c.b16 %v1244, %v1232
    %v1641 = vpack.c.b16 %v1245, %v1233
    %v1642 = vpack.c.b16 %v1258, %v1246
    %v1643 = vpack.c.b16 %v1259, %v1247
    %v1644 = vpack.c.b16 %v1260, %v1248
    %v1645 = vpack.c.b16 %v1261, %v1249
    %v1646 = vpack.c.b16 %v1262, %v1250
    %v1647 = vpack.c.b16 %v1263, %v1251
    %v1648 = vpack.c.b16 %v1264, %v1252
    %v1649 = vpack.c.b16 %v1265, %v1253
    %v1650 = vpack.c.b16 %v1266, %v1254
    %v1651 = vpack.c.b16 %v1267, %v1255
    %v1652 = vpack.c.b16 %v1268, %v1256
    %v1653 = vpack.c.b16 %v1269, %v1257
    %v1654 = vpack.c.b16 %v1282, %v1270
    %v1655 = vpack.c.b16 %v1283, %v1271
    %v1656 = vpack.c.b16 %v1284, %v1272
    %v1657 = vpack.c.b16 %v1285, %v1273
    %v1658 = vpack.c.b16 %v1286, %v1274
    %v1659 = vpack.c.b16 %v1287, %v1275
    %v1660 = vpack.c.b16 %v1288, %v1276
    %v1661 = vpack.c.b16 %v1289, %v1277
    %v1662 = vpack.c.b16 %v1290, %v1278
    %v1663 = vpack.c.b16 %v1291, %v1279
    %v1664 = vpack.c.b16 %v1292, %v1280
    %v1665 = vpack.c.b16 %v1293, %v1281
    %v1666 = vpack.c.b16 %v1306, %v1294
    %v1667 = vpack.c.b16 %v1307, %v1295
    %v1668 = vpack.c.b16 %v1308, %v1296
    %v1669 = vpack.c.b16 %v1309, %v1297
    %v1670 = vpack.c.b16 %v1310, %v1298
    %v1671 = vpack.c.b16 %v1311, %v1299
    %v1672 = vpack.c.b16 %v1312, %v1300
    %v1673 = vpack.c.b16 %v1313, %v1301
    %v1674 = vpack.c.b16 %v1314, %v1302
    %v1675 = vpack.c.b16 %v1315, %v1303
    %v1676 = vpack.c.b16 %v1316, %v1304
    %v1677 = vpack.c.b16 %v1317, %v1305
    %v1678 = vpack.c.b16 %v1330, %v1318
    %v1679 = vpack.c.b16 %v1331, %v1319
    %v1680 = vpack.c.b16 %v1332, %v1320
    %v1681 = vpack.c.b16 %v1333, %v1321
    %v1682 = vpack.c.b16 %v1334, %v1322
    %v1683 = vpack.c.b16 %v1335, %v1323
    %v1684 = vpack.c.b16 %v1336, %v1324
    %v1685 = vpack.c.b16 %v1337, %v1325
    %v1686 = vpack.c.b16 %v1338, %v1326
    %v1687 = vpack.c.b16 %v1339, %v1327
    %v1688 = vpack.c.b16 %v1340, %v1328
    %v1689 = vpack.c.b16 %v1341, %v1329
    %v1690 = vpack.c.b16 %v1354, %v1342
    %v1691 = vpack.c.b16 %v1355, %v1343
    %v1692 = vpack.c.b16 %v1356, %v1344
    %v1693 = vpack.c.b16 %v1357, %v1345
    %v1694 = vpack.c.b16 %v1358, %v1346
    %v1695 = vpack.c.b16 %v1359, %v1347
    %v1696 = vpack.c.b16 %v1360, %v1348
    %v1697 = vpack.c.b16 %v1361, %v1349
    %v1698 = vpack.c.b16 %v1362, %v1350
    %v1699 = vpack.c.b16 %v1363, %v1351
    %v1700 = vpack.c.b16 %v1364, %v1352
    %v1701 = vpack.c.b16 %v1365, %v1353
    %v1702 = vpack.c.b16 %v1378, %v1366
    %v1703 = vpack.c.b16 %v1379, %v1367
    %v1704 = vpack.c.b16 %v1380, %v1368
    %v1705 = vpack.c.b16 %v1381, %v1369
    %v1706 = vpack.c.b16 %v1382, %v1370
    %v1707 = vpack.c.b16 %v1383, %v1371
    %v1708 = vpack.c.b16 %v1384, %v1372
    %v1709 = vpack.c.b16 %v1385, %v1373
    %v1710 = vpack.c.b16 %v1386, %v1374
    %v1711 = vpack.c.b16 %v1387, %v1375
    %v1712 = vpack.c.b16 %v1388, %v1376
    %v1713 = vpack.c.b16 %v1389, %v1377
    %v1714 = vpack.c.b16 %v1402, %v1390
    %v1715 = vpack.c.b16 %v1403, %v1391
    %v1716 = vpack.c.b16 %v1404, %v1392
    %v1717 = vpack.c.b16 %v1405, %v1393
    %v1718 = vpack.c.b16 %v1406, %v1394
    %v1719 = vpack.c.b16 %v1407, %v1395
    %v1720 = vpack.c.b16 %v1408, %v1396
    %v1721 = vpack.c.b16 %v1409, %v1397
    %v1722 = vpack.c.b16 %v1410, %v1398
    %v1723 = vpack.c.b16 %v1411, %v1399
    %v1724 = vpack.c.b16 %v1412, %v1400
    %v1725 = vpack.c.b16 %v1413, %v1401
    %v1726 = vpack.c.b16 %v1426, %v1414
    %v1727 = vpack.c.b16 %v1427, %v1415
    %v1728 = vpack.c.b16 %v1428, %v1416
    %v1729 = vpack.c.b16 %v1429, %v1417
    %v1730 = vpack.c.b16 %v1430, %v1418
    %v1731 = vpack.c.b16 %v1431, %v1419
    %v1732 = vpack.c.b16 %v1432, %v1420
    %v1733 = vpack.c.b16 %v1433, %v1421
    %v1734 = vpack.c.b16 %v1434, %v1422
    %v1735 = vpack.c.b16 %v1435, %v1423
    %v1736 = vpack.c.b16 %v1436, %v1424
    %v1737 = vpack.c.b16 %v1437, %v1425
    %v1738 = vpack.c.b16 %v1450, %v1438
    %v1739 = vpack.c.b16 %v1451, %v1439
    %v1740 = vpack.c.b16 %v1452, %v1440
    %v1741 = vpack.c.b16 %v1453, %v1441
    %v1742 = vpack.c.b16 %v1454, %v1442
    %v1743 = vpack.c.b16 %v1455, %v1443
    %v1744 = vpack.c.b16 %v1456, %v1444
    %v1745 = vpack.c.b16 %v1457, %v1445
    %v1746 = vpack.c.b16 %v1458, %v1446
    %v1747 = vpack.c.b16 %v1459, %v1447
    %v1748 = vpack.c.b16 %v1460, %v1448
    %v1749 = vpack.c.b16 %v1461, %v1449
    %2038 = vmatprep.subr.bf16.mxu0 %v1547
    %2039 = vmatpush1.bf16.msra.mxu0 %v1546
    %2040 = vmatprep.subr.bf16.mxu0 %v1535
    %2041 = vmatpush1.bf16.msra.mxu0 %v1534
    %2042 = vmatprep.subr.bf16.mxu0 %v1523
    %2043 = vmatpush1.bf16.msra.mxu0 %v1522
    %2044 = vmatprep.subr.bf16.mxu0 %v1511
    %2045 = vmatpush1.bf16.msra.mxu0 %v1510
    %2046 = vmatprep.subr.bf16.mxu0 %v1499
    %2047 = vmatpush1.bf16.msra.mxu0 %v1498
    %2048 = vmatprep.subr.bf16.mxu0 %v1487
    %2049 = vmatpush1.bf16.msra.mxu0 %v1486
    %2050 = vmatprep.subr.bf16.mxu0 %v1475
    %2051 = vmatpush1.bf16.msra.mxu0 %v1474
    %2052 = vmatprep.subr.bf16.mxu0 %v1463
    %2053 = vmatpush1.bf16.msra.mxu0 %v1462
    %2054 = vmatprep.subr.bf16.mxu0 %v1643
    %2055 = vmatpush2.bf16.msra.mxu0 %v1642
    %2056 = vmatprep.subr.bf16.mxu0 %v1631
    %2057 = vmatpush2.bf16.msra.mxu0 %v1630
    %2058 = vmatprep.subr.bf16.mxu0 %v1619
    %2059 = vmatpush2.bf16.msra.mxu0 %v1618
    %2060 = vmatprep.subr.bf16.mxu0 %v1607
    %2061 = vmatpush2.bf16.msra.mxu0 %v1606
    %2062 = vmatprep.subr.bf16.mxu0 %v1595
    %2063 = vmatpush2.bf16.msra.mxu0 %v1594
    %2064 = vmatprep.subr.bf16.mxu0 %v1583
    %2065 = vmatpush2.bf16.msra.mxu0 %v1582
    %2066 = vmatprep.subr.bf16.mxu0 %v1571
    %2067 = vmatpush2.bf16.msra.mxu0 %v1570
    %2068 = vmatprep.subr.bf16.mxu0 %v1559
    %2069 = vmatpush2.bf16.msra.mxu0 %v1558
    %2070 = vmatprep.mubr.bf16.mxu0 %v551
    %2071 = vmatmul.mubr.bf16.gmra.mxu0 %v550
    %v2072 = vpop.f32.mrf.mxu0
    %v2073 = vadd.f32 %v413, %v2072
    %v2074 = vpop.f32.mrf.mxu0
    %v2075 = vadd.f32 %v417, %v2074
    %v2076 = vpop.f32.mrf.mxu0
    %v2077 = vadd.f32 %v413, %v2076
    %v2078 = vpop.f32.mrf.mxu0
    %v2079 = vadd.f32 %v417, %v2078
    %2080 = vmatprep.mubr.bf16.mxu0 %v554
    %2081 = vmatmul.mubr.bf16.gmra.mxu0 %v553
    %v2082 = vpop.f32.mrf.mxu0
    %v2083 = vadd.f32 %v413, %v2082
    %v2084 = vpop.f32.mrf.mxu0
    %v2085 = vadd.f32 %v417, %v2084
    %v2086 = vpop.f32.mrf.mxu0
    %v2087 = vadd.f32 %v413, %v2086
    %v2088 = vpop.f32.mrf.mxu0
    %v2089 = vadd.f32 %v417, %v2088
    %2090 = vmatprep.mubr.bf16.mxu0 %v557
    %2091 = vmatmul.mubr.bf16.gmra.mxu0 %v556
    %v2092 = vpop.f32.mrf.mxu0
    %v2093 = vadd.f32 %v413, %v2092
    %v2094 = vpop.f32.mrf.mxu0
    %v2095 = vadd.f32 %v417, %v2094
    %v2096 = vpop.f32.mrf.mxu0
    %v2097 = vadd.f32 %v413, %v2096
    %v2098 = vpop.f32.mrf.mxu0
    %v2099 = vadd.f32 %v417, %v2098
    %2100 = vmatprep.mubr.bf16.mxu0 %v560
    %2101 = vmatmul.mubr.bf16.gmra.mxu0 %v559
    %v2102 = vpop.f32.mrf.mxu0
    %v2103 = vadd.f32 %v413, %v2102
    %v2104 = vpop.f32.mrf.mxu0
    %v2105 = vadd.f32 %v417, %v2104
    %v2106 = vpop.f32.mrf.mxu0
    %v2107 = vadd.f32 %v413, %v2106
    %v2108 = vpop.f32.mrf.mxu0
    %v2109 = vadd.f32 %v417, %v2108
    %2110 = vmatprep.mubr.bf16.mxu0 %v563
    %2111 = vmatmul.mubr.bf16.gmra.mxu0 %v562
    %v2112 = vpop.f32.mrf.mxu0
    %v2113 = vadd.f32 %v413, %v2112
    %v2114 = vpop.f32.mrf.mxu0
    %v2115 = vadd.f32 %v417, %v2114
    %v2116 = vpop.f32.mrf.mxu0
    %v2117 = vadd.f32 %v413, %v2116
    %v2118 = vpop.f32.mrf.mxu0
    %v2119 = vadd.f32 %v417, %v2118
    %2120 = vmatprep.mubr.bf16.mxu0 %v566
    %2121 = vmatmul.mubr.bf16.gmra.mxu0 %v565
    %v2122 = vpop.f32.mrf.mxu0
    %v2123 = vadd.f32 %v413, %v2122
    %v2124 = vpop.f32.mrf.mxu0
    %v2125 = vadd.f32 %v417, %v2124
    %v2126 = vpop.f32.mrf.mxu0
    %v2127 = vadd.f32 %v413, %v2126
    %v2128 = vpop.f32.mrf.mxu0
    %v2129 = vadd.f32 %v417, %v2128
    %2130 = vmatprep.mubr.bf16.mxu0 %v569
    %2131 = vmatmul.mubr.bf16.gmra.mxu0 %v568
    %v2132 = vpop.f32.mrf.mxu0
    %v2133 = vadd.f32 %v413, %v2132
    %v2134 = vpop.f32.mrf.mxu0
    %v2135 = vadd.f32 %v417, %v2134
    %v2136 = vpop.f32.mrf.mxu0
    %v2137 = vadd.f32 %v413, %v2136
    %v2138 = vpop.f32.mrf.mxu0
    %v2139 = vadd.f32 %v417, %v2138
    %2140 = vmatprep.mubr.bf16.mxu0 %v572
    %2141 = vmatmul.mubr.bf16.gmra.mxu0 %v571
    %v2142 = vpop.f32.mrf.mxu0
    %v2143 = vadd.f32 %v413, %v2142
    %v2144 = vpop.f32.mrf.mxu0
    %v2145 = vadd.f32 %v417, %v2144
    %v2146 = vpop.f32.mrf.mxu0
    %v2147 = vadd.f32 %v413, %v2146
    %v2148 = vpop.f32.mrf.mxu0
    %v2149 = vadd.f32 %v417, %v2148
    %2150 = vdwg.mxu0
    %2151 = vmatprep.subr.bf16.mxu0 %v1739
    %2152 = vmatpush1.bf16.msra.mxu0 %v1738
    %2153 = vmatprep.subr.bf16.mxu0 %v1727
    %2154 = vmatpush1.bf16.msra.mxu0 %v1726
    %2155 = vmatprep.subr.bf16.mxu0 %v1715
    %2156 = vmatpush1.bf16.msra.mxu0 %v1714
    %2157 = vmatprep.subr.bf16.mxu0 %v1703
    %2158 = vmatpush1.bf16.msra.mxu0 %v1702
    %2159 = vmatprep.subr.bf16.mxu0 %v1691
    %2160 = vmatpush1.bf16.msra.mxu0 %v1690
    %2161 = vmatprep.subr.bf16.mxu0 %v1679
    %2162 = vmatpush1.bf16.msra.mxu0 %v1678
    %2163 = vmatprep.subr.bf16.mxu0 %v1667
    %2164 = vmatpush1.bf16.msra.mxu0 %v1666
    %2165 = vmatprep.subr.bf16.mxu0 %v1655
    %2166 = vmatpush1.bf16.msra.mxu0 %v1654
    %2167 = vmatprep.subr.bf16.mxu0 0
    %2168 = vmatpush2.bf16.msra.mxu0 0
    %2169 = vmatprep.subr.bf16.mxu0 0
    %2170 = vmatpush2.bf16.msra.mxu0 0
    %2171 = vmatprep.subr.bf16.mxu0 0
    %2172 = vmatpush2.bf16.msra.mxu0 0
    %2173 = vmatprep.subr.bf16.mxu0 0
    %2174 = vmatpush2.bf16.msra.mxu0 0
    %2175 = vmatprep.subr.bf16.mxu0 0
    %2176 = vmatpush2.bf16.msra.mxu0 0
    %2177 = vmatprep.subr.bf16.mxu0 0
    %2178 = vmatpush2.bf16.msra.mxu0 0
    %2179 = vmatprep.subr.bf16.mxu0 0
    %2180 = vmatpush2.bf16.msra.mxu0 0
    %2181 = vmatprep.subr.bf16.mxu0 0
    %2182 = vmatpush2.bf16.msra.mxu0 0
    %2183 = vmatprep.mubr.bf16.mxu0 0
    %2184 = vmatmul.mubr.bf16.gmra.mxu0 %v552
    %v2185 = vpop.f32.mrf.mxu0
    %v2186 = vadd.f32 %v2073, %v2185
    %v2187 = vpop.f32.mrf.mxu0
    %v2188 = vadd.f32 %v2075, %v2187
    %v2189 = vpop.f32.mrf.mxu0
    %v2190 = vadd.f32 %v2077, %v2189
    %v2191 = vpop.f32.mrf.mxu0
    %v2192 = vadd.f32 %v2079, %v2191
    %2193 = vmatprep.mubr.bf16.mxu0 0
    %2194 = vmatmul.mubr.bf16.gmra.mxu0 %v555
    %v2195 = vpop.f32.mrf.mxu0
    %v2196 = vadd.f32 %v2083, %v2195
    %v2197 = vpop.f32.mrf.mxu0
    %v2198 = vadd.f32 %v2085, %v2197
    %v2199 = vpop.f32.mrf.mxu0
    %v2200 = vadd.f32 %v2087, %v2199
    %v2201 = vpop.f32.mrf.mxu0
    %v2202 = vadd.f32 %v2089, %v2201
    %2203 = vmatprep.mubr.bf16.mxu0 0
    %2204 = vmatmul.mubr.bf16.gmra.mxu0 %v558
    %v2205 = vpop.f32.mrf.mxu0
    %v2206 = vadd.f32 %v2093, %v2205
    %v2207 = vpop.f32.mrf.mxu0
    %v2208 = vadd.f32 %v2095, %v2207
    %v2209 = vpop.f32.mrf.mxu0
    %v2210 = vadd.f32 %v2097, %v2209
    %v2211 = vpop.f32.mrf.mxu0
    %v2212 = vadd.f32 %v2099, %v2211
    %2213 = vmatprep.mubr.bf16.mxu0 0
    %2214 = vmatmul.mubr.bf16.gmra.mxu0 %v561
    %v2215 = vpop.f32.mrf.mxu0
    %v2216 = vadd.f32 %v2103, %v2215
    %v2217 = vpop.f32.mrf.mxu0
    %v2218 = vadd.f32 %v2105, %v2217
    %v2219 = vpop.f32.mrf.mxu0
    %v2220 = vadd.f32 %v2107, %v2219
    %v2221 = vpop.f32.mrf.mxu0
    %v2222 = vadd.f32 %v2109, %v2221
    %2223 = vmatprep.mubr.bf16.mxu0 0
    %2224 = vmatmul.mubr.bf16.gmra.mxu0 %v564
    %v2225 = vpop.f32.mrf.mxu0
    %v2226 = vadd.f32 %v2113, %v2225
    %v2227 = vpop.f32.mrf.mxu0
    %v2228 = vadd.f32 %v2115, %v2227
    %v2229 = vpop.f32.mrf.mxu0
    %v2230 = vadd.f32 %v2117, %v2229
    %v2231 = vpop.f32.mrf.mxu0
    %v2232 = vadd.f32 %v2119, %v2231
    %2233 = vmatprep.mubr.bf16.mxu0 0
    %2234 = vmatmul.mubr.bf16.gmra.mxu0 %v567
    %v2235 = vpop.f32.mrf.mxu0
    %v2236 = vadd.f32 %v2123, %v2235
    %v2237 = vpop.f32.mrf.mxu0
    %v2238 = vadd.f32 %v2125, %v2237
    %v2239 = vpop.f32.mrf.mxu0
    %v2240 = vadd.f32 %v2127, %v2239
    %v2241 = vpop.f32.mrf.mxu0
    %v2242 = vadd.f32 %v2129, %v2241
    %2243 = vmatprep.mubr.bf16.mxu0 0
    %2244 = vmatmul.mubr.bf16.gmra.mxu0 %v570
    %v2245 = vpop.f32.mrf.mxu0
    %v2246 = vadd.f32 %v2133, %v2245
    %v2247 = vpop.f32.mrf.mxu0
    %v2248 = vadd.f32 %v2135, %v2247
    %v2249 = vpop.f32.mrf.mxu0
    %v2250 = vadd.f32 %v2137, %v2249
    %v2251 = vpop.f32.mrf.mxu0
    %v2252 = vadd.f32 %v2139, %v2251
    %2253 = vmatprep.mubr.bf16.mxu0 0
    %2254 = vmatmul.mubr.bf16.gmra.mxu0 %v573
    %v2255 = vpop.f32.mrf.mxu0
    %v2256 = vadd.f32 %v2143, %v2255
    %v2257 = vpop.f32.mrf.mxu0
    %v2258 = vadd.f32 %v2145, %v2257
    %v2259 = vpop.f32.mrf.mxu0
    %v2260 = vadd.f32 %v2147, %v2259
    %v2261 = vpop.f32.mrf.mxu0
    %v2262 = vadd.f32 %v2149, %v2261
    %2263 = vdwg.mxu0
    %2264 = vmatprep.subr.bf16.mxu0 %v1549
    %2265 = vmatpush1.bf16.msra.mxu0 %v1548
    %2266 = vmatprep.subr.bf16.mxu0 %v1537
    %2267 = vmatpush1.bf16.msra.mxu0 %v1536
    %2268 = vmatprep.subr.bf16.mxu0 %v1525
    %2269 = vmatpush1.bf16.msra.mxu0 %v1524
    %2270 = vmatprep.subr.bf16.mxu0 %v1513
    %2271 = vmatpush1.bf16.msra.mxu0 %v1512
    %2272 = vmatprep.subr.bf16.mxu0 %v1501
    %2273 = vmatpush1.bf16.msra.mxu0 %v1500
    %2274 = vmatprep.subr.bf16.mxu0 %v1489
    %2275 = vmatpush1.bf16.msra.mxu0 %v1488
    %2276 = vmatprep.subr.bf16.mxu0 %v1477
    %2277 = vmatpush1.bf16.msra.mxu0 %v1476
    %2278 = vmatprep.subr.bf16.mxu0 %v1465
    %2279 = vmatpush1.bf16.msra.mxu0 %v1464
    %2280 = vmatprep.subr.bf16.mxu0 %v1645
    %2281 = vmatpush2.bf16.msra.mxu0 %v1644
    %2282 = vmatprep.subr.bf16.mxu0 %v1633
    %2283 = vmatpush2.bf16.msra.mxu0 %v1632
    %2284 = vmatprep.subr.bf16.mxu0 %v1621
    %2285 = vmatpush2.bf16.msra.mxu0 %v1620
    %2286 = vmatprep.subr.bf16.mxu0 %v1609
    %2287 = vmatpush2.bf16.msra.mxu0 %v1608
    %2288 = vmatprep.subr.bf16.mxu0 %v1597
    %2289 = vmatpush2.bf16.msra.mxu0 %v1596
    %2290 = vmatprep.subr.bf16.mxu0 %v1585
    %2291 = vmatpush2.bf16.msra.mxu0 %v1584
    %2292 = vmatprep.subr.bf16.mxu0 %v1573
    %2293 = vmatpush2.bf16.msra.mxu0 %v1572
    %2294 = vmatprep.subr.bf16.mxu0 %v1561
    %2295 = vmatpush2.bf16.msra.mxu0 %v1560
    %2296 = vmatprep.mubr.bf16.mxu0 %v551
    %2297 = vmatmul.mubr.bf16.gmra.mxu0 %v550
    %v2298 = vpop.f32.mrf.mxu0
    %v2299 = vadd.f32 %v421, %v2298
    %v2300 = vpop.f32.mrf.mxu0
    %v2301 = vadd.f32 %v425, %v2300
    %v2302 = vpop.f32.mrf.mxu0
    %v2303 = vadd.f32 %v421, %v2302
    %v2304 = vpop.f32.mrf.mxu0
    %v2305 = vadd.f32 %v425, %v2304
    %2306 = vmatprep.mubr.bf16.mxu0 %v554
    %2307 = vmatmul.mubr.bf16.gmra.mxu0 %v553
    %v2308 = vpop.f32.mrf.mxu0
    %v2309 = vadd.f32 %v421, %v2308
    %v2310 = vpop.f32.mrf.mxu0
    %v2311 = vadd.f32 %v425, %v2310
    %v2312 = vpop.f32.mrf.mxu0
    %v2313 = vadd.f32 %v421, %v2312
    %v2314 = vpop.f32.mrf.mxu0
    %v2315 = vadd.f32 %v425, %v2314
    %2316 = vmatprep.mubr.bf16.mxu0 %v557
    %2317 = vmatmul.mubr.bf16.gmra.mxu0 %v556
    %v2318 = vpop.f32.mrf.mxu0
    %v2319 = vadd.f32 %v421, %v2318
    %v2320 = vpop.f32.mrf.mxu0
    %v2321 = vadd.f32 %v425, %v2320
    %v2322 = vpop.f32.mrf.mxu0
    %v2323 = vadd.f32 %v421, %v2322
    %v2324 = vpop.f32.mrf.mxu0
    %v2325 = vadd.f32 %v425, %v2324
    %2326 = vmatprep.mubr.bf16.mxu0 %v560
    %2327 = vmatmul.mubr.bf16.gmra.mxu0 %v559
    %v2328 = vpop.f32.mrf.mxu0
    %v2329 = vadd.f32 %v421, %v2328
    %v2330 = vpop.f32.mrf.mxu0
    %v2331 = vadd.f32 %v425, %v2330
    %v2332 = vpop.f32.mrf.mxu0
    %v2333 = vadd.f32 %v421, %v2332
    %v2334 = vpop.f32.mrf.mxu0
    %v2335 = vadd.f32 %v425, %v2334
    %2336 = vmatprep.mubr.bf16.mxu0 %v563
    %2337 = vmatmul.mubr.bf16.gmra.mxu0 %v562
    %v2338 = vpop.f32.mrf.mxu0
    %v2339 = vadd.f32 %v421, %v2338
    %v2340 = vpop.f32.mrf.mxu0
    %v2341 = vadd.f32 %v425, %v2340
    %v2342 = vpop.f32.mrf.mxu0
    %v2343 = vadd.f32 %v421, %v2342
    %v2344 = vpop.f32.mrf.mxu0
    %v2345 = vadd.f32 %v425, %v2344
    %2346 = vmatprep.mubr.bf16.mxu0 %v566
    %2347 = vmatmul.mubr.bf16.gmra.mxu0 %v565
    %v2348 = vpop.f32.mrf.mxu0
    %v2349 = vadd.f32 %v421, %v2348
    %v2350 = vpop.f32.mrf.mxu0
    %v2351 = vadd.f32 %v425, %v2350
    %v2352 = vpop.f32.mrf.mxu0
    %v2353 = vadd.f32 %v421, %v2352
    %v2354 = vpop.f32.mrf.mxu0
    %v2355 = vadd.f32 %v425, %v2354
    %2356 = vmatprep.mubr.bf16.mxu0 %v569
    %2357 = vmatmul.mubr.bf16.gmra.mxu0 %v568
    %v2358 = vpop.f32.mrf.mxu0
    %v2359 = vadd.f32 %v421, %v2358
    %v2360 = vpop.f32.mrf.mxu0
    %v2361 = vadd.f32 %v425, %v2360
    %v2362 = vpop.f32.mrf.mxu0
    %v2363 = vadd.f32 %v421, %v2362
    %v2364 = vpop.f32.mrf.mxu0
    %v2365 = vadd.f32 %v425, %v2364
    %2366 = vmatprep.mubr.bf16.mxu0 %v572
    %2367 = vmatmul.mubr.bf16.gmra.mxu0 %v571
    %v2368 = vpop.f32.mrf.mxu0
    %v2369 = vadd.f32 %v421, %v2368
    %v2370 = vpop.f32.mrf.mxu0
    %v2371 = vadd.f32 %v425, %v2370
    %v2372 = vpop.f32.mrf.mxu0
    %v2373 = vadd.f32 %v421, %v2372
    %v2374 = vpop.f32.mrf.mxu0
    %v2375 = vadd.f32 %v425, %v2374
    %2376 = vdwg.mxu0
    %2377 = vmatprep.subr.bf16.mxu0 %v1741
    %2378 = vmatpush1.bf16.msra.mxu0 %v1740
    %2379 = vmatprep.subr.bf16.mxu0 %v1729
    %2380 = vmatpush1.bf16.msra.mxu0 %v1728
    %2381 = vmatprep.subr.bf16.mxu0 %v1717
    %2382 = vmatpush1.bf16.msra.mxu0 %v1716
    %2383 = vmatprep.subr.bf16.mxu0 %v1705
    %2384 = vmatpush1.bf16.msra.mxu0 %v1704
    %2385 = vmatprep.subr.bf16.mxu0 %v1693
    %2386 = vmatpush1.bf16.msra.mxu0 %v1692
    %2387 = vmatprep.subr.bf16.mxu0 %v1681
    %2388 = vmatpush1.bf16.msra.mxu0 %v1680
    %2389 = vmatprep.subr.bf16.mxu0 %v1669
    %2390 = vmatpush1.bf16.msra.mxu0 %v1668
    %2391 = vmatprep.subr.bf16.mxu0 %v1657
    %2392 = vmatpush1.bf16.msra.mxu0 %v1656
    %2393 = vmatprep.subr.bf16.mxu0 0
    %2394 = vmatpush2.bf16.msra.mxu0 0
    %2395 = vmatprep.subr.bf16.mxu0 0
    %2396 = vmatpush2.bf16.msra.mxu0 0
    %2397 = vmatprep.subr.bf16.mxu0 0
    %2398 = vmatpush2.bf16.msra.mxu0 0
    %2399 = vmatprep.subr.bf16.mxu0 0
    %2400 = vmatpush2.bf16.msra.mxu0 0
    %2401 = vmatprep.subr.bf16.mxu0 0
    %2402 = vmatpush2.bf16.msra.mxu0 0
    %2403 = vmatprep.subr.bf16.mxu0 0
    %2404 = vmatpush2.bf16.msra.mxu0 0
    %2405 = vmatprep.subr.bf16.mxu0 0
    %2406 = vmatpush2.bf16.msra.mxu0 0
    %2407 = vmatprep.subr.bf16.mxu0 0
    %2408 = vmatpush2.bf16.msra.mxu0 0
    %2409 = vmatprep.mubr.bf16.mxu0 0
    %2410 = vmatmul.mubr.bf16.gmra.mxu0 %v552
    %v2411 = vpop.f32.mrf.mxu0
    %v2412 = vadd.f32 %v2299, %v2411
    %v2413 = vpop.f32.mrf.mxu0
    %v2414 = vadd.f32 %v2301, %v2413
    %v2415 = vpop.f32.mrf.mxu0
    %v2416 = vadd.f32 %v2303, %v2415
    %v2417 = vpop.f32.mrf.mxu0
    %v2418 = vadd.f32 %v2305, %v2417
    %2419 = vmatprep.mubr.bf16.mxu0 0
    %2420 = vmatmul.mubr.bf16.gmra.mxu0 %v555
    %v2421 = vpop.f32.mrf.mxu0
    %v2422 = vadd.f32 %v2309, %v2421
    %v2423 = vpop.f32.mrf.mxu0
    %v2424 = vadd.f32 %v2311, %v2423
    %v2425 = vpop.f32.mrf.mxu0
    %v2426 = vadd.f32 %v2313, %v2425
    %v2427 = vpop.f32.mrf.mxu0
    %v2428 = vadd.f32 %v2315, %v2427
    %2429 = vmatprep.mubr.bf16.mxu0 0
    %2430 = vmatmul.mubr.bf16.gmra.mxu0 %v558
    %v2431 = vpop.f32.mrf.mxu0
    %v2432 = vadd.f32 %v2319, %v2431
    %v2433 = vpop.f32.mrf.mxu0
    %v2434 = vadd.f32 %v2321, %v2433
    %v2435 = vpop.f32.mrf.mxu0
    %v2436 = vadd.f32 %v2323, %v2435
    %v2437 = vpop.f32.mrf.mxu0
    %v2438 = vadd.f32 %v2325, %v2437
    %2439 = vmatprep.mubr.bf16.mxu0 0
    %2440 = vmatmul.mubr.bf16.gmra.mxu0 %v561
    %v2441 = vpop.f32.mrf.mxu0
    %v2442 = vadd.f32 %v2329, %v2441
    %v2443 = vpop.f32.mrf.mxu0
    %v2444 = vadd.f32 %v2331, %v2443
    %v2445 = vpop.f32.mrf.mxu0
    %v2446 = vadd.f32 %v2333, %v2445
    %v2447 = vpop.f32.mrf.mxu0
    %v2448 = vadd.f32 %v2335, %v2447
    %2449 = vmatprep.mubr.bf16.mxu0 0
    %2450 = vmatmul.mubr.bf16.gmra.mxu0 %v564
    %v2451 = vpop.f32.mrf.mxu0
    %v2452 = vadd.f32 %v2339, %v2451
    %v2453 = vpop.f32.mrf.mxu0
    %v2454 = vadd.f32 %v2341, %v2453
    %v2455 = vpop.f32.mrf.mxu0
    %v2456 = vadd.f32 %v2343, %v2455
    %v2457 = vpop.f32.mrf.mxu0
    %v2458 = vadd.f32 %v2345, %v2457
    %2459 = vmatprep.mubr.bf16.mxu0 0
    %2460 = vmatmul.mubr.bf16.gmra.mxu0 %v567
    %v2461 = vpop.f32.mrf.mxu0
    %v2462 = vadd.f32 %v2349, %v2461
    %v2463 = vpop.f32.mrf.mxu0
    %v2464 = vadd.f32 %v2351, %v2463
    %v2465 = vpop.f32.mrf.mxu0
    %v2466 = vadd.f32 %v2353, %v2465
    %v2467 = vpop.f32.mrf.mxu0
    %v2468 = vadd.f32 %v2355, %v2467
    %2469 = vmatprep.mubr.bf16.mxu0 0
    %2470 = vmatmul.mubr.bf16.gmra.mxu0 %v570
    %v2471 = vpop.f32.mrf.mxu0
    %v2472 = vadd.f32 %v2359, %v2471
    %v2473 = vpop.f32.mrf.mxu0
    %v2474 = vadd.f32 %v2361, %v2473
    %v2475 = vpop.f32.mrf.mxu0
    %v2476 = vadd.f32 %v2363, %v2475
    %v2477 = vpop.f32.mrf.mxu0
    %v2478 = vadd.f32 %v2365, %v2477
    %2479 = vmatprep.mubr.bf16.mxu0 0
    %2480 = vmatmul.mubr.bf16.gmra.mxu0 %v573
    %v2481 = vpop.f32.mrf.mxu0
    %v2482 = vadd.f32 %v2369, %v2481
    %v2483 = vpop.f32.mrf.mxu0
    %v2484 = vadd.f32 %v2371, %v2483
    %v2485 = vpop.f32.mrf.mxu0
    %v2486 = vadd.f32 %v2373, %v2485
    %v2487 = vpop.f32.mrf.mxu0
    %v2488 = vadd.f32 %v2375, %v2487
    %2489 = vdwg.mxu0
    %2490 = vmatprep.subr.bf16.mxu0 %v1551
    %2491 = vmatpush1.bf16.msra.mxu0 %v1550
    %2492 = vmatprep.subr.bf16.mxu0 %v1539
    %2493 = vmatpush1.bf16.msra.mxu0 %v1538
    %2494 = vmatprep.subr.bf16.mxu0 %v1527
    %2495 = vmatpush1.bf16.msra.mxu0 %v1526
    %2496 = vmatprep.subr.bf16.mxu0 %v1515
    %2497 = vmatpush1.bf16.msra.mxu0 %v1514
    %2498 = vmatprep.subr.bf16.mxu0 %v1503
    %2499 = vmatpush1.bf16.msra.mxu0 %v1502
    %2500 = vmatprep.subr.bf16.mxu0 %v1491
    %2501 = vmatpush1.bf16.msra.mxu0 %v1490
    %2502 = vmatprep.subr.bf16.mxu0 %v1479
    %2503 = vmatpush1.bf16.msra.mxu0 %v1478
    %2504 = vmatprep.subr.bf16.mxu0 %v1467
    %2505 = vmatpush1.bf16.msra.mxu0 %v1466
    %2506 = vmatprep.subr.bf16.mxu0 %v1647
    %2507 = vmatpush2.bf16.msra.mxu0 %v1646
    %2508 = vmatprep.subr.bf16.mxu0 %v1635
    %2509 = vmatpush2.bf16.msra.mxu0 %v1634
    %2510 = vmatprep.subr.bf16.mxu0 %v1623
    %2511 = vmatpush2.bf16.msra.mxu0 %v1622
    %2512 = vmatprep.subr.bf16.mxu0 %v1611
    %2513 = vmatpush2.bf16.msra.mxu0 %v1610
    %2514 = vmatprep.subr.bf16.mxu0 %v1599
    %2515 = vmatpush2.bf16.msra.mxu0 %v1598
    %2516 = vmatprep.subr.bf16.mxu0 %v1587
    %2517 = vmatpush2.bf16.msra.mxu0 %v1586
    %2518 = vmatprep.subr.bf16.mxu0 %v1575
    %2519 = vmatpush2.bf16.msra.mxu0 %v1574
    %2520 = vmatprep.subr.bf16.mxu0 %v1563
    %2521 = vmatpush2.bf16.msra.mxu0 %v1562
    %2522 = vmatprep.mubr.bf16.mxu0 %v551
    %2523 = vmatmul.mubr.bf16.gmra.mxu0 %v550
    %v2524 = vpop.f32.mrf.mxu0
    %v2525 = vadd.f32 %v429, %v2524
    %v2526 = vpop.f32.mrf.mxu0
    %v2527 = vadd.f32 %v433, %v2526
    %v2528 = vpop.f32.mrf.mxu0
    %v2529 = vadd.f32 %v429, %v2528
    %v2530 = vpop.f32.mrf.mxu0
    %v2531 = vadd.f32 %v433, %v2530
    %2532 = vmatprep.mubr.bf16.mxu0 %v554
    %2533 = vmatmul.mubr.bf16.gmra.mxu0 %v553
    %v2534 = vpop.f32.mrf.mxu0
    %v2535 = vadd.f32 %v429, %v2534
    %v2536 = vpop.f32.mrf.mxu0
    %v2537 = vadd.f32 %v433, %v2536
    %v2538 = vpop.f32.mrf.mxu0
    %v2539 = vadd.f32 %v429, %v2538
    %v2540 = vpop.f32.mrf.mxu0
    %v2541 = vadd.f32 %v433, %v2540
    %2542 = vmatprep.mubr.bf16.mxu0 %v557
    %2543 = vmatmul.mubr.bf16.gmra.mxu0 %v556
    %v2544 = vpop.f32.mrf.mxu0
    %v2545 = vadd.f32 %v429, %v2544
    %v2546 = vpop.f32.mrf.mxu0
    %v2547 = vadd.f32 %v433, %v2546
    %v2548 = vpop.f32.mrf.mxu0
    %v2549 = vadd.f32 %v429, %v2548
    %v2550 = vpop.f32.mrf.mxu0
    %v2551 = vadd.f32 %v433, %v2550
    %2552 = vmatprep.mubr.bf16.mxu0 %v560
    %2553 = vmatmul.mubr.bf16.gmra.mxu0 %v559
    %v2554 = vpop.f32.mrf.mxu0
    %v2555 = vadd.f32 %v429, %v2554
    %v2556 = vpop.f32.mrf.mxu0
    %v2557 = vadd.f32 %v433, %v2556
    %v2558 = vpop.f32.mrf.mxu0
    %v2559 = vadd.f32 %v429, %v2558
    %v2560 = vpop.f32.mrf.mxu0
    %v2561 = vadd.f32 %v433, %v2560
    %2562 = vmatprep.mubr.bf16.mxu0 %v563
    %2563 = vmatmul.mubr.bf16.gmra.mxu0 %v562
    %v2564 = vpop.f32.mrf.mxu0
    %v2565 = vadd.f32 %v429, %v2564
    %v2566 = vpop.f32.mrf.mxu0
    %v2567 = vadd.f32 %v433, %v2566
    %v2568 = vpop.f32.mrf.mxu0
    %v2569 = vadd.f32 %v429, %v2568
    %v2570 = vpop.f32.mrf.mxu0
    %v2571 = vadd.f32 %v433, %v2570
    %2572 = vmatprep.mubr.bf16.mxu0 %v566
    %2573 = vmatmul.mubr.bf16.gmra.mxu0 %v565
    %v2574 = vpop.f32.mrf.mxu0
    %v2575 = vadd.f32 %v429, %v2574
    %v2576 = vpop.f32.mrf.mxu0
    %v2577 = vadd.f32 %v433, %v2576
    %v2578 = vpop.f32.mrf.mxu0
    %v2579 = vadd.f32 %v429, %v2578
    %v2580 = vpop.f32.mrf.mxu0
    %v2581 = vadd.f32 %v433, %v2580
    %2582 = vmatprep.mubr.bf16.mxu0 %v569
    %2583 = vmatmul.mubr.bf16.gmra.mxu0 %v568
    %v2584 = vpop.f32.mrf.mxu0
    %v2585 = vadd.f32 %v429, %v2584
    %v2586 = vpop.f32.mrf.mxu0
    %v2587 = vadd.f32 %v433, %v2586
    %v2588 = vpop.f32.mrf.mxu0
    %v2589 = vadd.f32 %v429, %v2588
    %v2590 = vpop.f32.mrf.mxu0
    %v2591 = vadd.f32 %v433, %v2590
    %2592 = vmatprep.mubr.bf16.mxu0 %v572
    %2593 = vmatmul.mubr.bf16.gmra.mxu0 %v571
    %v2594 = vpop.f32.mrf.mxu0
    %v2595 = vadd.f32 %v429, %v2594
    %v2596 = vpop.f32.mrf.mxu0
    %v2597 = vadd.f32 %v433, %v2596
    %v2598 = vpop.f32.mrf.mxu0
    %v2599 = vadd.f32 %v429, %v2598
    %v2600 = vpop.f32.mrf.mxu0
    %v2601 = vadd.f32 %v433, %v2600
    %2602 = vdwg.mxu0
    %2603 = vmatprep.subr.bf16.mxu0 %v1743
    %2604 = vmatpush1.bf16.msra.mxu0 %v1742
    %2605 = vmatprep.subr.bf16.mxu0 %v1731
    %2606 = vmatpush1.bf16.msra.mxu0 %v1730
    %2607 = vmatprep.subr.bf16.mxu0 %v1719
    %2608 = vmatpush1.bf16.msra.mxu0 %v1718
    %2609 = vmatprep.subr.bf16.mxu0 %v1707
    %2610 = vmatpush1.bf16.msra.mxu0 %v1706
    %2611 = vmatprep.subr.bf16.mxu0 %v1695
    %2612 = vmatpush1.bf16.msra.mxu0 %v1694
    %2613 = vmatprep.subr.bf16.mxu0 %v1683
    %2614 = vmatpush1.bf16.msra.mxu0 %v1682
    %2615 = vmatprep.subr.bf16.mxu0 %v1671
    %2616 = vmatpush1.bf16.msra.mxu0 %v1670
    %2617 = vmatprep.subr.bf16.mxu0 %v1659
    %2618 = vmatpush1.bf16.msra.mxu0 %v1658
    %2619 = vmatprep.subr.bf16.mxu0 0
    %2620 = vmatpush2.bf16.msra.mxu0 0
    %2621 = vmatprep.subr.bf16.mxu0 0
    %2622 = vmatpush2.bf16.msra.mxu0 0
    %2623 = vmatprep.subr.bf16.mxu0 0
    %2624 = vmatpush2.bf16.msra.mxu0 0
    %2625 = vmatprep.subr.bf16.mxu0 0
    %2626 = vmatpush2.bf16.msra.mxu0 0
    %2627 = vmatprep.subr.bf16.mxu0 0
    %2628 = vmatpush2.bf16.msra.mxu0 0
    %2629 = vmatprep.subr.bf16.mxu0 0
    %2630 = vmatpush2.bf16.msra.mxu0 0
    %2631 = vmatprep.subr.bf16.mxu0 0
    %2632 = vmatpush2.bf16.msra.mxu0 0
    %2633 = vmatprep.subr.bf16.mxu0 0
    %2634 = vmatpush2.bf16.msra.mxu0 0
    %2635 = vmatprep.mubr.bf16.mxu0 0
    %2636 = vmatmul.mubr.bf16.gmra.mxu0 %v552
    %v2637 = vpop.f32.mrf.mxu0
    %v2638 = vadd.f32 %v2525, %v2637
    %v2639 = vpop.f32.mrf.mxu0
    %v2640 = vadd.f32 %v2527, %v2639
    %v2641 = vpop.f32.mrf.mxu0
    %v2642 = vadd.f32 %v2529, %v2641
    %v2643 = vpop.f32.mrf.mxu0
    %v2644 = vadd.f32 %v2531, %v2643
    %2645 = vmatprep.mubr.bf16.mxu0 0
    %2646 = vmatmul.mubr.bf16.gmra.mxu0 %v555
    %v2647 = vpop.f32.mrf.mxu0
    %v2648 = vadd.f32 %v2535, %v2647
    %v2649 = vpop.f32.mrf.mxu0
    %v2650 = vadd.f32 %v2537, %v2649
    %v2651 = vpop.f32.mrf.mxu0
    %v2652 = vadd.f32 %v2539, %v2651
    %v2653 = vpop.f32.mrf.mxu0
    %v2654 = vadd.f32 %v2541, %v2653
    %2655 = vmatprep.mubr.bf16.mxu0 0
    %2656 = vmatmul.mubr.bf16.gmra.mxu0 %v558
    %v2657 = vpop.f32.mrf.mxu0
    %v2658 = vadd.f32 %v2545, %v2657
    %v2659 = vpop.f32.mrf.mxu0
    %v2660 = vadd.f32 %v2547, %v2659
    %v2661 = vpop.f32.mrf.mxu0
    %v2662 = vadd.f32 %v2549, %v2661
    %v2663 = vpop.f32.mrf.mxu0
    %v2664 = vadd.f32 %v2551, %v2663
    %2665 = vmatprep.mubr.bf16.mxu0 0
    %2666 = vmatmul.mubr.bf16.gmra.mxu0 %v561
    %v2667 = vpop.f32.mrf.mxu0
    %v2668 = vadd.f32 %v2555, %v2667
    %v2669 = vpop.f32.mrf.mxu0
    %v2670 = vadd.f32 %v2557, %v2669
    %v2671 = vpop.f32.mrf.mxu0
    %v2672 = vadd.f32 %v2559, %v2671
    %v2673 = vpop.f32.mrf.mxu0
    %v2674 = vadd.f32 %v2561, %v2673
    %2675 = vmatprep.mubr.bf16.mxu0 0
    %2676 = vmatmul.mubr.bf16.gmra.mxu0 %v564
    %v2677 = vpop.f32.mrf.mxu0
    %v2678 = vadd.f32 %v2565, %v2677
    %v2679 = vpop.f32.mrf.mxu0
    %v2680 = vadd.f32 %v2567, %v2679
    %v2681 = vpop.f32.mrf.mxu0
    %v2682 = vadd.f32 %v2569, %v2681
    %v2683 = vpop.f32.mrf.mxu0
    %v2684 = vadd.f32 %v2571, %v2683
    %2685 = vmatprep.mubr.bf16.mxu0 0
    %2686 = vmatmul.mubr.bf16.gmra.mxu0 %v567
    %v2687 = vpop.f32.mrf.mxu0
    %v2688 = vadd.f32 %v2575, %v2687
    %v2689 = vpop.f32.mrf.mxu0
    %v2690 = vadd.f32 %v2577, %v2689
    %v2691 = vpop.f32.mrf.mxu0
    %v2692 = vadd.f32 %v2579, %v2691
    %v2693 = vpop.f32.mrf.mxu0
    %v2694 = vadd.f32 %v2581, %v2693
    %2695 = vmatprep.mubr.bf16.mxu0 0
    %2696 = vmatmul.mubr.bf16.gmra.mxu0 %v570
    %v2697 = vpop.f32.mrf.mxu0
    %v2698 = vadd.f32 %v2585, %v2697
    %v2699 = vpop.f32.mrf.mxu0
    %v2700 = vadd.f32 %v2587, %v2699
    %v2701 = vpop.f32.mrf.mxu0
    %v2702 = vadd.f32 %v2589, %v2701
    %v2703 = vpop.f32.mrf.mxu0
    %v2704 = vadd.f32 %v2591, %v2703
    %2705 = vmatprep.mubr.bf16.mxu0 0
    %2706 = vmatmul.mubr.bf16.gmra.mxu0 %v573
    %v2707 = vpop.f32.mrf.mxu0
    %v2708 = vadd.f32 %v2595, %v2707
    %v2709 = vpop.f32.mrf.mxu0
    %v2710 = vadd.f32 %v2597, %v2709
    %v2711 = vpop.f32.mrf.mxu0
    %v2712 = vadd.f32 %v2599, %v2711
    %v2713 = vpop.f32.mrf.mxu0
    %v2714 = vadd.f32 %v2601, %v2713
    %2715 = vdwg.mxu0
    %2716 = vmatprep.subr.bf16.mxu0 %v1553
    %2717 = vmatpush1.bf16.msra.mxu0 %v1552
    %2718 = vmatprep.subr.bf16.mxu0 %v1541
    %2719 = vmatpush1.bf16.msra.mxu0 %v1540
    %2720 = vmatprep.subr.bf16.mxu0 %v1529
    %2721 = vmatpush1.bf16.msra.mxu0 %v1528
    %2722 = vmatprep.subr.bf16.mxu0 %v1517
    %2723 = vmatpush1.bf16.msra.mxu0 %v1516
    %2724 = vmatprep.subr.bf16.mxu0 %v1505
    %2725 = vmatpush1.bf16.msra.mxu0 %v1504
    %2726 = vmatprep.subr.bf16.mxu0 %v1493
    %2727 = vmatpush1.bf16.msra.mxu0 %v1492
    %2728 = vmatprep.subr.bf16.mxu0 %v1481
    %2729 = vmatpush1.bf16.msra.mxu0 %v1480
    %2730 = vmatprep.subr.bf16.mxu0 %v1469
    %2731 = vmatpush1.bf16.msra.mxu0 %v1468
    %2732 = vmatprep.subr.bf16.mxu0 %v1649
    %2733 = vmatpush2.bf16.msra.mxu0 %v1648
    %2734 = vmatprep.subr.bf16.mxu0 %v1637
    %2735 = vmatpush2.bf16.msra.mxu0 %v1636
    %2736 = vmatprep.subr.bf16.mxu0 %v1625
    %2737 = vmatpush2.bf16.msra.mxu0 %v1624
    %2738 = vmatprep.subr.bf16.mxu0 %v1613
    %2739 = vmatpush2.bf16.msra.mxu0 %v1612
    %2740 = vmatprep.subr.bf16.mxu0 %v1601
    %2741 = vmatpush2.bf16.msra.mxu0 %v1600
    %2742 = vmatprep.subr.bf16.mxu0 %v1589
    %2743 = vmatpush2.bf16.msra.mxu0 %v1588
    %2744 = vmatprep.subr.bf16.mxu0 %v1577
    %2745 = vmatpush2.bf16.msra.mxu0 %v1576
    %2746 = vmatprep.subr.bf16.mxu0 %v1565
    %2747 = vmatpush2.bf16.msra.mxu0 %v1564
    %2748 = vmatprep.mubr.bf16.mxu0 %v551
    %2749 = vmatmul.mubr.bf16.gmra.mxu0 %v550
    %v2750 = vpop.f32.mrf.mxu0
    %v2751 = vadd.f32 %v437, %v2750
    %v2752 = vpop.f32.mrf.mxu0
    %v2753 = vadd.f32 %v441, %v2752
    %v2754 = vpop.f32.mrf.mxu0
    %v2755 = vadd.f32 %v437, %v2754
    %v2756 = vpop.f32.mrf.mxu0
    %v2757 = vadd.f32 %v441, %v2756
    %2758 = vmatprep.mubr.bf16.mxu0 %v554
    %2759 = vmatmul.mubr.bf16.gmra.mxu0 %v553
    %v2760 = vpop.f32.mrf.mxu0
    %v2761 = vadd.f32 %v437, %v2760
    %v2762 = vpop.f32.mrf.mxu0
    %v2763 = vadd.f32 %v441, %v2762
    %v2764 = vpop.f32.mrf.mxu0
    %v2765 = vadd.f32 %v437, %v2764
    %v2766 = vpop.f32.mrf.mxu0
    %v2767 = vadd.f32 %v441, %v2766
    %2768 = vmatprep.mubr.bf16.mxu0 %v557
    %2769 = vmatmul.mubr.bf16.gmra.mxu0 %v556
    %v2770 = vpop.f32.mrf.mxu0
    %v2771 = vadd.f32 %v437, %v2770
    %v2772 = vpop.f32.mrf.mxu0
    %v2773 = vadd.f32 %v441, %v2772
    %v2774 = vpop.f32.mrf.mxu0
    %v2775 = vadd.f32 %v437, %v2774
    %v2776 = vpop.f32.mrf.mxu0
    %v2777 = vadd.f32 %v441, %v2776
    %2778 = vmatprep.mubr.bf16.mxu0 %v560
    %2779 = vmatmul.mubr.bf16.gmra.mxu0 %v559
    %v2780 = vpop.f32.mrf.mxu0
    %v2781 = vadd.f32 %v437, %v2780
    %v2782 = vpop.f32.mrf.mxu0
    %v2783 = vadd.f32 %v441, %v2782
    %v2784 = vpop.f32.mrf.mxu0
    %v2785 = vadd.f32 %v437, %v2784
    %v2786 = vpop.f32.mrf.mxu0
    %v2787 = vadd.f32 %v441, %v2786
    %2788 = vmatprep.mubr.bf16.mxu0 %v563
    %2789 = vmatmul.mubr.bf16.gmra.mxu0 %v562
    %v2790 = vpop.f32.mrf.mxu0
    %v2791 = vadd.f32 %v437, %v2790
    %v2792 = vpop.f32.mrf.mxu0
    %v2793 = vadd.f32 %v441, %v2792
    %v2794 = vpop.f32.mrf.mxu0
    %v2795 = vadd.f32 %v437, %v2794
    %v2796 = vpop.f32.mrf.mxu0
    %v2797 = vadd.f32 %v441, %v2796
    %2798 = vmatprep.mubr.bf16.mxu0 %v566
    %2799 = vmatmul.mubr.bf16.gmra.mxu0 %v565
    %v2800 = vpop.f32.mrf.mxu0
    %v2801 = vadd.f32 %v437, %v2800
    %v2802 = vpop.f32.mrf.mxu0
    %v2803 = vadd.f32 %v441, %v2802
    %v2804 = vpop.f32.mrf.mxu0
    %v2805 = vadd.f32 %v437, %v2804
    %v2806 = vpop.f32.mrf.mxu0
    %v2807 = vadd.f32 %v441, %v2806
    %2808 = vmatprep.mubr.bf16.mxu0 %v569
    %2809 = vmatmul.mubr.bf16.gmra.mxu0 %v568
    %v2810 = vpop.f32.mrf.mxu0
    %v2811 = vadd.f32 %v437, %v2810
    %v2812 = vpop.f32.mrf.mxu0
    %v2813 = vadd.f32 %v441, %v2812
    %v2814 = vpop.f32.mrf.mxu0
    %v2815 = vadd.f32 %v437, %v2814
    %v2816 = vpop.f32.mrf.mxu0
    %v2817 = vadd.f32 %v441, %v2816
    %2818 = vmatprep.mubr.bf16.mxu0 %v572
    %2819 = vmatmul.mubr.bf16.gmra.mxu0 %v571
    %v2820 = vpop.f32.mrf.mxu0
    %v2821 = vadd.f32 %v437, %v2820
    %v2822 = vpop.f32.mrf.mxu0
    %v2823 = vadd.f32 %v441, %v2822
    %v2824 = vpop.f32.mrf.mxu0
    %v2825 = vadd.f32 %v437, %v2824
    %v2826 = vpop.f32.mrf.mxu0
    %v2827 = vadd.f32 %v441, %v2826
    %2828 = vdwg.mxu0
    %2829 = vmatprep.subr.bf16.mxu0 %v1745
    %2830 = vmatpush1.bf16.msra.mxu0 %v1744
    %2831 = vmatprep.subr.bf16.mxu0 %v1733
    %2832 = vmatpush1.bf16.msra.mxu0 %v1732
    %2833 = vmatprep.subr.bf16.mxu0 %v1721
    %2834 = vmatpush1.bf16.msra.mxu0 %v1720
    %2835 = vmatprep.subr.bf16.mxu0 %v1709
    %2836 = vmatpush1.bf16.msra.mxu0 %v1708
    %2837 = vmatprep.subr.bf16.mxu0 %v1697
    %2838 = vmatpush1.bf16.msra.mxu0 %v1696
    %2839 = vmatprep.subr.bf16.mxu0 %v1685
    %2840 = vmatpush1.bf16.msra.mxu0 %v1684
    %2841 = vmatprep.subr.bf16.mxu0 %v1673
    %2842 = vmatpush1.bf16.msra.mxu0 %v1672
    %2843 = vmatprep.subr.bf16.mxu0 %v1661
    %2844 = vmatpush1.bf16.msra.mxu0 %v1660
    %2845 = vmatprep.subr.bf16.mxu0 0
    %2846 = vmatpush2.bf16.msra.mxu0 0
    %2847 = vmatprep.subr.bf16.mxu0 0
    %2848 = vmatpush2.bf16.msra.mxu0 0
    %2849 = vmatprep.subr.bf16.mxu0 0
    %2850 = vmatpush2.bf16.msra.mxu0 0
    %2851 = vmatprep.subr.bf16.mxu0 0
    %2852 = vmatpush2.bf16.msra.mxu0 0
    %2853 = vmatprep.subr.bf16.mxu0 0
    %2854 = vmatpush2.bf16.msra.mxu0 0
    %2855 = vmatprep.subr.bf16.mxu0 0
    %2856 = vmatpush2.bf16.msra.mxu0 0
    %2857 = vmatprep.subr.bf16.mxu0 0
    %2858 = vmatpush2.bf16.msra.mxu0 0
    %2859 = vmatprep.subr.bf16.mxu0 0
    %2860 = vmatpush2.bf16.msra.mxu0 0
    %2861 = vmatprep.mubr.bf16.mxu0 0
    %2862 = vmatmul.mubr.bf16.gmra.mxu0 %v552
    %v2863 = vpop.f32.mrf.mxu0
    %v2864 = vadd.f32 %v2751, %v2863
    %v2865 = vpop.f32.mrf.mxu0
    %v2866 = vadd.f32 %v2753, %v2865
    %v2867 = vpop.f32.mrf.mxu0
    %v2868 = vadd.f32 %v2755, %v2867
    %v2869 = vpop.f32.mrf.mxu0
    %v2870 = vadd.f32 %v2757, %v2869
    %2871 = vmatprep.mubr.bf16.mxu0 0
    %2872 = vmatmul.mubr.bf16.gmra.mxu0 %v555
    %v2873 = vpop.f32.mrf.mxu0
    %v2874 = vadd.f32 %v2761, %v2873
    %v2875 = vpop.f32.mrf.mxu0
    %v2876 = vadd.f32 %v2763, %v2875
    %v2877 = vpop.f32.mrf.mxu0
    %v2878 = vadd.f32 %v2765, %v2877
    %v2879 = vpop.f32.mrf.mxu0
    %v2880 = vadd.f32 %v2767, %v2879
    %2881 = vmatprep.mubr.bf16.mxu0 0
    %2882 = vmatmul.mubr.bf16.gmra.mxu0 %v558
    %v2883 = vpop.f32.mrf.mxu0
    %v2884 = vadd.f32 %v2771, %v2883
    %v2885 = vpop.f32.mrf.mxu0
    %v2886 = vadd.f32 %v2773, %v2885
    %v2887 = vpop.f32.mrf.mxu0
    %v2888 = vadd.f32 %v2775, %v2887
    %v2889 = vpop.f32.mrf.mxu0
    %v2890 = vadd.f32 %v2777, %v2889
    %2891 = vmatprep.mubr.bf16.mxu0 0
    %2892 = vmatmul.mubr.bf16.gmra.mxu0 %v561
    %v2893 = vpop.f32.mrf.mxu0
    %v2894 = vadd.f32 %v2781, %v2893
    %v2895 = vpop.f32.mrf.mxu0
    %v2896 = vadd.f32 %v2783, %v2895
    %v2897 = vpop.f32.mrf.mxu0
    %v2898 = vadd.f32 %v2785, %v2897
    %v2899 = vpop.f32.mrf.mxu0
    %v2900 = vadd.f32 %v2787, %v2899
    %2901 = vmatprep.mubr.bf16.mxu0 0
    %2902 = vmatmul.mubr.bf16.gmra.mxu0 %v564
    %v2903 = vpop.f32.mrf.mxu0
    %v2904 = vadd.f32 %v2791, %v2903
    %v2905 = vpop.f32.mrf.mxu0
    %v2906 = vadd.f32 %v2793, %v2905
    %v2907 = vpop.f32.mrf.mxu0
    %v2908 = vadd.f32 %v2795, %v2907
    %v2909 = vpop.f32.mrf.mxu0
    %v2910 = vadd.f32 %v2797, %v2909
    %2911 = vmatprep.mubr.bf16.mxu0 0
    %2912 = vmatmul.mubr.bf16.gmra.mxu0 %v567
    %v2913 = vpop.f32.mrf.mxu0
    %v2914 = vadd.f32 %v2801, %v2913
    %v2915 = vpop.f32.mrf.mxu0
    %v2916 = vadd.f32 %v2803, %v2915
    %v2917 = vpop.f32.mrf.mxu0
    %v2918 = vadd.f32 %v2805, %v2917
    %v2919 = vpop.f32.mrf.mxu0
    %v2920 = vadd.f32 %v2807, %v2919
    %2921 = vmatprep.mubr.bf16.mxu0 0
    %2922 = vmatmul.mubr.bf16.gmra.mxu0 %v570
    %v2923 = vpop.f32.mrf.mxu0
    %v2924 = vadd.f32 %v2811, %v2923
    %v2925 = vpop.f32.mrf.mxu0
    %v2926 = vadd.f32 %v2813, %v2925
    %v2927 = vpop.f32.mrf.mxu0
    %v2928 = vadd.f32 %v2815, %v2927
    %v2929 = vpop.f32.mrf.mxu0
    %v2930 = vadd.f32 %v2817, %v2929
    %2931 = vmatprep.mubr.bf16.mxu0 0
    %2932 = vmatmul.mubr.bf16.gmra.mxu0 %v573
    %v2933 = vpop.f32.mrf.mxu0
    %v2934 = vadd.f32 %v2821, %v2933
    %v2935 = vpop.f32.mrf.mxu0
    %v2936 = vadd.f32 %v2823, %v2935
    %v2937 = vpop.f32.mrf.mxu0
    %v2938 = vadd.f32 %v2825, %v2937
    %v2939 = vpop.f32.mrf.mxu0
    %v2940 = vadd.f32 %v2827, %v2939
    %2941 = vdwg.mxu0
    %2942 = vmatprep.subr.bf16.mxu0 %v1555
    %2943 = vmatpush1.bf16.msra.mxu0 %v1554
    %2944 = vmatprep.subr.bf16.mxu0 %v1543
    %2945 = vmatpush1.bf16.msra.mxu0 %v1542
    %2946 = vmatprep.subr.bf16.mxu0 %v1531
    %2947 = vmatpush1.bf16.msra.mxu0 %v1530
    %2948 = vmatprep.subr.bf16.mxu0 %v1519
    %2949 = vmatpush1.bf16.msra.mxu0 %v1518
    %2950 = vmatprep.subr.bf16.mxu0 %v1507
    %2951 = vmatpush1.bf16.msra.mxu0 %v1506
    %2952 = vmatprep.subr.bf16.mxu0 %v1495
    %2953 = vmatpush1.bf16.msra.mxu0 %v1494
    %2954 = vmatprep.subr.bf16.mxu0 %v1483
    %2955 = vmatpush1.bf16.msra.mxu0 %v1482
    %2956 = vmatprep.subr.bf16.mxu0 %v1471
    %2957 = vmatpush1.bf16.msra.mxu0 %v1470
    %2958 = vmatprep.subr.bf16.mxu0 %v1651
    %2959 = vmatpush2.bf16.msra.mxu0 %v1650
    %2960 = vmatprep.subr.bf16.mxu0 %v1639
    %2961 = vmatpush2.bf16.msra.mxu0 %v1638
    %2962 = vmatprep.subr.bf16.mxu0 %v1627
    %2963 = vmatpush2.bf16.msra.mxu0 %v1626
    %2964 = vmatprep.subr.bf16.mxu0 %v1615
    %2965 = vmatpush2.bf16.msra.mxu0 %v1614
    %2966 = vmatprep.subr.bf16.mxu0 %v1603
    %2967 = vmatpush2.bf16.msra.mxu0 %v1602
    %2968 = vmatprep.subr.bf16.mxu0 %v1591
    %2969 = vmatpush2.bf16.msra.mxu0 %v1590
    %2970 = vmatprep.subr.bf16.mxu0 %v1579
    %2971 = vmatpush2.bf16.msra.mxu0 %v1578
    %2972 = vmatprep.subr.bf16.mxu0 %v1567
    %2973 = vmatpush2.bf16.msra.mxu0 %v1566
    %2974 = vmatprep.mubr.bf16.mxu0 %v551
    %2975 = vmatmul.mubr.bf16.gmra.mxu0 %v550
    %v2976 = vpop.f32.mrf.mxu0
    %v2977 = vadd.f32 %v445, %v2976
    %v2978 = vpop.f32.mrf.mxu0
    %v2979 = vadd.f32 %v449, %v2978
    %v2980 = vpop.f32.mrf.mxu0
    %v2981 = vadd.f32 %v445, %v2980
    %v2982 = vpop.f32.mrf.mxu0
    %v2983 = vadd.f32 %v449, %v2982
    %2984 = vmatprep.mubr.bf16.mxu0 %v554
    %2985 = vmatmul.mubr.bf16.gmra.mxu0 %v553
    %v2986 = vpop.f32.mrf.mxu0
    %v2987 = vadd.f32 %v445, %v2986
    %v2988 = vpop.f32.mrf.mxu0
    %v2989 = vadd.f32 %v449, %v2988
    %v2990 = vpop.f32.mrf.mxu0
    %v2991 = vadd.f32 %v445, %v2990
    %v2992 = vpop.f32.mrf.mxu0
    %v2993 = vadd.f32 %v449, %v2992
    %2994 = vmatprep.mubr.bf16.mxu0 %v557
    %2995 = vmatmul.mubr.bf16.gmra.mxu0 %v556
    %v2996 = vpop.f32.mrf.mxu0
    %v2997 = vadd.f32 %v445, %v2996
    %v2998 = vpop.f32.mrf.mxu0
    %v2999 = vadd.f32 %v449, %v2998
    %v3000 = vpop.f32.mrf.mxu0
    %v3001 = vadd.f32 %v445, %v3000
    %v3002 = vpop.f32.mrf.mxu0
    %v3003 = vadd.f32 %v449, %v3002
    %3004 = vmatprep.mubr.bf16.mxu0 %v560
    %3005 = vmatmul.mubr.bf16.gmra.mxu0 %v559
    %v3006 = vpop.f32.mrf.mxu0
    %v3007 = vadd.f32 %v445, %v3006
    %v3008 = vpop.f32.mrf.mxu0
    %v3009 = vadd.f32 %v449, %v3008
    %v3010 = vpop.f32.mrf.mxu0
    %v3011 = vadd.f32 %v445, %v3010
    %v3012 = vpop.f32.mrf.mxu0
    %v3013 = vadd.f32 %v449, %v3012
    %3014 = vmatprep.mubr.bf16.mxu0 %v563
    %3015 = vmatmul.mubr.bf16.gmra.mxu0 %v562
    %v3016 = vpop.f32.mrf.mxu0
    %v3017 = vadd.f32 %v445, %v3016
    %v3018 = vpop.f32.mrf.mxu0
    %v3019 = vadd.f32 %v449, %v3018
    %v3020 = vpop.f32.mrf.mxu0
    %v3021 = vadd.f32 %v445, %v3020
    %v3022 = vpop.f32.mrf.mxu0
    %v3023 = vadd.f32 %v449, %v3022
    %3024 = vmatprep.mubr.bf16.mxu0 %v566
    %3025 = vmatmul.mubr.bf16.gmra.mxu0 %v565
    %v3026 = vpop.f32.mrf.mxu0
    %v3027 = vadd.f32 %v445, %v3026
    %v3028 = vpop.f32.mrf.mxu0
    %v3029 = vadd.f32 %v449, %v3028
    %v3030 = vpop.f32.mrf.mxu0
    %v3031 = vadd.f32 %v445, %v3030
    %v3032 = vpop.f32.mrf.mxu0
    %v3033 = vadd.f32 %v449, %v3032
    %3034 = vmatprep.mubr.bf16.mxu0 %v569
    %3035 = vmatmul.mubr.bf16.gmra.mxu0 %v568
    %v3036 = vpop.f32.mrf.mxu0
    %v3037 = vadd.f32 %v445, %v3036
    %v3038 = vpop.f32.mrf.mxu0
    %v3039 = vadd.f32 %v449, %v3038
    %v3040 = vpop.f32.mrf.mxu0
    %v3041 = vadd.f32 %v445, %v3040
    %v3042 = vpop.f32.mrf.mxu0
    %v3043 = vadd.f32 %v449, %v3042
    %3044 = vmatprep.mubr.bf16.mxu0 %v572
    %3045 = vmatmul.mubr.bf16.gmra.mxu0 %v571
    %v3046 = vpop.f32.mrf.mxu0
    %v3047 = vadd.f32 %v445, %v3046
    %v3048 = vpop.f32.mrf.mxu0
    %v3049 = vadd.f32 %v449, %v3048
    %v3050 = vpop.f32.mrf.mxu0
    %v3051 = vadd.f32 %v445, %v3050
    %v3052 = vpop.f32.mrf.mxu0
    %v3053 = vadd.f32 %v449, %v3052
    %3054 = vdwg.mxu0
    %3055 = vmatprep.subr.bf16.mxu0 %v1747
    %3056 = vmatpush1.bf16.msra.mxu0 %v1746
    %3057 = vmatprep.subr.bf16.mxu0 %v1735
    %3058 = vmatpush1.bf16.msra.mxu0 %v1734
    %3059 = vmatprep.subr.bf16.mxu0 %v1723
    %3060 = vmatpush1.bf16.msra.mxu0 %v1722
    %3061 = vmatprep.subr.bf16.mxu0 %v1711
    %3062 = vmatpush1.bf16.msra.mxu0 %v1710
    %3063 = vmatprep.subr.bf16.mxu0 %v1699
    %3064 = vmatpush1.bf16.msra.mxu0 %v1698
    %3065 = vmatprep.subr.bf16.mxu0 %v1687
    %3066 = vmatpush1.bf16.msra.mxu0 %v1686
    %3067 = vmatprep.subr.bf16.mxu0 %v1675
    %3068 = vmatpush1.bf16.msra.mxu0 %v1674
    %3069 = vmatprep.subr.bf16.mxu0 %v1663
    %3070 = vmatpush1.bf16.msra.mxu0 %v1662
    %3071 = vmatprep.subr.bf16.mxu0 0
    %3072 = vmatpush2.bf16.msra.mxu0 0
    %3073 = vmatprep.subr.bf16.mxu0 0
    %3074 = vmatpush2.bf16.msra.mxu0 0
    %3075 = vmatprep.subr.bf16.mxu0 0
    %3076 = vmatpush2.bf16.msra.mxu0 0
    %3077 = vmatprep.subr.bf16.mxu0 0
    %3078 = vmatpush2.bf16.msra.mxu0 0
    %3079 = vmatprep.subr.bf16.mxu0 0
    %3080 = vmatpush2.bf16.msra.mxu0 0
    %3081 = vmatprep.subr.bf16.mxu0 0
    %3082 = vmatpush2.bf16.msra.mxu0 0
    %3083 = vmatprep.subr.bf16.mxu0 0
    %3084 = vmatpush2.bf16.msra.mxu0 0
    %3085 = vmatprep.subr.bf16.mxu0 0
    %3086 = vmatpush2.bf16.msra.mxu0 0
    %3087 = vmatprep.mubr.bf16.mxu0 0
    %3088 = vmatmul.mubr.bf16.gmra.mxu0 %v552
    %v3089 = vpop.f32.mrf.mxu0
    %v3090 = vadd.f32 %v2977, %v3089
    %v3091 = vpop.f32.mrf.mxu0
    %v3092 = vadd.f32 %v2979, %v3091
    %v3093 = vpop.f32.mrf.mxu0
    %v3094 = vadd.f32 %v2981, %v3093
    %v3095 = vpop.f32.mrf.mxu0
    %v3096 = vadd.f32 %v2983, %v3095
    %3097 = vmatprep.mubr.bf16.mxu0 0
    %3098 = vmatmul.mubr.bf16.gmra.mxu0 %v555
    %v3099 = vpop.f32.mrf.mxu0
    %v3100 = vadd.f32 %v2987, %v3099
    %v3101 = vpop.f32.mrf.mxu0
    %v3102 = vadd.f32 %v2989, %v3101
    %v3103 = vpop.f32.mrf.mxu0
    %v3104 = vadd.f32 %v2991, %v3103
    %v3105 = vpop.f32.mrf.mxu0
    %v3106 = vadd.f32 %v2993, %v3105
    %3107 = vmatprep.mubr.bf16.mxu0 0
    %3108 = vmatmul.mubr.bf16.gmra.mxu0 %v558
    %v3109 = vpop.f32.mrf.mxu0
    %v3110 = vadd.f32 %v2997, %v3109
    %v3111 = vpop.f32.mrf.mxu0
    %v3112 = vadd.f32 %v2999, %v3111
    %v3113 = vpop.f32.mrf.mxu0
    %v3114 = vadd.f32 %v3001, %v3113
    %v3115 = vpop.f32.mrf.mxu0
    %v3116 = vadd.f32 %v3003, %v3115
    %3117 = vmatprep.mubr.bf16.mxu0 0
    %3118 = vmatmul.mubr.bf16.gmra.mxu0 %v561
    %v3119 = vpop.f32.mrf.mxu0
    %v3120 = vadd.f32 %v3007, %v3119
    %v3121 = vpop.f32.mrf.mxu0
    %v3122 = vadd.f32 %v3009, %v3121
    %v3123 = vpop.f32.mrf.mxu0
    %v3124 = vadd.f32 %v3011, %v3123
    %v3125 = vpop.f32.mrf.mxu0
    %v3126 = vadd.f32 %v3013, %v3125
    %3127 = vmatprep.mubr.bf16.mxu0 0
    %3128 = vmatmul.mubr.bf16.gmra.mxu0 %v564
    %v3129 = vpop.f32.mrf.mxu0
    %v3130 = vadd.f32 %v3017, %v3129
    %v3131 = vpop.f32.mrf.mxu0
    %v3132 = vadd.f32 %v3019, %v3131
    %v3133 = vpop.f32.mrf.mxu0
    %v3134 = vadd.f32 %v3021, %v3133
    %v3135 = vpop.f32.mrf.mxu0
    %v3136 = vadd.f32 %v3023, %v3135
    %3137 = vmatprep.mubr.bf16.mxu0 0
    %3138 = vmatmul.mubr.bf16.gmra.mxu0 %v567
    %v3139 = vpop.f32.mrf.mxu0
    %v3140 = vadd.f32 %v3027, %v3139
    %v3141 = vpop.f32.mrf.mxu0
    %v3142 = vadd.f32 %v3029, %v3141
    %v3143 = vpop.f32.mrf.mxu0
    %v3144 = vadd.f32 %v3031, %v3143
    %v3145 = vpop.f32.mrf.mxu0
    %v3146 = vadd.f32 %v3033, %v3145
    %3147 = vmatprep.mubr.bf16.mxu0 0
    %3148 = vmatmul.mubr.bf16.gmra.mxu0 %v570
    %v3149 = vpop.f32.mrf.mxu0
    %v3150 = vadd.f32 %v3037, %v3149
    %v3151 = vpop.f32.mrf.mxu0
    %v3152 = vadd.f32 %v3039, %v3151
    %v3153 = vpop.f32.mrf.mxu0
    %v3154 = vadd.f32 %v3041, %v3153
    %v3155 = vpop.f32.mrf.mxu0
    %v3156 = vadd.f32 %v3043, %v3155
    %3157 = vmatprep.mubr.bf16.mxu0 0
    %3158 = vmatmul.mubr.bf16.gmra.mxu0 %v573
    %v3159 = vpop.f32.mrf.mxu0
    %v3160 = vadd.f32 %v3047, %v3159
    %v3161 = vpop.f32.mrf.mxu0
    %v3162 = vadd.f32 %v3049, %v3161
    %v3163 = vpop.f32.mrf.mxu0
    %v3164 = vadd.f32 %v3051, %v3163
    %v3165 = vpop.f32.mrf.mxu0
    %v3166 = vadd.f32 %v3053, %v3165
    %3167 = vdwg.mxu0
    %3168 = vmatprep.subr.bf16.mxu0 %v1557
    %3169 = vmatpush1.bf16.msra.mxu0 %v1556
    %3170 = vmatprep.subr.bf16.mxu0 %v1545
    %3171 = vmatpush1.bf16.msra.mxu0 %v1544
    %3172 = vmatprep.subr.bf16.mxu0 %v1533
    %3173 = vmatpush1.bf16.msra.mxu0 %v1532
    %3174 = vmatprep.subr.bf16.mxu0 %v1521
    %3175 = vmatpush1.bf16.msra.mxu0 %v1520
    %3176 = vmatprep.subr.bf16.mxu0 %v1509
    %3177 = vmatpush1.bf16.msra.mxu0 %v1508
    %3178 = vmatprep.subr.bf16.mxu0 %v1497
    %3179 = vmatpush1.bf16.msra.mxu0 %v1496
    %3180 = vmatprep.subr.bf16.mxu0 %v1485
    %3181 = vmatpush1.bf16.msra.mxu0 %v1484
    %3182 = vmatprep.subr.bf16.mxu0 %v1473
    %3183 = vmatpush1.bf16.msra.mxu0 %v1472
    %3184 = vmatprep.subr.bf16.mxu0 %v1653
    %3185 = vmatpush2.bf16.msra.mxu0 %v1652
    %3186 = vmatprep.subr.bf16.mxu0 %v1641
    %3187 = vmatpush2.bf16.msra.mxu0 %v1640
    %3188 = vmatprep.subr.bf16.mxu0 %v1629
    %3189 = vmatpush2.bf16.msra.mxu0 %v1628
    %3190 = vmatprep.subr.bf16.mxu0 %v1617
    %3191 = vmatpush2.bf16.msra.mxu0 %v1616
    %3192 = vmatprep.subr.bf16.mxu0 %v1605
    %3193 = vmatpush2.bf16.msra.mxu0 %v1604
    %3194 = vmatprep.subr.bf16.mxu0 %v1593
    %3195 = vmatpush2.bf16.msra.mxu0 %v1592
    %3196 = vmatprep.subr.bf16.mxu0 %v1581
    %3197 = vmatpush2.bf16.msra.mxu0 %v1580
    %3198 = vmatprep.subr.bf16.mxu0 %v1569
    %3199 = vmatpush2.bf16.msra.mxu0 %v1568
    %3200 = vmatprep.mubr.bf16.mxu0 %v551
    %3201 = vmatmul.mubr.bf16.gmra.mxu0 %v550
    %v3202 = vpop.f32.mrf.mxu0
    %v3203 = vadd.f32 %v453, %v3202
    %v3204 = vpop.f32.mrf.mxu0
    %v3205 = vadd.f32 %v457, %v3204
    %v3206 = vpop.f32.mrf.mxu0
    %v3207 = vadd.f32 %v453, %v3206
    %v3208 = vpop.f32.mrf.mxu0
    %v3209 = vadd.f32 %v457, %v3208
    %3210 = vmatprep.mubr.bf16.mxu0 %v554
    %3211 = vmatmul.mubr.bf16.gmra.mxu0 %v553
    %v3212 = vpop.f32.mrf.mxu0
    %v3213 = vadd.f32 %v453, %v3212
    %v3214 = vpop.f32.mrf.mxu0
    %v3215 = vadd.f32 %v457, %v3214
    %v3216 = vpop.f32.mrf.mxu0
    %v3217 = vadd.f32 %v453, %v3216
    %v3218 = vpop.f32.mrf.mxu0
    %v3219 = vadd.f32 %v457, %v3218
    %3220 = vmatprep.mubr.bf16.mxu0 %v557
    %3221 = vmatmul.mubr.bf16.gmra.mxu0 %v556
    %v3222 = vpop.f32.mrf.mxu0
    %v3223 = vadd.f32 %v453, %v3222
    %v3224 = vpop.f32.mrf.mxu0
    %v3225 = vadd.f32 %v457, %v3224
    %v3226 = vpop.f32.mrf.mxu0
    %v3227 = vadd.f32 %v453, %v3226
    %v3228 = vpop.f32.mrf.mxu0
    %v3229 = vadd.f32 %v457, %v3228
    %3230 = vmatprep.mubr.bf16.mxu0 %v560
    %3231 = vmatmul.mubr.bf16.gmra.mxu0 %v559
    %v3232 = vpop.f32.mrf.mxu0
    %v3233 = vadd.f32 %v453, %v3232
    %v3234 = vpop.f32.mrf.mxu0
    %v3235 = vadd.f32 %v457, %v3234
    %v3236 = vpop.f32.mrf.mxu0
    %v3237 = vadd.f32 %v453, %v3236
    %v3238 = vpop.f32.mrf.mxu0
    %v3239 = vadd.f32 %v457, %v3238
    %3240 = vmatprep.mubr.bf16.mxu0 %v563
    %3241 = vmatmul.mubr.bf16.gmra.mxu0 %v562
    %v3242 = vpop.f32.mrf.mxu0
    %v3243 = vadd.f32 %v453, %v3242
    %v3244 = vpop.f32.mrf.mxu0
    %v3245 = vadd.f32 %v457, %v3244
    %v3246 = vpop.f32.mrf.mxu0
    %v3247 = vadd.f32 %v453, %v3246
    %v3248 = vpop.f32.mrf.mxu0
    %v3249 = vadd.f32 %v457, %v3248
    %3250 = vmatprep.mubr.bf16.mxu0 %v566
    %3251 = vmatmul.mubr.bf16.gmra.mxu0 %v565
    %v3252 = vpop.f32.mrf.mxu0
    %v3253 = vadd.f32 %v453, %v3252
    %v3254 = vpop.f32.mrf.mxu0
    %v3255 = vadd.f32 %v457, %v3254
    %v3256 = vpop.f32.mrf.mxu0
    %v3257 = vadd.f32 %v453, %v3256
    %v3258 = vpop.f32.mrf.mxu0
    %v3259 = vadd.f32 %v457, %v3258
    %3260 = vmatprep.mubr.bf16.mxu0 %v569
    %3261 = vmatmul.mubr.bf16.gmra.mxu0 %v568
    %v3262 = vpop.f32.mrf.mxu0
    %v3263 = vadd.f32 %v453, %v3262
    %v3264 = vpop.f32.mrf.mxu0
    %v3265 = vadd.f32 %v457, %v3264
    %v3266 = vpop.f32.mrf.mxu0
    %v3267 = vadd.f32 %v453, %v3266
    %v3268 = vpop.f32.mrf.mxu0
    %v3269 = vadd.f32 %v457, %v3268
    %3270 = vmatprep.mubr.bf16.mxu0 %v572
    %3271 = vmatmul.mubr.bf16.gmra.mxu0 %v571
    %v3272 = vpop.f32.mrf.mxu0
    %v3273 = vadd.f32 %v453, %v3272
    %v3274 = vpop.f32.mrf.mxu0
    %v3275 = vadd.f32 %v457, %v3274
    %v3276 = vpop.f32.mrf.mxu0
    %v3277 = vadd.f32 %v453, %v3276
    %v3278 = vpop.f32.mrf.mxu0
    %v3279 = vadd.f32 %v457, %v3278
    %3280 = vdwg.mxu0
    %3281 = vmatprep.subr.bf16.mxu0 %v1749
    %3282 = vmatpush1.bf16.msra.mxu0 %v1748
    %3283 = vmatprep.subr.bf16.mxu0 %v1737
    %3284 = vmatpush1.bf16.msra.mxu0 %v1736
    %3285 = vmatprep.subr.bf16.mxu0 %v1725
    %3286 = vmatpush1.bf16.msra.mxu0 %v1724
    %3287 = vmatprep.subr.bf16.mxu0 %v1713
    %3288 = vmatpush1.bf16.msra.mxu0 %v1712
    %3289 = vmatprep.subr.bf16.mxu0 %v1701
    %3290 = vmatpush1.bf16.msra.mxu0 %v1700
    %3291 = vmatprep.subr.bf16.mxu0 %v1689
    %3292 = vmatpush1.bf16.msra.mxu0 %v1688
    %3293 = vmatprep.subr.bf16.mxu0 %v1677
    %3294 = vmatpush1.bf16.msra.mxu0 %v1676
    %3295 = vmatprep.subr.bf16.mxu0 %v1665
    %3296 = vmatpush1.bf16.msra.mxu0 %v1664
    %3297 = vmatprep.subr.bf16.mxu0 0
    %3298 = vmatpush2.bf16.msra.mxu0 0
    %3299 = vmatprep.subr.bf16.mxu0 0
    %3300 = vmatpush2.bf16.msra.mxu0 0
    %3301 = vmatprep.subr.bf16.mxu0 0
    %3302 = vmatpush2.bf16.msra.mxu0 0
    %3303 = vmatprep.subr.bf16.mxu0 0
    %3304 = vmatpush2.bf16.msra.mxu0 0
    %3305 = vmatprep.subr.bf16.mxu0 0
    %3306 = vmatpush2.bf16.msra.mxu0 0
    %3307 = vmatprep.subr.bf16.mxu0 0
    %3308 = vmatpush2.bf16.msra.mxu0 0
    %3309 = vmatprep.subr.bf16.mxu0 0
    %3310 = vmatpush2.bf16.msra.mxu0 0
    %3311 = vmatprep.subr.bf16.mxu0 0
    %3312 = vmatpush2.bf16.msra.mxu0 0
    %3313 = vmatprep.mubr.bf16.mxu0 0
    %3314 = vmatmul.mubr.bf16.gmra.mxu0 %v552
    %v3315 = vpop.f32.mrf.mxu0
    %v3316 = vadd.f32 %v3203, %v3315
    %v3317 = vpop.f32.mrf.mxu0
    %v3318 = vadd.f32 %v3205, %v3317
    %v3319 = vpop.f32.mrf.mxu0
    %v3320 = vadd.f32 %v3207, %v3319
    %v3321 = vpop.f32.mrf.mxu0
    %v3322 = vadd.f32 %v3209, %v3321
    %3323 = vmatprep.mubr.bf16.mxu0 0
    %3324 = vmatmul.mubr.bf16.gmra.mxu0 %v555
    %v3325 = vpop.f32.mrf.mxu0
    %v3326 = vadd.f32 %v3213, %v3325
    %v3327 = vpop.f32.mrf.mxu0
    %v3328 = vadd.f32 %v3215, %v3327
    %v3329 = vpop.f32.mrf.mxu0
    %v3330 = vadd.f32 %v3217, %v3329
    %v3331 = vpop.f32.mrf.mxu0
    %v3332 = vadd.f32 %v3219, %v3331
    %3333 = vmatprep.mubr.bf16.mxu0 0
    %3334 = vmatmul.mubr.bf16.gmra.mxu0 %v558
    %v3335 = vpop.f32.mrf.mxu0
    %v3336 = vadd.f32 %v3223, %v3335
    %v3337 = vpop.f32.mrf.mxu0
    %v3338 = vadd.f32 %v3225, %v3337
    %v3339 = vpop.f32.mrf.mxu0
    %v3340 = vadd.f32 %v3227, %v3339
    %v3341 = vpop.f32.mrf.mxu0
    %v3342 = vadd.f32 %v3229, %v3341
    %3343 = vmatprep.mubr.bf16.mxu0 0
    %3344 = vmatmul.mubr.bf16.gmra.mxu0 %v561
    %v3345 = vpop.f32.mrf.mxu0
    %v3346 = vadd.f32 %v3233, %v3345
    %v3347 = vpop.f32.mrf.mxu0
    %v3348 = vadd.f32 %v3235, %v3347
    %v3349 = vpop.f32.mrf.mxu0
    %v3350 = vadd.f32 %v3237, %v3349
    %v3351 = vpop.f32.mrf.mxu0
    %v3352 = vadd.f32 %v3239, %v3351
    %3353 = vmatprep.mubr.bf16.mxu0 0
    %3354 = vmatmul.mubr.bf16.gmra.mxu0 %v564
    %v3355 = vpop.f32.mrf.mxu0
    %v3356 = vadd.f32 %v3243, %v3355
    %v3357 = vpop.f32.mrf.mxu0
    %v3358 = vadd.f32 %v3245, %v3357
    %v3359 = vpop.f32.mrf.mxu0
    %v3360 = vadd.f32 %v3247, %v3359
    %v3361 = vpop.f32.mrf.mxu0
    %v3362 = vadd.f32 %v3249, %v3361
    %3363 = vmatprep.mubr.bf16.mxu0 0
    %3364 = vmatmul.mubr.bf16.gmra.mxu0 %v567
    %v3365 = vpop.f32.mrf.mxu0
    %v3366 = vadd.f32 %v3253, %v3365
    %v3367 = vpop.f32.mrf.mxu0
    %v3368 = vadd.f32 %v3255, %v3367
    %v3369 = vpop.f32.mrf.mxu0
    %v3370 = vadd.f32 %v3257, %v3369
    %v3371 = vpop.f32.mrf.mxu0
    %v3372 = vadd.f32 %v3259, %v3371
    %3373 = vmatprep.mubr.bf16.mxu0 0
    %3374 = vmatmul.mubr.bf16.gmra.mxu0 %v570
    %v3375 = vpop.f32.mrf.mxu0
    %v3376 = vadd.f32 %v3263, %v3375
    %v3377 = vpop.f32.mrf.mxu0
    %v3378 = vadd.f32 %v3265, %v3377
    %v3379 = vpop.f32.mrf.mxu0
    %v3380 = vadd.f32 %v3267, %v3379
    %v3381 = vpop.f32.mrf.mxu0
    %v3382 = vadd.f32 %v3269, %v3381
    %3383 = vmatprep.mubr.bf16.mxu0 0
    %3384 = vmatmul.mubr.bf16.gmra.mxu0 %v573
    %v3385 = vpop.f32.mrf.mxu0
    %v3386 = vadd.f32 %v3273, %v3385
    %v3387 = vpop.f32.mrf.mxu0
    %v3388 = vadd.f32 %v3275, %v3387
    %v3389 = vpop.f32.mrf.mxu0
    %v3390 = vadd.f32 %v3277, %v3389
    %v3391 = vpop.f32.mrf.mxu0
    %v3392 = vadd.f32 %v3279, %v3391
    %3393 = vdwg.mxu0
    %v3394 = vmax.f32 %v2186, 0.0
    %v3395 = vmax.f32 %v2188, 0.0
    %v3396 = vmax.f32 %v2412, 0.0
    %v3397 = vmax.f32 %v2414, 0.0
    %v3398 = vmax.f32 %v2638, 0.0
    %v3399 = vmax.f32 %v2640, 0.0
    %v3400 = vmax.f32 %v2864, 0.0
    %v3401 = vmax.f32 %v2866, 0.0
    %v3402 = vmax.f32 %v3090, 0.0
    %v3403 = vmax.f32 %v3092, 0.0
    %v3404 = vmax.f32 %v3316, 0.0
    %v3405 = vmax.f32 %v3318, 0.0
    %v3406 = vmax.f32 %v2190, 0.0
    %v3407 = vmax.f32 %v2192, 0.0
    %v3408 = vmax.f32 %v2416, 0.0
    %v3409 = vmax.f32 %v2418, 0.0
    %v3410 = vmax.f32 %v2642, 0.0
    %v3411 = vmax.f32 %v2644, 0.0
    %v3412 = vmax.f32 %v2868, 0.0
    %v3413 = vmax.f32 %v2870, 0.0
    %v3414 = vmax.f32 %v3094, 0.0
    %v3415 = vmax.f32 %v3096, 0.0
    %v3416 = vmax.f32 %v3320, 0.0
    %v3417 = vmax.f32 %v3322, 0.0
    %v3418 = vmax.f32 %v2196, 0.0
    %v3419 = vmax.f32 %v2198, 0.0
    %v3420 = vmax.f32 %v2422, 0.0
    %v3421 = vmax.f32 %v2424, 0.0
    %v3422 = vmax.f32 %v2648, 0.0
    %v3423 = vmax.f32 %v2650, 0.0
    %v3424 = vmax.f32 %v2874, 0.0
    %v3425 = vmax.f32 %v2876, 0.0
    %v3426 = vmax.f32 %v3100, 0.0
    %v3427 = vmax.f32 %v3102, 0.0
    %v3428 = vmax.f32 %v3326, 0.0
    %v3429 = vmax.f32 %v3328, 0.0
    %v3430 = vmax.f32 %v2200, 0.0
    %v3431 = vmax.f32 %v2202, 0.0
    %v3432 = vmax.f32 %v2426, 0.0
    %v3433 = vmax.f32 %v2428, 0.0
    %v3434 = vmax.f32 %v2652, 0.0
    %v3435 = vmax.f32 %v2654, 0.0
    %v3436 = vmax.f32 %v2878, 0.0
    %v3437 = vmax.f32 %v2880, 0.0
    %v3438 = vmax.f32 %v3104, 0.0
    %v3439 = vmax.f32 %v3106, 0.0
    %v3440 = vmax.f32 %v3330, 0.0
    %v3441 = vmax.f32 %v3332, 0.0
    %v3442 = vmax.f32 %v2206, 0.0
    %v3443 = vmax.f32 %v2208, 0.0
    %v3444 = vmax.f32 %v2432, 0.0
    %v3445 = vmax.f32 %v2434, 0.0
    %v3446 = vmax.f32 %v2658, 0.0
    %v3447 = vmax.f32 %v2660, 0.0
    %v3448 = vmax.f32 %v2884, 0.0
    %v3449 = vmax.f32 %v2886, 0.0
    %v3450 = vmax.f32 %v3110, 0.0
    %v3451 = vmax.f32 %v3112, 0.0
    %v3452 = vmax.f32 %v3336, 0.0
    %v3453 = vmax.f32 %v3338, 0.0
    %v3454 = vmax.f32 %v2210, 0.0
    %v3455 = vmax.f32 %v2212, 0.0
    %v3456 = vmax.f32 %v2436, 0.0
    %v3457 = vmax.f32 %v2438, 0.0
    %v3458 = vmax.f32 %v2662, 0.0
    %v3459 = vmax.f32 %v2664, 0.0
    %v3460 = vmax.f32 %v2888, 0.0
    %v3461 = vmax.f32 %v2890, 0.0
    %v3462 = vmax.f32 %v3114, 0.0
    %v3463 = vmax.f32 %v3116, 0.0
    %v3464 = vmax.f32 %v3340, 0.0
    %v3465 = vmax.f32 %v3342, 0.0
    %v3466 = vmax.f32 %v2216, 0.0
    %v3467 = vmax.f32 %v2218, 0.0
    %v3468 = vmax.f32 %v2442, 0.0
    %v3469 = vmax.f32 %v2444, 0.0
    %v3470 = vmax.f32 %v2668, 0.0
    %v3471 = vmax.f32 %v2670, 0.0
    %v3472 = vmax.f32 %v2894, 0.0
    %v3473 = vmax.f32 %v2896, 0.0
    %v3474 = vmax.f32 %v3120, 0.0
    %v3475 = vmax.f32 %v3122, 0.0
    %v3476 = vmax.f32 %v3346, 0.0
    %v3477 = vmax.f32 %v3348, 0.0
    %v3478 = vmax.f32 %v2220, 0.0
    %v3479 = vmax.f32 %v2222, 0.0
    %v3480 = vmax.f32 %v2446, 0.0
    %v3481 = vmax.f32 %v2448, 0.0
    %v3482 = vmax.f32 %v2672, 0.0
    %v3483 = vmax.f32 %v2674, 0.0
    %v3484 = vmax.f32 %v2898, 0.0
    %v3485 = vmax.f32 %v2900, 0.0
    %v3486 = vmax.f32 %v3124, 0.0
    %v3487 = vmax.f32 %v3126, 0.0
    %v3488 = vmax.f32 %v3350, 0.0
    %v3489 = vmax.f32 %v3352, 0.0
    %v3490 = vmax.f32 %v2226, 0.0
    %v3491 = vmax.f32 %v2228, 0.0
    %v3492 = vmax.f32 %v2452, 0.0
    %v3493 = vmax.f32 %v2454, 0.0
    %v3494 = vmax.f32 %v2678, 0.0
    %v3495 = vmax.f32 %v2680, 0.0
    %v3496 = vmax.f32 %v2904, 0.0
    %v3497 = vmax.f32 %v2906, 0.0
    %v3498 = vmax.f32 %v3130, 0.0
    %v3499 = vmax.f32 %v3132, 0.0
    %v3500 = vmax.f32 %v3356, 0.0
    %v3501 = vmax.f32 %v3358, 0.0
    %v3502 = vmax.f32 %v2230, 0.0
    %v3503 = vmax.f32 %v2232, 0.0
    %v3504 = vmax.f32 %v2456, 0.0
    %v3505 = vmax.f32 %v2458, 0.0
    %v3506 = vmax.f32 %v2682, 0.0
    %v3507 = vmax.f32 %v2684, 0.0
    %v3508 = vmax.f32 %v2908, 0.0
    %v3509 = vmax.f32 %v2910, 0.0
    %v3510 = vmax.f32 %v3134, 0.0
    %v3511 = vmax.f32 %v3136, 0.0
    %v3512 = vmax.f32 %v3360, 0.0
    %v3513 = vmax.f32 %v3362, 0.0
    %v3514 = vmax.f32 %v2236, 0.0
    %v3515 = vmax.f32 %v2238, 0.0
    %v3516 = vmax.f32 %v2462, 0.0
    %v3517 = vmax.f32 %v2464, 0.0
    %v3518 = vmax.f32 %v2688, 0.0
    %v3519 = vmax.f32 %v2690, 0.0
    %v3520 = vmax.f32 %v2914, 0.0
    %v3521 = vmax.f32 %v2916, 0.0
    %v3522 = vmax.f32 %v3140, 0.0
    %v3523 = vmax.f32 %v3142, 0.0
    %v3524 = vmax.f32 %v3366, 0.0
    %v3525 = vmax.f32 %v3368, 0.0
    %v3526 = vmax.f32 %v2240, 0.0
    %v3527 = vmax.f32 %v2242, 0.0
    %v3528 = vmax.f32 %v2466, 0.0
    %v3529 = vmax.f32 %v2468, 0.0
    %v3530 = vmax.f32 %v2692, 0.0
    %v3531 = vmax.f32 %v2694, 0.0
    %v3532 = vmax.f32 %v2918, 0.0
    %v3533 = vmax.f32 %v2920, 0.0
    %v3534 = vmax.f32 %v3144, 0.0
    %v3535 = vmax.f32 %v3146, 0.0
    %v3536 = vmax.f32 %v3370, 0.0
    %v3537 = vmax.f32 %v3372, 0.0
    %v3538 = vmax.f32 %v2246, 0.0
    %v3539 = vmax.f32 %v2248, 0.0
    %v3540 = vmax.f32 %v2472, 0.0
    %v3541 = vmax.f32 %v2474, 0.0
    %v3542 = vmax.f32 %v2698, 0.0
    %v3543 = vmax.f32 %v2700, 0.0
    %v3544 = vmax.f32 %v2924, 0.0
    %v3545 = vmax.f32 %v2926, 0.0
    %v3546 = vmax.f32 %v3150, 0.0
    %v3547 = vmax.f32 %v3152, 0.0
    %v3548 = vmax.f32 %v3376, 0.0
    %v3549 = vmax.f32 %v3378, 0.0
    %v3550 = vmax.f32 %v2250, 0.0
    %v3551 = vmax.f32 %v2252, 0.0
    %v3552 = vmax.f32 %v2476, 0.0
    %v3553 = vmax.f32 %v2478, 0.0
    %v3554 = vmax.f32 %v2702, 0.0
    %v3555 = vmax.f32 %v2704, 0.0
    %v3556 = vmax.f32 %v2928, 0.0
    %v3557 = vmax.f32 %v2930, 0.0
    %v3558 = vmax.f32 %v3154, 0.0
    %v3559 = vmax.f32 %v3156, 0.0
    %v3560 = vmax.f32 %v3380, 0.0
    %v3561 = vmax.f32 %v3382, 0.0
    %v3562 = vmax.f32 %v2256, 0.0
    %v3563 = vmax.f32 %v2258, 0.0
    %v3564 = vmax.f32 %v2482, 0.0
    %v3565 = vmax.f32 %v2484, 0.0
    %v3566 = vmax.f32 %v2708, 0.0
    %v3567 = vmax.f32 %v2710, 0.0
    %v3568 = vmax.f32 %v2934, 0.0
    %v3569 = vmax.f32 %v2936, 0.0
    %v3570 = vmax.f32 %v3160, 0.0
    %v3571 = vmax.f32 %v3162, 0.0
    %v3572 = vmax.f32 %v3386, 0.0
    %v3573 = vmax.f32 %v3388, 0.0
    %v3574 = vmax.f32 %v2260, 0.0
    %v3575 = vmax.f32 %v2262, 0.0
    %v3576 = vmax.f32 %v2486, 0.0
    %v3577 = vmax.f32 %v2488, 0.0
    %v3578 = vmax.f32 %v2712, 0.0
    %v3579 = vmax.f32 %v2714, 0.0
    %v3580 = vmax.f32 %v2938, 0.0
    %v3581 = vmax.f32 %v2940, 0.0
    %v3582 = vmax.f32 %v3164, 0.0
    %v3583 = vmax.f32 %v3166, 0.0
    %v3584 = vmax.f32 %v3390, 0.0
    %v3585 = vmax.f32 %v3392, 0.0
    %v3586 = vpack.c.bf16 %v3406, %v3394
    %v3587 = vpack.c.bf16 %v3407, %v3395
    %v3588 = vpack.c.bf16 %v3408, %v3396
    %v3589 = vpack.c.bf16 %v3409, %v3397
    %v3590 = vpack.c.bf16 %v3410, %v3398
    %v3591 = vpack.c.bf16 %v3411, %v3399
    %v3592 = vpack.c.bf16 %v3412, %v3400
    %v3593 = vpack.c.bf16 %v3413, %v3401
    %v3594 = vpack.c.bf16 %v3414, %v3402
    %v3595 = vpack.c.bf16 %v3415, %v3403
    %v3596 = vpack.c.bf16 %v3416, %v3404
    %v3597 = vpack.c.bf16 %v3417, %v3405
    %v3598 = vpack.c.bf16 %v3430, %v3418
    %v3599 = vpack.c.bf16 %v3431, %v3419
    %v3600 = vpack.c.bf16 %v3432, %v3420
    %v3601 = vpack.c.bf16 %v3433, %v3421
    %v3602 = vpack.c.bf16 %v3434, %v3422
    %v3603 = vpack.c.bf16 %v3435, %v3423
    %v3604 = vpack.c.bf16 %v3436, %v3424
    %v3605 = vpack.c.bf16 %v3437, %v3425
    %v3606 = vpack.c.bf16 %v3438, %v3426
    %v3607 = vpack.c.bf16 %v3439, %v3427
    %v3608 = vpack.c.bf16 %v3440, %v3428
    %v3609 = vpack.c.bf16 %v3441, %v3429
    %v3610 = vpack.c.bf16 %v3454, %v3442
    %v3611 = vpack.c.bf16 %v3455, %v3443
    %v3612 = vpack.c.bf16 %v3456, %v3444
    %v3613 = vpack.c.bf16 %v3457, %v3445
    %v3614 = vpack.c.bf16 %v3458, %v3446
    %v3615 = vpack.c.bf16 %v3459, %v3447
    %v3616 = vpack.c.bf16 %v3460, %v3448
    %v3617 = vpack.c.bf16 %v3461, %v3449
    %v3618 = vpack.c.bf16 %v3462, %v3450
    %v3619 = vpack.c.bf16 %v3463, %v3451
    %v3620 = vpack.c.bf16 %v3464, %v3452
    %v3621 = vpack.c.bf16 %v3465, %v3453
    %v3622 = vpack.c.bf16 %v3478, %v3466
    %v3623 = vpack.c.bf16 %v3479, %v3467
    %v3624 = vpack.c.bf16 %v3480, %v3468
    %v3625 = vpack.c.bf16 %v3481, %v3469
    %v3626 = vpack.c.bf16 %v3482, %v3470
    %v3627 = vpack.c.bf16 %v3483, %v3471
    %v3628 = vpack.c.bf16 %v3484, %v3472
    %v3629 = vpack.c.bf16 %v3485, %v3473
    %v3630 = vpack.c.bf16 %v3486, %v3474
    %v3631 = vpack.c.bf16 %v3487, %v3475
    %v3632 = vpack.c.bf16 %v3488, %v3476
    %v3633 = vpack.c.bf16 %v3489, %v3477
    %v3634 = vpack.c.bf16 %v3502, %v3490
    %v3635 = vpack.c.bf16 %v3503, %v3491
    %v3636 = vpack.c.bf16 %v3504, %v3492
    %v3637 = vpack.c.bf16 %v3505, %v3493
    %v3638 = vpack.c.bf16 %v3506, %v3494
    %v3639 = vpack.c.bf16 %v3507, %v3495
    %v3640 = vpack.c.bf16 %v3508, %v3496
    %v3641 = vpack.c.bf16 %v3509, %v3497
    %v3642 = vpack.c.bf16 %v3510, %v3498
    %v3643 = vpack.c.bf16 %v3511, %v3499
    %v3644 = vpack.c.bf16 %v3512, %v3500
    %v3645 = vpack.c.bf16 %v3513, %v3501
    %v3646 = vpack.c.bf16 %v3526, %v3514
    %v3647 = vpack.c.bf16 %v3527, %v3515
    %v3648 = vpack.c.bf16 %v3528, %v3516
    %v3649 = vpack.c.bf16 %v3529, %v3517
    %v3650 = vpack.c.bf16 %v3530, %v3518
    %v3651 = vpack.c.bf16 %v3531, %v3519
    %v3652 = vpack.c.bf16 %v3532, %v3520
    %v3653 = vpack.c.bf16 %v3533, %v3521
    %v3654 = vpack.c.bf16 %v3534, %v3522
    %v3655 = vpack.c.bf16 %v3535, %v3523
    %v3656 = vpack.c.bf16 %v3536, %v3524
    %v3657 = vpack.c.bf16 %v3537, %v3525
    %v3658 = vpack.c.bf16 %v3550, %v3538
    %v3659 = vpack.c.bf16 %v3551, %v3539
    %v3660 = vpack.c.bf16 %v3552, %v3540
    %v3661 = vpack.c.bf16 %v3553, %v3541
    %v3662 = vpack.c.bf16 %v3554, %v3542
    %v3663 = vpack.c.bf16 %v3555, %v3543
    %v3664 = vpack.c.bf16 %v3556, %v3544
    %v3665 = vpack.c.bf16 %v3557, %v3545
    %v3666 = vpack.c.bf16 %v3558, %v3546
    %v3667 = vpack.c.bf16 %v3559, %v3547
    %v3668 = vpack.c.bf16 %v3560, %v3548
    %v3669 = vpack.c.bf16 %v3561, %v3549
    %v3670 = vpack.c.bf16 %v3574, %v3562
    %v3671 = vpack.c.bf16 %v3575, %v3563
    %v3672 = vpack.c.bf16 %v3576, %v3564
    %v3673 = vpack.c.bf16 %v3577, %v3565
    %v3674 = vpack.c.bf16 %v3578, %v3566
    %v3675 = vpack.c.bf16 %v3579, %v3567
    %v3676 = vpack.c.bf16 %v3580, %v3568
    %v3677 = vpack.c.bf16 %v3581, %v3569
    %v3678 = vpack.c.bf16 %v3582, %v3570
    %v3679 = vpack.c.bf16 %v3583, %v3571
    %v3680 = vpack.c.bf16 %v3584, %v3572
    %v3681 = vpack.c.bf16 %v3585, %v3573
    %v3682 = vld [vmem:[#allocation8] sm:$0xff]
    %v3683 = vld [vmem:[#allocation8 + $0x8] sm:$0xf]
    %v3684 = vld [vmem:[#allocation8 + $0xc] sm:$0xff]
    %v3685 = vld [vmem:[#allocation8 + $0x14] sm:$0xf]
    %v3686 = vld [vmem:[#allocation8 + $0x18] sm:$0xff]
    %v3687 = vld [vmem:[#allocation8 + $0x20] sm:$0xf]
    %v3688 = vld [vmem:[#allocation8 + $0x24] sm:$0xff]
    %v3689 = vld [vmem:[#allocation8 + $0x2c] sm:$0xf]
    %v3690 = vld [vmem:[#allocation8 + $0x30] sm:$0xff]
    %v3691 = vld [vmem:[#allocation8 + $0x38] sm:$0xf]
    %v3692 = vld [vmem:[#allocation8 + $0x3c] sm:$0xff]
    %v3693 = vld [vmem:[#allocation8 + $0x44] sm:$0xf]
    %v3694 = vld [vmem:[#allocation8 + $0x48] sm:$0xff]
    %v3695 = vld [vmem:[#allocation8 + $0x50] sm:$0xf]
    %v3696 = vld [vmem:[#allocation8 + $0x54] sm:$0xff]
    %v3697 = vld [vmem:[#allocation8 + $0x5c] sm:$0xf]
    %v3698 = vld [vmem:[#allocation8 + $0x60] sm:$0xff]
    %v3699 = vld [vmem:[#allocation8 + $0x68] sm:$0xf]
    %v3700 = vld [vmem:[#allocation8 + $0x6c] sm:$0xff]
    %v3701 = vld [vmem:[#allocation8 + $0x74] sm:$0xf]
    %v3702 = vld [vmem:[#allocation8 + $0x78] sm:$0xff]
    %v3703 = vld [vmem:[#allocation8 + $0x80] sm:$0xf]
    %v3704 = vld [vmem:[#allocation8 + $0x84] sm:$0xff]
    %v3705 = vld [vmem:[#allocation8 + $0x8c] sm:$0xf]
    %v3706 = vld [vmem:[#allocation8 + $0x90] sm:$0xff]
    %v3707 = vld [vmem:[#allocation8 + $0x98] sm:$0xf]
    %v3708 = vld [vmem:[#allocation8 + $0x9c] sm:$0xff]
    %v3709 = vld [vmem:[#allocation8 + $0xa4] sm:$0xf]
    %v3710 = vld [vmem:[#allocation8 + $0xa8] sm:$0xff]
    %v3711 = vld [vmem:[#allocation8 + $0xb0] sm:$0xf]
    %v3712 = vld [vmem:[#allocation8 + $0xb4] sm:$0xff]
    %v3713 = vld [vmem:[#allocation8 + $0xbc] sm:$0xf]
    %v3714 = vld [vmem:[#allocation8 + $0xc0] sm:$0xff]
    %v3715 = vld [vmem:[#allocation8 + $0xc8] sm:$0xf]
    %v3716 = vld [vmem:[#allocation8 + $0xcc] sm:$0xff]
    %v3717 = vld [vmem:[#allocation8 + $0xd4] sm:$0xf]
    %v3718 = vld [vmem:[#allocation8 + $0xd8] sm:$0xff]
    %v3719 = vld [vmem:[#allocation8 + $0xe0] sm:$0xf]
    %v3720 = vld [vmem:[#allocation8 + $0xe4] sm:$0xff]
    %v3721 = vld [vmem:[#allocation8 + $0xec] sm:$0xf]
    %v3722 = vld [vmem:[#allocation8 + $0xf0] sm:$0xff]
    %v3723 = vld [vmem:[#allocation8 + $0xf8] sm:$0xf]
    %v3724 = vld [vmem:[#allocation8 + $0xfc] sm:$0xff]
    %v3725 = vld [vmem:[#allocation8 + $0x104] sm:$0xf]
    %v3726 = vld [vmem:[#allocation8 + $0x108] sm:$0xff]
    %v3727 = vld [vmem:[#allocation8 + $0x110] sm:$0xf]
    %v3728 = vld [vmem:[#allocation8 + $0x114] sm:$0xff]
    %v3729 = vld [vmem:[#allocation8 + $0x11c] sm:$0xf]
    %v3730 = vld [vmem:[#allocation8 + $0x120] sm:$0xff]
    %v3731 = vld [vmem:[#allocation8 + $0x128] sm:$0xf]
    %v3732 = vld [vmem:[#allocation8 + $0x12c] sm:$0xff]
    %v3733 = vld [vmem:[#allocation8 + $0x134] sm:$0xf]
    %v3734 = vld [vmem:[#allocation8 + $0x138] sm:$0xff]
    %v3735 = vld [vmem:[#allocation8 + $0x140] sm:$0xf]
    %v3736 = vld [vmem:[#allocation8 + $0x144] sm:$0xff]
    %v3737 = vld [vmem:[#allocation8 + $0x14c] sm:$0xf]
    %v3738 = vld [vmem:[#allocation8 + $0x150] sm:$0xff]
    %v3739 = vld [vmem:[#allocation8 + $0x158] sm:$0xf]
    %v3740 = vld [vmem:[#allocation8 + $0x15c] sm:$0xff]
    %v3741 = vld [vmem:[#allocation8 + $0x164] sm:$0xf]
    %v3742 = vld [vmem:[#allocation8 + $0x168] sm:$0xff]
    %v3743 = vld [vmem:[#allocation8 + $0x170] sm:$0xf]
    %v3744 = vld [vmem:[#allocation8 + $0x174] sm:$0xff]
    %v3745 = vld [vmem:[#allocation8 + $0x17c] sm:$0xf]
    %v3746 = vld [vmem:[#allocation8 + $0x180] sm:$0xff]
    %v3747 = vld [vmem:[#allocation8 + $0x188] sm:$0xf]
    %v3748 = vld [vmem:[#allocation8 + $0x18c] sm:$0xff]
    %v3749 = vld [vmem:[#allocation8 + $0x194] sm:$0xf]
    %v3750 = vld [vmem:[#allocation8 + $0x198] sm:$0xff]
    %v3751 = vld [vmem:[#allocation8 + $0x1a0] sm:$0xf]
    %v3752 = vld [vmem:[#allocation8 + $0x1a4] sm:$0xff]
    %v3753 = vld [vmem:[#allocation8 + $0x1ac] sm:$0xf]
    %v3754 = vld [vmem:[#allocation8 + $0x1b0] sm:$0xff]
    %v3755 = vld [vmem:[#allocation8 + $0x1b8] sm:$0xf]
    %v3756 = vld [vmem:[#allocation8 + $0x1bc] sm:$0xff]
    %v3757 = vld [vmem:[#allocation8 + $0x1c4] sm:$0xf]
    %v3758 = vld [vmem:[#allocation8 + $0x1c8] sm:$0xff]
    %v3759 = vld [vmem:[#allocation8 + $0x1d0] sm:$0xf]
    %v3760 = vld [vmem:[#allocation8 + $0x1d4] sm:$0xff]
    %v3761 = vld [vmem:[#allocation8 + $0x1dc] sm:$0xf]
    %v3762 = vld [vmem:[#allocation8 + $0x1e0] sm:$0xff]
    %v3763 = vld [vmem:[#allocation8 + $0x1e8] sm:$0xf]
    %v3764 = vld [vmem:[#allocation8 + $0x1ec] sm:$0xff]
    %v3765 = vld [vmem:[#allocation8 + $0x1f4] sm:$0xf]
    %v3766 = vld [vmem:[#allocation8 + $0x1f8] sm:$0xff]
    %v3767 = vld [vmem:[#allocation8 + $0x200] sm:$0xf]
    %v3768 = vld [vmem:[#allocation8 + $0x204] sm:$0xff]
    %v3769 = vld [vmem:[#allocation8 + $0x20c] sm:$0xf]
    %v3770 = vld [vmem:[#allocation8 + $0x210] sm:$0xff]
    %v3771 = vld [vmem:[#allocation8 + $0x218] sm:$0xf]
    %v3772 = vld [vmem:[#allocation8 + $0x21c] sm:$0xff]
    %v3773 = vld [vmem:[#allocation8 + $0x224] sm:$0xf]
    %v3774 = vld [vmem:[#allocation8 + $0x228] sm:$0xff]
    %v3775 = vld [vmem:[#allocation8 + $0x230] sm:$0xf]
    %v3776 = vld [vmem:[#allocation8 + $0x234] sm:$0xff]
    %v3777 = vld [vmem:[#allocation8 + $0x23c] sm:$0xf]
    %v3778 = vld [vmem:[#allocation8 + $0x240] sm:$0xff]
    %v3779 = vld [vmem:[#allocation8 + $0x248] sm:$0xf]
    %v3780 = vld [vmem:[#allocation8 + $0x24c] sm:$0xff]
    %v3781 = vld [vmem:[#allocation8 + $0x254] sm:$0xf]
    %v3782 = vld [vmem:[#allocation8 + $0x258] sm:$0xff]
    %v3783 = vld [vmem:[#allocation8 + $0x260] sm:$0xf]
    %v3784 = vld [vmem:[#allocation8 + $0x264] sm:$0xff]
    %v3785 = vld [vmem:[#allocation8 + $0x26c] sm:$0xf]
    %v3786 = vld [vmem:[#allocation8 + $0x270] sm:$0xff]
    %v3787 = vld [vmem:[#allocation8 + $0x278] sm:$0xf]
    %v3788 = vld [vmem:[#allocation8 + $0x27c] sm:$0xff]
    %v3789 = vld [vmem:[#allocation8 + $0x284] sm:$0xf]
    %v3790 = vld [vmem:[#allocation8 + $0x288] sm:$0xff]
    %v3791 = vld [vmem:[#allocation8 + $0x290] sm:$0xf]
    %v3792 = vld [vmem:[#allocation8 + $0x294] sm:$0xff]
    %v3793 = vld [vmem:[#allocation8 + $0x29c] sm:$0xf]
    %v3794 = vld [vmem:[#allocation8 + $0x2a0] sm:$0xff]
    %v3795 = vld [vmem:[#allocation8 + $0x2a8] sm:$0xf]
    %v3796 = vld [vmem:[#allocation8 + $0x2ac] sm:$0xff]
    %v3797 = vld [vmem:[#allocation8 + $0x2b4] sm:$0xf]
    %v3798 = vld [vmem:[#allocation8 + $0x2b8] sm:$0xff]
    %v3799 = vld [vmem:[#allocation8 + $0x2c0] sm:$0xf]
    %v3800 = vld [vmem:[#allocation8 + $0x2c4] sm:$0xff]
    %v3801 = vld [vmem:[#allocation8 + $0x2cc] sm:$0xf]
    %v3802 = vld [vmem:[#allocation8 + $0x2d0] sm:$0xff]
    %v3803 = vld [vmem:[#allocation8 + $0x2d8] sm:$0xf]
    %v3804 = vld [vmem:[#allocation8 + $0x2dc] sm:$0xff]
    %v3805 = vld [vmem:[#allocation8 + $0x2e4] sm:$0xf]
    %v3806 = vld [vmem:[#allocation8 + $0x2e8] sm:$0xff]
    %v3807 = vld [vmem:[#allocation8 + $0x2f0] sm:$0xf]
    %v3808 = vld [vmem:[#allocation8 + $0x2f4] sm:$0xff]
    %v3809 = vld [vmem:[#allocation8 + $0x2fc] sm:$0xf]
    %v3810 = vld [vmem:[#allocation8 + $0x300] sm:$0xff]
    %v3811 = vld [vmem:[#allocation8 + $0x308] sm:$0xf]
    %v3812 = vld [vmem:[#allocation8 + $0x30c] sm:$0xff]
    %v3813 = vld [vmem:[#allocation8 + $0x314] sm:$0xf]
    %v3814 = vld [vmem:[#allocation8 + $0x318] sm:$0xff]
    %v3815 = vld [vmem:[#allocation8 + $0x320] sm:$0xf]
    %v3816 = vld [vmem:[#allocation8 + $0x324] sm:$0xff]
    %v3817 = vld [vmem:[#allocation8 + $0x32c] sm:$0xf]
    %v3818 = vld [vmem:[#allocation8 + $0x330] sm:$0xff]
    %v3819 = vld [vmem:[#allocation8 + $0x338] sm:$0xf]
    %v3820 = vld [vmem:[#allocation8 + $0x33c] sm:$0xff]
    %v3821 = vld [vmem:[#allocation8 + $0x344] sm:$0xf]
    %v3822 = vld [vmem:[#allocation8 + $0x348] sm:$0xff]
    %v3823 = vld [vmem:[#allocation8 + $0x350] sm:$0xf]
    %v3824 = vld [vmem:[#allocation8 + $0x354] sm:$0xff]
    %v3825 = vld [vmem:[#allocation8 + $0x35c] sm:$0xf]
    %v3826 = vld [vmem:[#allocation8 + $0x360] sm:$0xff]
    %v3827 = vld [vmem:[#allocation8 + $0x368] sm:$0xf]
    %v3828 = vld [vmem:[#allocation8 + $0x36c] sm:$0xff]
    %v3829 = vld [vmem:[#allocation8 + $0x374] sm:$0xf]
    %v3830 = vld [vmem:[#allocation8 + $0x378] sm:$0xff]
    %v3831 = vld [vmem:[#allocation8 + $0x380] sm:$0xf]
    %v3832 = vld [vmem:[#allocation8 + $0x384] sm:$0xff]
    %v3833 = vld [vmem:[#allocation8 + $0x38c] sm:$0xf]
    %v3834 = vld [vmem:[#allocation8 + $0x390] sm:$0xff]
    %v3835 = vld [vmem:[#allocation8 + $0x398] sm:$0xf]
    %v3836 = vld [vmem:[#allocation8 + $0x39c] sm:$0xff]
    %v3837 = vld [vmem:[#allocation8 + $0x3a4] sm:$0xf]
    %v3838 = vld [vmem:[#allocation8 + $0x3a8] sm:$0xff]
    %v3839 = vld [vmem:[#allocation8 + $0x3b0] sm:$0xf]
    %v3840 = vld [vmem:[#allocation8 + $0x3b4] sm:$0xff]
    %v3841 = vld [vmem:[#allocation8 + $0x3bc] sm:$0xf]
    %v3842 = vld [vmem:[#allocation8 + $0x3c0] sm:$0xff]
    %v3843 = vld [vmem:[#allocation8 + $0x3c8] sm:$0xf]
    %v3844 = vld [vmem:[#allocation8 + $0x3cc] sm:$0xff]
    %v3845 = vld [vmem:[#allocation8 + $0x3d4] sm:$0xf]
    %v3846 = vld [vmem:[#allocation8 + $0x3d8] sm:$0xff]
    %v3847 = vld [vmem:[#allocation8 + $0x3e0] sm:$0xf]
    %v3848 = vld [vmem:[#allocation8 + $0x3e4] sm:$0xff]
    %v3849 = vld [vmem:[#allocation8 + $0x3ec] sm:$0xf]
    %v3850 = vld [vmem:[#allocation8 + $0x3f0] sm:$0xff]
    %v3851 = vld [vmem:[#allocation8 + $0x3f8] sm:$0xf]
    %v3852 = vld [vmem:[#allocation8 + $0x3fc] sm:$0xff]
    %v3853 = vld [vmem:[#allocation8 + $0x404] sm:$0xf]
    %v3854 = vld [vmem:[#allocation8 + $0x408] sm:$0xff]
    %v3855 = vld [vmem:[#allocation8 + $0x410] sm:$0xf]
    %v3856 = vld [vmem:[#allocation8 + $0x414] sm:$0xff]
    %v3857 = vld [vmem:[#allocation8 + $0x41c] sm:$0xf]
    %v3858 = vld [vmem:[#allocation8 + $0x420] sm:$0xff]
    %v3859 = vld [vmem:[#allocation8 + $0x428] sm:$0xf]
    %v3860 = vld [vmem:[#allocation8 + $0x42c] sm:$0xff]
    %v3861 = vld [vmem:[#allocation8 + $0x434] sm:$0xf]
    %v3862 = vld [vmem:[#allocation8 + $0x438] sm:$0xff]
    %v3863 = vld [vmem:[#allocation8 + $0x440] sm:$0xf]
    %v3864 = vld [vmem:[#allocation8 + $0x444] sm:$0xff]
    %v3865 = vld [vmem:[#allocation8 + $0x44c] sm:$0xf]
    %v3866 = vld [vmem:[#allocation8 + $0x450] sm:$0xff]
    %v3867 = vld [vmem:[#allocation8 + $0x458] sm:$0xf]
    %v3868 = vld [vmem:[#allocation8 + $0x45c] sm:$0xff]
    %v3869 = vld [vmem:[#allocation8 + $0x464] sm:$0xf]
    %v3870 = vld [vmem:[#allocation8 + $0x468] sm:$0xff]
    %v3871 = vld [vmem:[#allocation8 + $0x470] sm:$0xf]
    %v3872 = vld [vmem:[#allocation8 + $0x474] sm:$0xff]
    %v3873 = vld [vmem:[#allocation8 + $0x47c] sm:$0xf]
    %v3874 = vld [vmem:[#allocation8 + $0x480] sm:$0xff]
    %v3875 = vld [vmem:[#allocation8 + $0x488] sm:$0xf]
    %v3876 = vld [vmem:[#allocation8 + $0x48c] sm:$0xff]
    %v3877 = vld [vmem:[#allocation8 + $0x494] sm:$0xf]
    %v3878 = vld [vmem:[#allocation8 + $0x498] sm:$0xff]
    %v3879 = vld [vmem:[#allocation8 + $0x4a0] sm:$0xf]
    %v3880 = vld [vmem:[#allocation8 + $0x4a4] sm:$0xff]
    %v3881 = vld [vmem:[#allocation8 + $0x4ac] sm:$0xf]
    %v3882 = vld [vmem:[#allocation8 + $0x4b0] sm:$0xff]
    %v3883 = vld [vmem:[#allocation8 + $0x4b8] sm:$0xf]
    %v3884 = vld [vmem:[#allocation8 + $0x4bc] sm:$0xff]
    %v3885 = vld [vmem:[#allocation8 + $0x4c4] sm:$0xf]
    %v3886 = vld [vmem:[#allocation8 + $0x4c8] sm:$0xff]
    %v3887 = vld [vmem:[#allocation8 + $0x4d0] sm:$0xf]
    %v3888 = vld [vmem:[#allocation8 + $0x4d4] sm:$0xff]
    %v3889 = vld [vmem:[#allocation8 + $0x4dc] sm:$0xf]
    %v3890 = vld [vmem:[#allocation8 + $0x4e0] sm:$0xff]
    %v3891 = vld [vmem:[#allocation8 + $0x4e8] sm:$0xf]
    %v3892 = vld [vmem:[#allocation8 + $0x4ec] sm:$0xff]
    %v3893 = vld [vmem:[#allocation8 + $0x4f4] sm:$0xf]
    %v3894 = vld [vmem:[#allocation8 + $0x4f8] sm:$0xff]
    %v3895 = vld [vmem:[#allocation8 + $0x500] sm:$0xf]
    %v3896 = vld [vmem:[#allocation8 + $0x504] sm:$0xff]
    %v3897 = vld [vmem:[#allocation8 + $0x50c] sm:$0xf]
    %v3898 = vld [vmem:[#allocation8 + $0x510] sm:$0xff]
    %v3899 = vld [vmem:[#allocation8 + $0x518] sm:$0xf]
    %v3900 = vld [vmem:[#allocation8 + $0x51c] sm:$0xff]
    %v3901 = vld [vmem:[#allocation8 + $0x524] sm:$0xf]
    %v3902 = vld [vmem:[#allocation8 + $0x528] sm:$0xff]
    %v3903 = vld [vmem:[#allocation8 + $0x530] sm:$0xf]
    %v3904 = vld [vmem:[#allocation8 + $0x534] sm:$0xff]
    %v3905 = vld [vmem:[#allocation8 + $0x53c] sm:$0xf]
    %v3906 = vld [vmem:[#allocation8 + $0x540] sm:$0xff]
    %v3907 = vld [vmem:[#allocation8 + $0x548] sm:$0xf]
    %v3908 = vld [vmem:[#allocation8 + $0x54c] sm:$0xff]
    %v3909 = vld [vmem:[#allocation8 + $0x554] sm:$0xf]
    %v3910 = vld [vmem:[#allocation8 + $0x558] sm:$0xff]
    %v3911 = vld [vmem:[#allocation8 + $0x560] sm:$0xf]
    %v3912 = vld [vmem:[#allocation8 + $0x564] sm:$0xff]
    %v3913 = vld [vmem:[#allocation8 + $0x56c] sm:$0xf]
    %v3914 = vld [vmem:[#allocation8 + $0x570] sm:$0xff]
    %v3915 = vld [vmem:[#allocation8 + $0x578] sm:$0xf]
    %v3916 = vld [vmem:[#allocation8 + $0x57c] sm:$0xff]
    %v3917 = vld [vmem:[#allocation8 + $0x584] sm:$0xf]
    %v3918 = vld [vmem:[#allocation8 + $0x588] sm:$0xff]
    %v3919 = vld [vmem:[#allocation8 + $0x590] sm:$0xf]
    %v3920 = vld [vmem:[#allocation8 + $0x594] sm:$0xff]
    %v3921 = vld [vmem:[#allocation8 + $0x59c] sm:$0xf]
    %v3922 = vld [vmem:[#allocation8 + $0x5a0] sm:$0xff]
    %v3923 = vld [vmem:[#allocation8 + $0x5a8] sm:$0xf]
    %v3924 = vld [vmem:[#allocation8 + $0x5ac] sm:$0xff]
    %v3925 = vld [vmem:[#allocation8 + $0x5b4] sm:$0xf]
    %v3926 = vld [vmem:[#allocation8 + $0x5b8] sm:$0xff]
    %v3927 = vld [vmem:[#allocation8 + $0x5c0] sm:$0xf]
    %v3928 = vld [vmem:[#allocation8 + $0x5c4] sm:$0xff]
    %v3929 = vld [vmem:[#allocation8 + $0x5cc] sm:$0xf]
    %v3930 = vld [vmem:[#allocation8 + $0x5d0] sm:$0xff]
    %v3931 = vld [vmem:[#allocation8 + $0x5d8] sm:$0xf]
    %v3932 = vld [vmem:[#allocation8 + $0x5dc] sm:$0xff]
    %v3933 = vld [vmem:[#allocation8 + $0x5e4] sm:$0xf]
    %v3934 = vld [vmem:[#allocation8 + $0x5e8] sm:$0xff]
    %v3935 = vld [vmem:[#allocation8 + $0x5f0] sm:$0xf]
    %v3936 = vld [vmem:[#allocation8 + $0x5f4] sm:$0xff]
    %v3937 = vld [vmem:[#allocation8 + $0x5fc] sm:$0xf]
    %v3938 = vld [vmem:[#allocation8 + $0x600] sm:$0xff]
    %v3939 = vld [vmem:[#allocation8 + $0x608] sm:$0xf]
    %v3940 = vld [vmem:[#allocation8 + $0x60c] sm:$0xff]
    %v3941 = vld [vmem:[#allocation8 + $0x614] sm:$0xf]
    %v3942 = vld [vmem:[#allocation8 + $0x618] sm:$0xff]
    %v3943 = vld [vmem:[#allocation8 + $0x620] sm:$0xf]
    %v3944 = vld [vmem:[#allocation8 + $0x624] sm:$0xff]
    %v3945 = vld [vmem:[#allocation8 + $0x62c] sm:$0xf]
    %v3946 = vld [vmem:[#allocation8 + $0x630] sm:$0xff]
    %v3947 = vld [vmem:[#allocation8 + $0x638] sm:$0xf]
    %v3948 = vld [vmem:[#allocation8 + $0x63c] sm:$0xff]
    %v3949 = vld [vmem:[#allocation8 + $0x644] sm:$0xf]
    %v3950 = vld [vmem:[#allocation8 + $0x648] sm:$0xff]
    %v3951 = vld [vmem:[#allocation8 + $0x650] sm:$0xf]
    %v3952 = vld [vmem:[#allocation8 + $0x654] sm:$0xff]
    %v3953 = vld [vmem:[#allocation8 + $0x65c] sm:$0xf]
    %v3954 = vld [vmem:[#allocation8 + $0x660] sm:$0xff]
    %v3955 = vld [vmem:[#allocation8 + $0x668] sm:$0xf]
    %v3956 = vld [vmem:[#allocation8 + $0x66c] sm:$0xff]
    %v3957 = vld [vmem:[#allocation8 + $0x674] sm:$0xf]
    %v3958 = vld [vmem:[#allocation8 + $0x678] sm:$0xff]
    %v3959 = vld [vmem:[#allocation8 + $0x680] sm:$0xf]
    %v3960 = vld [vmem:[#allocation8 + $0x684] sm:$0xff]
    %v3961 = vld [vmem:[#allocation8 + $0x68c] sm:$0xf]
    %v3962 = vld [vmem:[#allocation8 + $0x690] sm:$0xff]
    %v3963 = vld [vmem:[#allocation8 + $0x698] sm:$0xf]
    %v3964 = vld [vmem:[#allocation8 + $0x69c] sm:$0xff]
    %v3965 = vld [vmem:[#allocation8 + $0x6a4] sm:$0xf]
    %v3966 = vld [vmem:[#allocation8 + $0x6a8] sm:$0xff]
    %v3967 = vld [vmem:[#allocation8 + $0x6b0] sm:$0xf]
    %v3968 = vld [vmem:[#allocation8 + $0x6b4] sm:$0xff]
    %v3969 = vld [vmem:[#allocation8 + $0x6bc] sm:$0xf]
    %v3970 = vld [vmem:[#allocation8 + $0x6c0] sm:$0xff]
    %v3971 = vld [vmem:[#allocation8 + $0x6c8] sm:$0xf]
    %v3972 = vld [vmem:[#allocation8 + $0x6cc] sm:$0xff]
    %v3973 = vld [vmem:[#allocation8 + $0x6d4] sm:$0xf]
    %v3974 = vld [vmem:[#allocation8 + $0x6d8] sm:$0xff]
    %v3975 = vld [vmem:[#allocation8 + $0x6e0] sm:$0xf]
    %v3976 = vld [vmem:[#allocation8 + $0x6e4] sm:$0xff]
    %v3977 = vld [vmem:[#allocation8 + $0x6ec] sm:$0xf]
    %v3978 = vld [vmem:[#allocation8 + $0x6f0] sm:$0xff]
    %v3979 = vld [vmem:[#allocation8 + $0x6f8] sm:$0xf]
    %v3980 = vld [vmem:[#allocation8 + $0x6fc] sm:$0xff]
    %v3981 = vld [vmem:[#allocation8 + $0x704] sm:$0xf]
    %v3982 = vld [vmem:[#allocation8 + $0x708] sm:$0xff]
    %v3983 = vld [vmem:[#allocation8 + $0x710] sm:$0xf]
    %v3984 = vld [vmem:[#allocation8 + $0x714] sm:$0xff]
    %v3985 = vld [vmem:[#allocation8 + $0x71c] sm:$0xf]
    %v3986 = vld [vmem:[#allocation8 + $0x720] sm:$0xff]
    %v3987 = vld [vmem:[#allocation8 + $0x728] sm:$0xf]
    %v3988 = vld [vmem:[#allocation8 + $0x72c] sm:$0xff]
    %v3989 = vld [vmem:[#allocation8 + $0x734] sm:$0xf]
    %v3990 = vld [vmem:[#allocation8 + $0x738] sm:$0xff]
    %v3991 = vld [vmem:[#allocation8 + $0x740] sm:$0xf]
    %v3992 = vld [vmem:[#allocation8 + $0x744] sm:$0xff]
    %v3993 = vld [vmem:[#allocation8 + $0x74c] sm:$0xf]
    %v3994 = vld [vmem:[#allocation8 + $0x750] sm:$0xff]
    %v3995 = vld [vmem:[#allocation8 + $0x758] sm:$0xf]
    %v3996 = vld [vmem:[#allocation8 + $0x75c] sm:$0xff]
    %v3997 = vld [vmem:[#allocation8 + $0x764] sm:$0xf]
    %v3998 = vld [vmem:[#allocation8 + $0x768] sm:$0xff]
    %v3999 = vld [vmem:[#allocation8 + $0x770] sm:$0xf]
    %v4000 = vld [vmem:[#allocation8 + $0x774] sm:$0xff]
    %v4001 = vld [vmem:[#allocation8 + $0x77c] sm:$0xf]
    %v4002 = vld [vmem:[#allocation8 + $0x780] sm:$0xff]
    %v4003 = vld [vmem:[#allocation8 + $0x788] sm:$0xf]
    %v4004 = vld [vmem:[#allocation8 + $0x78c] sm:$0xff]
    %v4005 = vld [vmem:[#allocation8 + $0x794] sm:$0xf]
    %v4006 = vld [vmem:[#allocation8 + $0x798] sm:$0xff]
    %v4007 = vld [vmem:[#allocation8 + $0x7a0] sm:$0xf]
    %v4008 = vld [vmem:[#allocation8 + $0x7a4] sm:$0xff]
    %v4009 = vld [vmem:[#allocation8 + $0x7ac] sm:$0xf]
    %v4010 = vld [vmem:[#allocation8 + $0x7b0] sm:$0xff]
    %v4011 = vld [vmem:[#allocation8 + $0x7b8] sm:$0xf]
    %v4012 = vld [vmem:[#allocation8 + $0x7bc] sm:$0xff]
    %v4013 = vld [vmem:[#allocation8 + $0x7c4] sm:$0xf]
    %v4014 = vld [vmem:[#allocation8 + $0x7c8] sm:$0xff]
    %v4015 = vld [vmem:[#allocation8 + $0x7d0] sm:$0xf]
    %v4016 = vld [vmem:[#allocation8 + $0x7d4] sm:$0xff]
    %v4017 = vld [vmem:[#allocation8 + $0x7dc] sm:$0xf]
    %v4018 = vld [vmem:[#allocation8 + $0x7e0] sm:$0xff]
    %v4019 = vld [vmem:[#allocation8 + $0x7e8] sm:$0xf]
    %v4020 = vld [vmem:[#allocation8 + $0x7ec] sm:$0xff]
    %v4021 = vld [vmem:[#allocation8 + $0x7f4] sm:$0xf]
    %v4022 = vld [vmem:[#allocation8 + $0x7f8] sm:$0xff]
    %v4023 = vld [vmem:[#allocation8 + $0x800] sm:$0xf]
    %v4024 = vld [vmem:[#allocation8 + $0x804] sm:$0xff]
    %v4025 = vld [vmem:[#allocation8 + $0x80c] sm:$0xf]
    %v4026 = vld [vmem:[#allocation8 + $0x810] sm:$0xff]
    %v4027 = vld [vmem:[#allocation8 + $0x818] sm:$0xf]
    %v4028 = vld [vmem:[#allocation8 + $0x81c] sm:$0xff]
    %v4029 = vld [vmem:[#allocation8 + $0x824] sm:$0xf]
    %v4030 = vld [vmem:[#allocation8 + $0x828] sm:$0xff]
    %v4031 = vld [vmem:[#allocation8 + $0x830] sm:$0xf]
    %v4032 = vld [vmem:[#allocation8 + $0x834] sm:$0xff]
    %v4033 = vld [vmem:[#allocation8 + $0x83c] sm:$0xf]
    %v4034 = vld [vmem:[#allocation8 + $0x840] sm:$0xff]
    %v4035 = vld [vmem:[#allocation8 + $0x848] sm:$0xf]
    %v4036 = vld [vmem:[#allocation8 + $0x84c] sm:$0xff]
    %v4037 = vld [vmem:[#allocation8 + $0x854] sm:$0xf]
    %v4038 = vld [vmem:[#allocation8 + $0x858] sm:$0xff]
    %v4039 = vld [vmem:[#allocation8 + $0x860] sm:$0xf]
    %v4040 = vld [vmem:[#allocation8 + $0x864] sm:$0xff]
    %v4041 = vld [vmem:[#allocation8 + $0x86c] sm:$0xf]
    %v4042 = vld [vmem:[#allocation8 + $0x870] sm:$0xff]
    %v4043 = vld [vmem:[#allocation8 + $0x878] sm:$0xf]
    %v4044 = vld [vmem:[#allocation8 + $0x87c] sm:$0xff]
    %v4045 = vld [vmem:[#allocation8 + $0x884] sm:$0xf]
    %v4046 = vld [vmem:[#allocation8 + $0x888] sm:$0xff]
    %v4047 = vld [vmem:[#allocation8 + $0x890] sm:$0xf]
    %v4048 = vld [vmem:[#allocation8 + $0x894] sm:$0xff]
    %v4049 = vld [vmem:[#allocation8 + $0x89c] sm:$0xf]
    %v4050 = vld [vmem:[#allocation8 + $0x8a0] sm:$0xff]
    %v4051 = vld [vmem:[#allocation8 + $0x8a8] sm:$0xf]
    %v4052 = vld [vmem:[#allocation8 + $0x8ac] sm:$0xff]
    %v4053 = vld [vmem:[#allocation8 + $0x8b4] sm:$0xf]
    %v4054 = vld [vmem:[#allocation8 + $0x8b8] sm:$0xff]
    %v4055 = vld [vmem:[#allocation8 + $0x8c0] sm:$0xf]
    %v4056 = vld [vmem:[#allocation8 + $0x8c4] sm:$0xff]
    %v4057 = vld [vmem:[#allocation8 + $0x8cc] sm:$0xf]
    %v4058 = vld [vmem:[#allocation8 + $0x8d0] sm:$0xff]
    %v4059 = vld [vmem:[#allocation8 + $0x8d8] sm:$0xf]
    %v4060 = vld [vmem:[#allocation8 + $0x8dc] sm:$0xff]
    %v4061 = vld [vmem:[#allocation8 + $0x8e4] sm:$0xf]
    %v4062 = vld [vmem:[#allocation8 + $0x8e8] sm:$0xff]
    %v4063 = vld [vmem:[#allocation8 + $0x8f0] sm:$0xf]
    %v4064 = vld [vmem:[#allocation8 + $0x8f4] sm:$0xff]
    %v4065 = vld [vmem:[#allocation8 + $0x8fc] sm:$0xf]
    %v4066 = vld [vmem:[#allocation10] sm:$0x7]
    %v4068 = vlaneseq
    %v4069 = vshrl.u32 %v4068, 7
    %v4070 = vsub.s32 0, %v4069
    %v4071 = vrot.slane %v4066, %v4070
    %v4072 = vlaneseq
    %v4073 = vshrl.u32 %v4072, 7
    %v4074 = vsub.s32 1, %v4073
    %v4075 = vrot.slane %v4066, %v4074
    %v4076 = vlaneseq
    %v4077 = vshrl.u32 %v4076, 7
    %v4078 = vsub.s32 2, %v4077
    %v4079 = vrot.slane %v4066, %v4078
    %v4467 = vunpack.c.l.b16 %v3682
    %v4468 = vunpack.c.h.b16 %v3682
    %v4469 = vunpack.c.l.b16 %v3683
    %v4470 = vunpack.c.l.b16 %v3684
    %v4471 = vunpack.c.h.b16 %v3684
    %v4472 = vunpack.c.l.b16 %v3685
    %v4473 = vunpack.c.l.b16 %v3686
    %v4474 = vunpack.c.h.b16 %v3686
    %v4475 = vunpack.c.l.b16 %v3687
    %v4476 = vunpack.c.l.b16 %v3688
    %v4477 = vunpack.c.h.b16 %v3688
    %v4478 = vunpack.c.l.b16 %v3689
    %v4479 = vunpack.c.l.b16 %v3690
    %v4480 = vunpack.c.h.b16 %v3690
    %v4481 = vunpack.c.l.b16 %v3691
    %v4482 = vunpack.c.l.b16 %v3692
    %v4483 = vunpack.c.h.b16 %v3692
    %v4484 = vunpack.c.l.b16 %v3693
    %v4485 = vunpack.c.l.b16 %v3694
    %v4486 = vunpack.c.h.b16 %v3694
    %v4487 = vunpack.c.l.b16 %v3695
    %v4488 = vunpack.c.l.b16 %v3696
    %v4489 = vunpack.c.h.b16 %v3696
    %v4490 = vunpack.c.l.b16 %v3697
    %v4491 = vunpack.c.l.b16 %v3698
    %v4492 = vunpack.c.h.b16 %v3698
    %v4493 = vunpack.c.l.b16 %v3699
    %v4494 = vunpack.c.l.b16 %v3700
    %v4495 = vunpack.c.h.b16 %v3700
    %v4496 = vunpack.c.l.b16 %v3701
    %v4497 = vunpack.c.l.b16 %v3702
    %v4498 = vunpack.c.h.b16 %v3702
    %v4499 = vunpack.c.l.b16 %v3703
    %v4500 = vunpack.c.l.b16 %v3704
    %v4501 = vunpack.c.h.b16 %v3704
    %v4502 = vunpack.c.l.b16 %v3705
    %v4503 = vunpack.c.l.b16 %v3706
    %v4504 = vunpack.c.h.b16 %v3706
    %v4505 = vunpack.c.l.b16 %v3707
    %v4506 = vunpack.c.l.b16 %v3708
    %v4507 = vunpack.c.h.b16 %v3708
    %v4508 = vunpack.c.l.b16 %v3709
    %v4509 = vunpack.c.l.b16 %v3710
    %v4510 = vunpack.c.h.b16 %v3710
    %v4511 = vunpack.c.l.b16 %v3711
    %v4512 = vunpack.c.l.b16 %v3712
    %v4513 = vunpack.c.h.b16 %v3712
    %v4514 = vunpack.c.l.b16 %v3713
    %v4515 = vunpack.c.l.b16 %v3714
    %v4516 = vunpack.c.h.b16 %v3714
    %v4517 = vunpack.c.l.b16 %v3715
    %v4518 = vunpack.c.l.b16 %v3716
    %v4519 = vunpack.c.h.b16 %v3716
    %v4520 = vunpack.c.l.b16 %v3717
    %v4521 = vunpack.c.l.b16 %v3718
    %v4522 = vunpack.c.h.b16 %v3718
    %v4523 = vunpack.c.l.b16 %v3719
    %v4524 = vunpack.c.l.b16 %v3720
    %v4525 = vunpack.c.h.b16 %v3720
    %v4526 = vunpack.c.l.b16 %v3721
    %v4527 = vunpack.c.l.b16 %v3722
    %v4528 = vunpack.c.h.b16 %v3722
    %v4529 = vunpack.c.l.b16 %v3723
    %v4530 = vunpack.c.l.b16 %v3724
    %v4531 = vunpack.c.h.b16 %v3724
    %v4532 = vunpack.c.l.b16 %v3725
    %v4533 = vunpack.c.l.b16 %v3726
    %v4534 = vunpack.c.h.b16 %v3726
    %v4535 = vunpack.c.l.b16 %v3727
    %v4536 = vunpack.c.l.b16 %v3728
    %v4537 = vunpack.c.h.b16 %v3728
    %v4538 = vunpack.c.l.b16 %v3729
    %v4539 = vunpack.c.l.b16 %v3730
    %v4540 = vunpack.c.h.b16 %v3730
    %v4541 = vunpack.c.l.b16 %v3731
    %v4542 = vunpack.c.l.b16 %v3732
    %v4543 = vunpack.c.h.b16 %v3732
    %v4544 = vunpack.c.l.b16 %v3733
    %v4545 = vunpack.c.l.b16 %v3734
    %v4546 = vunpack.c.h.b16 %v3734
    %v4547 = vunpack.c.l.b16 %v3735
    %v4548 = vunpack.c.l.b16 %v3736
    %v4549 = vunpack.c.h.b16 %v3736
    %v4550 = vunpack.c.l.b16 %v3737
    %v4551 = vunpack.c.l.b16 %v3738
    %v4552 = vunpack.c.h.b16 %v3738
    %v4553 = vunpack.c.l.b16 %v3739
    %v4554 = vunpack.c.l.b16 %v3740
    %v4555 = vunpack.c.h.b16 %v3740
    %v4556 = vunpack.c.l.b16 %v3741
    %v4557 = vunpack.c.l.b16 %v3742
    %v4558 = vunpack.c.h.b16 %v3742
    %v4559 = vunpack.c.l.b16 %v3743
    %v4560 = vunpack.c.l.b16 %v3744
    %v4561 = vunpack.c.h.b16 %v3744
    %v4562 = vunpack.c.l.b16 %v3745
    %v4563 = vunpack.c.l.b16 %v3746
    %v4564 = vunpack.c.h.b16 %v3746
    %v4565 = vunpack.c.l.b16 %v3747
    %v4566 = vunpack.c.l.b16 %v3748
    %v4567 = vunpack.c.h.b16 %v3748
    %v4568 = vunpack.c.l.b16 %v3749
    %v4569 = vunpack.c.l.b16 %v3750
    %v4570 = vunpack.c.h.b16 %v3750
    %v4571 = vunpack.c.l.b16 %v3751
    %v4572 = vunpack.c.l.b16 %v3752
    %v4573 = vunpack.c.h.b16 %v3752
    %v4574 = vunpack.c.l.b16 %v3753
    %v4575 = vunpack.c.l.b16 %v3754
    %v4576 = vunpack.c.h.b16 %v3754
    %v4577 = vunpack.c.l.b16 %v3755
    %v4578 = vunpack.c.l.b16 %v3756
    %v4579 = vunpack.c.h.b16 %v3756
    %v4580 = vunpack.c.l.b16 %v3757
    %v4581 = vunpack.c.l.b16 %v3758
    %v4582 = vunpack.c.h.b16 %v3758
    %v4583 = vunpack.c.l.b16 %v3759
    %v4584 = vunpack.c.l.b16 %v3760
    %v4585 = vunpack.c.h.b16 %v3760
    %v4586 = vunpack.c.l.b16 %v3761
    %v4587 = vunpack.c.l.b16 %v3762
    %v4588 = vunpack.c.h.b16 %v3762
    %v4589 = vunpack.c.l.b16 %v3763
    %v4590 = vunpack.c.l.b16 %v3764
    %v4591 = vunpack.c.h.b16 %v3764
    %v4592 = vunpack.c.l.b16 %v3765
    %v4593 = vunpack.c.l.b16 %v3766
    %v4594 = vunpack.c.h.b16 %v3766
    %v4595 = vunpack.c.l.b16 %v3767
    %v4596 = vunpack.c.l.b16 %v3768
    %v4597 = vunpack.c.h.b16 %v3768
    %v4598 = vunpack.c.l.b16 %v3769
    %v4599 = vunpack.c.l.b16 %v3770
    %v4600 = vunpack.c.h.b16 %v3770
    %v4601 = vunpack.c.l.b16 %v3771
    %v4602 = vunpack.c.l.b16 %v3772
    %v4603 = vunpack.c.h.b16 %v3772
    %v4604 = vunpack.c.l.b16 %v3773
    %v4605 = vunpack.c.l.b16 %v3774
    %v4606 = vunpack.c.h.b16 %v3774
    %v4607 = vunpack.c.l.b16 %v3775
    %v4608 = vunpack.c.l.b16 %v3776
    %v4609 = vunpack.c.h.b16 %v3776
    %v4610 = vunpack.c.l.b16 %v3777
    %v4611 = vunpack.c.l.b16 %v3778
    %v4612 = vunpack.c.h.b16 %v3778
    %v4613 = vunpack.c.l.b16 %v3779
    %v4614 = vunpack.c.l.b16 %v3780
    %v4615 = vunpack.c.h.b16 %v3780
    %v4616 = vunpack.c.l.b16 %v3781
    %v4617 = vunpack.c.l.b16 %v3782
    %v4618 = vunpack.c.h.b16 %v3782
    %v4619 = vunpack.c.l.b16 %v3783
    %v4620 = vunpack.c.l.b16 %v3784
    %v4621 = vunpack.c.h.b16 %v3784
    %v4622 = vunpack.c.l.b16 %v3785
    %v4623 = vunpack.c.l.b16 %v3786
    %v4624 = vunpack.c.h.b16 %v3786
    %v4625 = vunpack.c.l.b16 %v3787
    %v4626 = vunpack.c.l.b16 %v3788
    %v4627 = vunpack.c.h.b16 %v3788
    %v4628 = vunpack.c.l.b16 %v3789
    %v4629 = vunpack.c.l.b16 %v3790
    %v4630 = vunpack.c.h.b16 %v3790
    %v4631 = vunpack.c.l.b16 %v3791
    %v4632 = vunpack.c.l.b16 %v3792
    %v4633 = vunpack.c.h.b16 %v3792
    %v4634 = vunpack.c.l.b16 %v3793
    %v4635 = vunpack.c.l.b16 %v3794
    %v4636 = vunpack.c.h.b16 %v3794
    %v4637 = vunpack.c.l.b16 %v3795
    %v4638 = vunpack.c.l.b16 %v3796
    %v4639 = vunpack.c.h.b16 %v3796
    %v4640 = vunpack.c.l.b16 %v3797
    %v4641 = vunpack.c.l.b16 %v3798
    %v4642 = vunpack.c.h.b16 %v3798
    %v4643 = vunpack.c.l.b16 %v3799
    %v4644 = vunpack.c.l.b16 %v3800
    %v4645 = vunpack.c.h.b16 %v3800
    %v4646 = vunpack.c.l.b16 %v3801
    %v4647 = vunpack.c.l.b16 %v3802
    %v4648 = vunpack.c.h.b16 %v3802
    %v4649 = vunpack.c.l.b16 %v3803
    %v4650 = vunpack.c.l.b16 %v3804
    %v4651 = vunpack.c.h.b16 %v3804
    %v4652 = vunpack.c.l.b16 %v3805
    %v4653 = vunpack.c.l.b16 %v3806
    %v4654 = vunpack.c.h.b16 %v3806
    %v4655 = vunpack.c.l.b16 %v3807
    %v4656 = vunpack.c.l.b16 %v3808
    %v4657 = vunpack.c.h.b16 %v3808
    %v4658 = vunpack.c.l.b16 %v3809
    %v4659 = vunpack.c.l.b16 %v3810
    %v4660 = vunpack.c.h.b16 %v3810
    %v4661 = vunpack.c.l.b16 %v3811
    %v4662 = vunpack.c.l.b16 %v3812
    %v4663 = vunpack.c.h.b16 %v3812
    %v4664 = vunpack.c.l.b16 %v3813
    %v4665 = vunpack.c.l.b16 %v3814
    %v4666 = vunpack.c.h.b16 %v3814
    %v4667 = vunpack.c.l.b16 %v3815
    %v4668 = vunpack.c.l.b16 %v3816
    %v4669 = vunpack.c.h.b16 %v3816
    %v4670 = vunpack.c.l.b16 %v3817
    %v4671 = vunpack.c.l.b16 %v3818
    %v4672 = vunpack.c.h.b16 %v3818
    %v4673 = vunpack.c.l.b16 %v3819
    %v4674 = vunpack.c.l.b16 %v3820
    %v4675 = vunpack.c.h.b16 %v3820
    %v4676 = vunpack.c.l.b16 %v3821
    %v4677 = vunpack.c.l.b16 %v3822
    %v4678 = vunpack.c.h.b16 %v3822
    %v4679 = vunpack.c.l.b16 %v3823
    %v4680 = vunpack.c.l.b16 %v3824
    %v4681 = vunpack.c.h.b16 %v3824
    %v4682 = vunpack.c.l.b16 %v3825
    %v4683 = vunpack.c.l.b16 %v3826
    %v4684 = vunpack.c.h.b16 %v3826
    %v4685 = vunpack.c.l.b16 %v3827
    %v4686 = vunpack.c.l.b16 %v3828
    %v4687 = vunpack.c.h.b16 %v3828
    %v4688 = vunpack.c.l.b16 %v3829
    %v4689 = vunpack.c.l.b16 %v3830
    %v4690 = vunpack.c.h.b16 %v3830
    %v4691 = vunpack.c.l.b16 %v3831
    %v4692 = vunpack.c.l.b16 %v3832
    %v4693 = vunpack.c.h.b16 %v3832
    %v4694 = vunpack.c.l.b16 %v3833
    %v4695 = vunpack.c.l.b16 %v3834
    %v4696 = vunpack.c.h.b16 %v3834
    %v4697 = vunpack.c.l.b16 %v3835
    %v4698 = vunpack.c.l.b16 %v3836
    %v4699 = vunpack.c.h.b16 %v3836
    %v4700 = vunpack.c.l.b16 %v3837
    %v4701 = vunpack.c.l.b16 %v3838
    %v4702 = vunpack.c.h.b16 %v3838
    %v4703 = vunpack.c.l.b16 %v3839
    %v4704 = vunpack.c.l.b16 %v3840
    %v4705 = vunpack.c.h.b16 %v3840
    %v4706 = vunpack.c.l.b16 %v3841
    %v4707 = vunpack.c.l.b16 %v3842
    %v4708 = vunpack.c.h.b16 %v3842
    %v4709 = vunpack.c.l.b16 %v3843
    %v4710 = vunpack.c.l.b16 %v3844
    %v4711 = vunpack.c.h.b16 %v3844
    %v4712 = vunpack.c.l.b16 %v3845
    %v4713 = vunpack.c.l.b16 %v3846
    %v4714 = vunpack.c.h.b16 %v3846
    %v4715 = vunpack.c.l.b16 %v3847
    %v4716 = vunpack.c.l.b16 %v3848
    %v4717 = vunpack.c.h.b16 %v3848
    %v4718 = vunpack.c.l.b16 %v3849
    %v4719 = vunpack.c.l.b16 %v3850
    %v4720 = vunpack.c.h.b16 %v3850
    %v4721 = vunpack.c.l.b16 %v3851
    %v4722 = vunpack.c.l.b16 %v3852
    %v4723 = vunpack.c.h.b16 %v3852
    %v4724 = vunpack.c.l.b16 %v3853
    %v4725 = vunpack.c.l.b16 %v3854
    %v4726 = vunpack.c.h.b16 %v3854
    %v4727 = vunpack.c.l.b16 %v3855
    %v4728 = vunpack.c.l.b16 %v3856
    %v4729 = vunpack.c.h.b16 %v3856
    %v4730 = vunpack.c.l.b16 %v3857
    %v4731 = vunpack.c.l.b16 %v3858
    %v4732 = vunpack.c.h.b16 %v3858
    %v4733 = vunpack.c.l.b16 %v3859
    %v4734 = vunpack.c.l.b16 %v3860
    %v4735 = vunpack.c.h.b16 %v3860
    %v4736 = vunpack.c.l.b16 %v3861
    %v4737 = vunpack.c.l.b16 %v3862
    %v4738 = vunpack.c.h.b16 %v3862
    %v4739 = vunpack.c.l.b16 %v3863
    %v4740 = vunpack.c.l.b16 %v3864
    %v4741 = vunpack.c.h.b16 %v3864
    %v4742 = vunpack.c.l.b16 %v3865
    %v4743 = vunpack.c.l.b16 %v3866
    %v4744 = vunpack.c.h.b16 %v3866
    %v4745 = vunpack.c.l.b16 %v3867
    %v4746 = vunpack.c.l.b16 %v3868
    %v4747 = vunpack.c.h.b16 %v3868
    %v4748 = vunpack.c.l.b16 %v3869
    %v4749 = vunpack.c.l.b16 %v3870
    %v4750 = vunpack.c.h.b16 %v3870
    %v4751 = vunpack.c.l.b16 %v3871
    %v4752 = vunpack.c.l.b16 %v3872
    %v4753 = vunpack.c.h.b16 %v3872
    %v4754 = vunpack.c.l.b16 %v3873
    %v4755 = vunpack.c.l.b16 %v3874
    %v4756 = vunpack.c.h.b16 %v3874
    %v4757 = vunpack.c.l.b16 %v3875
    %v4758 = vunpack.c.l.b16 %v3876
    %v4759 = vunpack.c.h.b16 %v3876
    %v4760 = vunpack.c.l.b16 %v3877
    %v4761 = vunpack.c.l.b16 %v3878
    %v4762 = vunpack.c.h.b16 %v3878
    %v4763 = vunpack.c.l.b16 %v3879
    %v4764 = vunpack.c.l.b16 %v3880
    %v4765 = vunpack.c.h.b16 %v3880
    %v4766 = vunpack.c.l.b16 %v3881
    %v4767 = vunpack.c.l.b16 %v3882
    %v4768 = vunpack.c.h.b16 %v3882
    %v4769 = vunpack.c.l.b16 %v3883
    %v4770 = vunpack.c.l.b16 %v3884
    %v4771 = vunpack.c.h.b16 %v3884
    %v4772 = vunpack.c.l.b16 %v3885
    %v4773 = vunpack.c.l.b16 %v3886
    %v4774 = vunpack.c.h.b16 %v3886
    %v4775 = vunpack.c.l.b16 %v3887
    %v4776 = vunpack.c.l.b16 %v3888
    %v4777 = vunpack.c.h.b16 %v3888
    %v4778 = vunpack.c.l.b16 %v3889
    %v4779 = vunpack.c.l.b16 %v3890
    %v4780 = vunpack.c.h.b16 %v3890
    %v4781 = vunpack.c.l.b16 %v3891
    %v4782 = vunpack.c.l.b16 %v3892
    %v4783 = vunpack.c.h.b16 %v3892
    %v4784 = vunpack.c.l.b16 %v3893
    %v4785 = vunpack.c.l.b16 %v3894
    %v4786 = vunpack.c.h.b16 %v3894
    %v4787 = vunpack.c.l.b16 %v3895
    %v4788 = vunpack.c.l.b16 %v3896
    %v4789 = vunpack.c.h.b16 %v3896
    %v4790 = vunpack.c.l.b16 %v3897
    %v4791 = vunpack.c.l.b16 %v3898
    %v4792 = vunpack.c.h.b16 %v3898
    %v4793 = vunpack.c.l.b16 %v3899
    %v4794 = vunpack.c.l.b16 %v3900
    %v4795 = vunpack.c.h.b16 %v3900
    %v4796 = vunpack.c.l.b16 %v3901
    %v4797 = vunpack.c.l.b16 %v3902
    %v4798 = vunpack.c.h.b16 %v3902
    %v4799 = vunpack.c.l.b16 %v3903
    %v4800 = vunpack.c.l.b16 %v3904
    %v4801 = vunpack.c.h.b16 %v3904
    %v4802 = vunpack.c.l.b16 %v3905
    %v4803 = vunpack.c.l.b16 %v3906
    %v4804 = vunpack.c.h.b16 %v3906
    %v4805 = vunpack.c.l.b16 %v3907
    %v4806 = vunpack.c.l.b16 %v3908
    %v4807 = vunpack.c.h.b16 %v3908
    %v4808 = vunpack.c.l.b16 %v3909
    %v4809 = vunpack.c.l.b16 %v3910
    %v4810 = vunpack.c.h.b16 %v3910
    %v4811 = vunpack.c.l.b16 %v3911
    %v4812 = vunpack.c.l.b16 %v3912
    %v4813 = vunpack.c.h.b16 %v3912
    %v4814 = vunpack.c.l.b16 %v3913
    %v4815 = vunpack.c.l.b16 %v3914
    %v4816 = vunpack.c.h.b16 %v3914
    %v4817 = vunpack.c.l.b16 %v3915
    %v4818 = vunpack.c.l.b16 %v3916
    %v4819 = vunpack.c.h.b16 %v3916
    %v4820 = vunpack.c.l.b16 %v3917
    %v4821 = vunpack.c.l.b16 %v3918
    %v4822 = vunpack.c.h.b16 %v3918
    %v4823 = vunpack.c.l.b16 %v3919
    %v4824 = vunpack.c.l.b16 %v3920
    %v4825 = vunpack.c.h.b16 %v3920
    %v4826 = vunpack.c.l.b16 %v3921
    %v4827 = vunpack.c.l.b16 %v3922
    %v4828 = vunpack.c.h.b16 %v3922
    %v4829 = vunpack.c.l.b16 %v3923
    %v4830 = vunpack.c.l.b16 %v3924
    %v4831 = vunpack.c.h.b16 %v3924
    %v4832 = vunpack.c.l.b16 %v3925
    %v4833 = vunpack.c.l.b16 %v3926
    %v4834 = vunpack.c.h.b16 %v3926
    %v4835 = vunpack.c.l.b16 %v3927
    %v4836 = vunpack.c.l.b16 %v3928
    %v4837 = vunpack.c.h.b16 %v3928
    %v4838 = vunpack.c.l.b16 %v3929
    %v4839 = vunpack.c.l.b16 %v3930
    %v4840 = vunpack.c.h.b16 %v3930
    %v4841 = vunpack.c.l.b16 %v3931
    %v4842 = vunpack.c.l.b16 %v3932
    %v4843 = vunpack.c.h.b16 %v3932
    %v4844 = vunpack.c.l.b16 %v3933
    %v4845 = vunpack.c.l.b16 %v3934
    %v4846 = vunpack.c.h.b16 %v3934
    %v4847 = vunpack.c.l.b16 %v3935
    %v4848 = vunpack.c.l.b16 %v3936
    %v4849 = vunpack.c.h.b16 %v3936
    %v4850 = vunpack.c.l.b16 %v3937
    %v4851 = vunpack.c.l.b16 %v3938
    %v4852 = vunpack.c.h.b16 %v3938
    %v4853 = vunpack.c.l.b16 %v3939
    %v4854 = vunpack.c.l.b16 %v3940
    %v4855 = vunpack.c.h.b16 %v3940
    %v4856 = vunpack.c.l.b16 %v3941
    %v4857 = vunpack.c.l.b16 %v3942
    %v4858 = vunpack.c.h.b16 %v3942
    %v4859 = vunpack.c.l.b16 %v3943
    %v4860 = vunpack.c.l.b16 %v3944
    %v4861 = vunpack.c.h.b16 %v3944
    %v4862 = vunpack.c.l.b16 %v3945
    %v4863 = vunpack.c.l.b16 %v3946
    %v4864 = vunpack.c.h.b16 %v3946
    %v4865 = vunpack.c.l.b16 %v3947
    %v4866 = vunpack.c.l.b16 %v3948
    %v4867 = vunpack.c.h.b16 %v3948
    %v4868 = vunpack.c.l.b16 %v3949
    %v4869 = vunpack.c.l.b16 %v3950
    %v4870 = vunpack.c.h.b16 %v3950
    %v4871 = vunpack.c.l.b16 %v3951
    %v4872 = vunpack.c.l.b16 %v3952
    %v4873 = vunpack.c.h.b16 %v3952
    %v4874 = vunpack.c.l.b16 %v3953
    %v4875 = vunpack.c.l.b16 %v3954
    %v4876 = vunpack.c.h.b16 %v3954
    %v4877 = vunpack.c.l.b16 %v3955
    %v4878 = vunpack.c.l.b16 %v3956
    %v4879 = vunpack.c.h.b16 %v3956
    %v4880 = vunpack.c.l.b16 %v3957
    %v4881 = vunpack.c.l.b16 %v3958
    %v4882 = vunpack.c.h.b16 %v3958
    %v4883 = vunpack.c.l.b16 %v3959
    %v4884 = vunpack.c.l.b16 %v3960
    %v4885 = vunpack.c.h.b16 %v3960
    %v4886 = vunpack.c.l.b16 %v3961
    %v4887 = vunpack.c.l.b16 %v3962
    %v4888 = vunpack.c.h.b16 %v3962
    %v4889 = vunpack.c.l.b16 %v3963
    %v4890 = vunpack.c.l.b16 %v3964
    %v4891 = vunpack.c.h.b16 %v3964
    %v4892 = vunpack.c.l.b16 %v3965
    %v4893 = vunpack.c.l.b16 %v3966
    %v4894 = vunpack.c.h.b16 %v3966
    %v4895 = vunpack.c.l.b16 %v3967
    %v4896 = vunpack.c.l.b16 %v3968
    %v4897 = vunpack.c.h.b16 %v3968
    %v4898 = vunpack.c.l.b16 %v3969
    %v4899 = vunpack.c.l.b16 %v3970
    %v4900 = vunpack.c.h.b16 %v3970
    %v4901 = vunpack.c.l.b16 %v3971
    %v4902 = vunpack.c.l.b16 %v3972
    %v4903 = vunpack.c.h.b16 %v3972
    %v4904 = vunpack.c.l.b16 %v3973
    %v4905 = vunpack.c.l.b16 %v3974
    %v4906 = vunpack.c.h.b16 %v3974
    %v4907 = vunpack.c.l.b16 %v3975
    %v4908 = vunpack.c.l.b16 %v3976
    %v4909 = vunpack.c.h.b16 %v3976
    %v4910 = vunpack.c.l.b16 %v3977
    %v4911 = vunpack.c.l.b16 %v3978
    %v4912 = vunpack.c.h.b16 %v3978
    %v4913 = vunpack.c.l.b16 %v3979
    %v4914 = vunpack.c.l.b16 %v3980
    %v4915 = vunpack.c.h.b16 %v3980
    %v4916 = vunpack.c.l.b16 %v3981
    %v4917 = vunpack.c.l.b16 %v3982
    %v4918 = vunpack.c.h.b16 %v3982
    %v4919 = vunpack.c.l.b16 %v3983
    %v4920 = vunpack.c.l.b16 %v3984
    %v4921 = vunpack.c.h.b16 %v3984
    %v4922 = vunpack.c.l.b16 %v3985
    %v4923 = vunpack.c.l.b16 %v3986
    %v4924 = vunpack.c.h.b16 %v3986
    %v4925 = vunpack.c.l.b16 %v3987
    %v4926 = vunpack.c.l.b16 %v3988
    %v4927 = vunpack.c.h.b16 %v3988
    %v4928 = vunpack.c.l.b16 %v3989
    %v4929 = vunpack.c.l.b16 %v3990
    %v4930 = vunpack.c.h.b16 %v3990
    %v4931 = vunpack.c.l.b16 %v3991
    %v4932 = vunpack.c.l.b16 %v3992
    %v4933 = vunpack.c.h.b16 %v3992
    %v4934 = vunpack.c.l.b16 %v3993
    %v4935 = vunpack.c.l.b16 %v3994
    %v4936 = vunpack.c.h.b16 %v3994
    %v4937 = vunpack.c.l.b16 %v3995
    %v4938 = vunpack.c.l.b16 %v3996
    %v4939 = vunpack.c.h.b16 %v3996
    %v4940 = vunpack.c.l.b16 %v3997
    %v4941 = vunpack.c.l.b16 %v3998
    %v4942 = vunpack.c.h.b16 %v3998
    %v4943 = vunpack.c.l.b16 %v3999
    %v4944 = vunpack.c.l.b16 %v4000
    %v4945 = vunpack.c.h.b16 %v4000
    %v4946 = vunpack.c.l.b16 %v4001
    %v4947 = vunpack.c.l.b16 %v4002
    %v4948 = vunpack.c.h.b16 %v4002
    %v4949 = vunpack.c.l.b16 %v4003
    %v4950 = vunpack.c.l.b16 %v4004
    %v4951 = vunpack.c.h.b16 %v4004
    %v4952 = vunpack.c.l.b16 %v4005
    %v4953 = vunpack.c.l.b16 %v4006
    %v4954 = vunpack.c.h.b16 %v4006
    %v4955 = vunpack.c.l.b16 %v4007
    %v4956 = vunpack.c.l.b16 %v4008
    %v4957 = vunpack.c.h.b16 %v4008
    %v4958 = vunpack.c.l.b16 %v4009
    %v4959 = vunpack.c.l.b16 %v4010
    %v4960 = vunpack.c.h.b16 %v4010
    %v4961 = vunpack.c.l.b16 %v4011
    %v4962 = vunpack.c.l.b16 %v4012
    %v4963 = vunpack.c.h.b16 %v4012
    %v4964 = vunpack.c.l.b16 %v4013
    %v4965 = vunpack.c.l.b16 %v4014
    %v4966 = vunpack.c.h.b16 %v4014
    %v4967 = vunpack.c.l.b16 %v4015
    %v4968 = vunpack.c.l.b16 %v4016
    %v4969 = vunpack.c.h.b16 %v4016
    %v4970 = vunpack.c.l.b16 %v4017
    %v4971 = vunpack.c.l.b16 %v4018
    %v4972 = vunpack.c.h.b16 %v4018
    %v4973 = vunpack.c.l.b16 %v4019
    %v4974 = vunpack.c.l.b16 %v4020
    %v4975 = vunpack.c.h.b16 %v4020
    %v4976 = vunpack.c.l.b16 %v4021
    %v4977 = vunpack.c.l.b16 %v4022
    %v4978 = vunpack.c.h.b16 %v4022
    %v4979 = vunpack.c.l.b16 %v4023
    %v4980 = vunpack.c.l.b16 %v4024
    %v4981 = vunpack.c.h.b16 %v4024
    %v4982 = vunpack.c.l.b16 %v4025
    %v4983 = vunpack.c.l.b16 %v4026
    %v4984 = vunpack.c.h.b16 %v4026
    %v4985 = vunpack.c.l.b16 %v4027
    %v4986 = vunpack.c.l.b16 %v4028
    %v4987 = vunpack.c.h.b16 %v4028
    %v4988 = vunpack.c.l.b16 %v4029
    %v4989 = vunpack.c.l.b16 %v4030
    %v4990 = vunpack.c.h.b16 %v4030
    %v4991 = vunpack.c.l.b16 %v4031
    %v4992 = vunpack.c.l.b16 %v4032
    %v4993 = vunpack.c.h.b16 %v4032
    %v4994 = vunpack.c.l.b16 %v4033
    %v4995 = vunpack.c.l.b16 %v4034
    %v4996 = vunpack.c.h.b16 %v4034
    %v4997 = vunpack.c.l.b16 %v4035
    %v4998 = vunpack.c.l.b16 %v4036
    %v4999 = vunpack.c.h.b16 %v4036
    %v5000 = vunpack.c.l.b16 %v4037
    %v5001 = vunpack.c.l.b16 %v4038
    %v5002 = vunpack.c.h.b16 %v4038
    %v5003 = vunpack.c.l.b16 %v4039
    %v5004 = vunpack.c.l.b16 %v4040
    %v5005 = vunpack.c.h.b16 %v4040
    %v5006 = vunpack.c.l.b16 %v4041
    %v5007 = vunpack.c.l.b16 %v4042
    %v5008 = vunpack.c.h.b16 %v4042
    %v5009 = vunpack.c.l.b16 %v4043
    %v5010 = vunpack.c.l.b16 %v4044
    %v5011 = vunpack.c.h.b16 %v4044
    %v5012 = vunpack.c.l.b16 %v4045
    %v5013 = vunpack.c.l.b16 %v4046
    %v5014 = vunpack.c.h.b16 %v4046
    %v5015 = vunpack.c.l.b16 %v4047
    %v5016 = vunpack.c.l.b16 %v4048
    %v5017 = vunpack.c.h.b16 %v4048
    %v5018 = vunpack.c.l.b16 %v4049
    %v5019 = vunpack.c.l.b16 %v4050
    %v5020 = vunpack.c.h.b16 %v4050
    %v5021 = vunpack.c.l.b16 %v4051
    %v5022 = vunpack.c.l.b16 %v4052
    %v5023 = vunpack.c.h.b16 %v4052
    %v5024 = vunpack.c.l.b16 %v4053
    %v5025 = vunpack.c.l.b16 %v4054
    %v5026 = vunpack.c.h.b16 %v4054
    %v5027 = vunpack.c.l.b16 %v4055
    %v5028 = vunpack.c.l.b16 %v4056
    %v5029 = vunpack.c.h.b16 %v4056
    %v5030 = vunpack.c.l.b16 %v4057
    %v5031 = vunpack.c.l.b16 %v4058
    %v5032 = vunpack.c.h.b16 %v4058
    %v5033 = vunpack.c.l.b16 %v4059
    %v5034 = vunpack.c.l.b16 %v4060
    %v5035 = vunpack.c.h.b16 %v4060
    %v5036 = vunpack.c.l.b16 %v4061
    %v5037 = vunpack.c.l.b16 %v4062
    %v5038 = vunpack.c.h.b16 %v4062
    %v5039 = vunpack.c.l.b16 %v4063
    %v5040 = vunpack.c.l.b16 %v4064
    %v5041 = vunpack.c.h.b16 %v4064
    %v5042 = vunpack.c.l.b16 %v4065
    %v5043 = vpack.c.b16 %v4470, %v4467
    %v5044 = vpack.c.b16 %v4471, %v4468
    %v5045 = vpack.c.b16 %v4472, %v4469
    %v5046 = vpack.c.b16 %v4476, %v4473
    %v5047 = vpack.c.b16 %v4477, %v4474
    %v5048 = vpack.c.b16 %v4478, %v4475
    %v5049 = vpack.c.b16 %v4482, %v4479
    %v5050 = vpack.c.b16 %v4483, %v4480
    %v5051 = vpack.c.b16 %v4484, %v4481
    %v5052 = vpack.c.b16 %v4488, %v4485
    %v5053 = vpack.c.b16 %v4489, %v4486
    %v5054 = vpack.c.b16 %v4490, %v4487
    %v5055 = vpack.c.b16 %v4494, %v4491
    %v5056 = vpack.c.b16 %v4495, %v4492
    %v5057 = vpack.c.b16 %v4496, %v4493
    %v5058 = vpack.c.b16 %v4500, %v4497
    %v5059 = vpack.c.b16 %v4501, %v4498
    %v5060 = vpack.c.b16 %v4502, %v4499
    %v5061 = vpack.c.b16 %v4506, %v4503
    %v5062 = vpack.c.b16 %v4507, %v4504
    %v5063 = vpack.c.b16 %v4508, %v4505
    %v5064 = vpack.c.b16 %v4512, %v4509
    %v5065 = vpack.c.b16 %v4513, %v4510
    %v5066 = vpack.c.b16 %v4514, %v4511
    %v5067 = vpack.c.b16 %v4518, %v4515
    %v5068 = vpack.c.b16 %v4519, %v4516
    %v5069 = vpack.c.b16 %v4520, %v4517
    %v5070 = vpack.c.b16 %v4524, %v4521
    %v5071 = vpack.c.b16 %v4525, %v4522
    %v5072 = vpack.c.b16 %v4526, %v4523
    %v5073 = vpack.c.b16 %v4530, %v4527
    %v5074 = vpack.c.b16 %v4531, %v4528
    %v5075 = vpack.c.b16 %v4532, %v4529
    %v5076 = vpack.c.b16 %v4536, %v4533
    %v5077 = vpack.c.b16 %v4537, %v4534
    %v5078 = vpack.c.b16 %v4538, %v4535
    %v5079 = vpack.c.b16 %v4542, %v4539
    %v5080 = vpack.c.b16 %v4543, %v4540
    %v5081 = vpack.c.b16 %v4544, %v4541
    %v5082 = vpack.c.b16 %v4548, %v4545
    %v5083 = vpack.c.b16 %v4549, %v4546
    %v5084 = vpack.c.b16 %v4550, %v4547
    %v5085 = vpack.c.b16 %v4554, %v4551
    %v5086 = vpack.c.b16 %v4555, %v4552
    %v5087 = vpack.c.b16 %v4556, %v4553
    %v5088 = vpack.c.b16 %v4560, %v4557
    %v5089 = vpack.c.b16 %v4561, %v4558
    %v5090 = vpack.c.b16 %v4562, %v4559
    %v5091 = vpack.c.b16 %v4566, %v4563
    %v5092 = vpack.c.b16 %v4567, %v4564
    %v5093 = vpack.c.b16 %v4568, %v4565
    %v5094 = vpack.c.b16 %v4572, %v4569
    %v5095 = vpack.c.b16 %v4573, %v4570
    %v5096 = vpack.c.b16 %v4574, %v4571
    %v5097 = vpack.c.b16 %v4578, %v4575
    %v5098 = vpack.c.b16 %v4579, %v4576
    %v5099 = vpack.c.b16 %v4580, %v4577
    %v5100 = vpack.c.b16 %v4584, %v4581
    %v5101 = vpack.c.b16 %v4585, %v4582
    %v5102 = vpack.c.b16 %v4586, %v4583
    %v5103 = vpack.c.b16 %v4590, %v4587
    %v5104 = vpack.c.b16 %v4591, %v4588
    %v5105 = vpack.c.b16 %v4592, %v4589
    %v5106 = vpack.c.b16 %v4596, %v4593
    %v5107 = vpack.c.b16 %v4597, %v4594
    %v5108 = vpack.c.b16 %v4598, %v4595
    %v5109 = vpack.c.b16 %v4602, %v4599
    %v5110 = vpack.c.b16 %v4603, %v4600
    %v5111 = vpack.c.b16 %v4604, %v4601
    %v5112 = vpack.c.b16 %v4608, %v4605
    %v5113 = vpack.c.b16 %v4609, %v4606
    %v5114 = vpack.c.b16 %v4610, %v4607
    %v5115 = vpack.c.b16 %v4614, %v4611
    %v5116 = vpack.c.b16 %v4615, %v4612
    %v5117 = vpack.c.b16 %v4616, %v4613
    %v5118 = vpack.c.b16 %v4620, %v4617
    %v5119 = vpack.c.b16 %v4621, %v4618
    %v5120 = vpack.c.b16 %v4622, %v4619
    %v5121 = vpack.c.b16 %v4626, %v4623
    %v5122 = vpack.c.b16 %v4627, %v4624
    %v5123 = vpack.c.b16 %v4628, %v4625
    %v5124 = vpack.c.b16 %v4632, %v4629
    %v5125 = vpack.c.b16 %v4633, %v4630
    %v5126 = vpack.c.b16 %v4634, %v4631
    %v5127 = vpack.c.b16 %v4638, %v4635
    %v5128 = vpack.c.b16 %v4639, %v4636
    %v5129 = vpack.c.b16 %v4640, %v4637
    %v5130 = vpack.c.b16 %v4644, %v4641
    %v5131 = vpack.c.b16 %v4645, %v4642
    %v5132 = vpack.c.b16 %v4646, %v4643
    %v5133 = vpack.c.b16 %v4650, %v4647
    %v5134 = vpack.c.b16 %v4651, %v4648
    %v5135 = vpack.c.b16 %v4652, %v4649
    %v5136 = vpack.c.b16 %v4656, %v4653
    %v5137 = vpack.c.b16 %v4657, %v4654
    %v5138 = vpack.c.b16 %v4658, %v4655
    %v5139 = vpack.c.b16 %v4662, %v4659
    %v5140 = vpack.c.b16 %v4663, %v4660
    %v5141 = vpack.c.b16 %v4664, %v4661
    %v5142 = vpack.c.b16 %v4668, %v4665
    %v5143 = vpack.c.b16 %v4669, %v4666
    %v5144 = vpack.c.b16 %v4670, %v4667
    %v5145 = vpack.c.b16 %v4674, %v4671
    %v5146 = vpack.c.b16 %v4675, %v4672
    %v5147 = vpack.c.b16 %v4676, %v4673
    %v5148 = vpack.c.b16 %v4680, %v4677
    %v5149 = vpack.c.b16 %v4681, %v4678
    %v5150 = vpack.c.b16 %v4682, %v4679
    %v5151 = vpack.c.b16 %v4686, %v4683
    %v5152 = vpack.c.b16 %v4687, %v4684
    %v5153 = vpack.c.b16 %v4688, %v4685
    %v5154 = vpack.c.b16 %v4692, %v4689
    %v5155 = vpack.c.b16 %v4693, %v4690
    %v5156 = vpack.c.b16 %v4694, %v4691
    %v5157 = vpack.c.b16 %v4698, %v4695
    %v5158 = vpack.c.b16 %v4699, %v4696
    %v5159 = vpack.c.b16 %v4700, %v4697
    %v5160 = vpack.c.b16 %v4704, %v4701
    %v5161 = vpack.c.b16 %v4705, %v4702
    %v5162 = vpack.c.b16 %v4706, %v4703
    %v5163 = vpack.c.b16 %v4710, %v4707
    %v5164 = vpack.c.b16 %v4711, %v4708
    %v5165 = vpack.c.b16 %v4712, %v4709
    %v5166 = vpack.c.b16 %v4716, %v4713
    %v5167 = vpack.c.b16 %v4717, %v4714
    %v5168 = vpack.c.b16 %v4718, %v4715
    %v5169 = vpack.c.b16 %v4722, %v4719
    %v5170 = vpack.c.b16 %v4723, %v4720
    %v5171 = vpack.c.b16 %v4724, %v4721
    %v5172 = vpack.c.b16 %v4728, %v4725
    %v5173 = vpack.c.b16 %v4729, %v4726
    %v5174 = vpack.c.b16 %v4730, %v4727
    %v5175 = vpack.c.b16 %v4734, %v4731
    %v5176 = vpack.c.b16 %v4735, %v4732
    %v5177 = vpack.c.b16 %v4736, %v4733
    %v5178 = vpack.c.b16 %v4740, %v4737
    %v5179 = vpack.c.b16 %v4741, %v4738
    %v5180 = vpack.c.b16 %v4742, %v4739
    %v5181 = vpack.c.b16 %v4746, %v4743
    %v5182 = vpack.c.b16 %v4747, %v4744
    %v5183 = vpack.c.b16 %v4748, %v4745
    %v5184 = vpack.c.b16 %v4752, %v4749
    %v5185 = vpack.c.b16 %v4753, %v4750
    %v5186 = vpack.c.b16 %v4754, %v4751
    %v5187 = vpack.c.b16 %v4758, %v4755
    %v5188 = vpack.c.b16 %v4759, %v4756
    %v5189 = vpack.c.b16 %v4760, %v4757
    %v5190 = vpack.c.b16 %v4764, %v4761
    %v5191 = vpack.c.b16 %v4765, %v4762
    %v5192 = vpack.c.b16 %v4766, %v4763
    %v5193 = vpack.c.b16 %v4770, %v4767
    %v5194 = vpack.c.b16 %v4771, %v4768
    %v5195 = vpack.c.b16 %v4772, %v4769
    %v5196 = vpack.c.b16 %v4776, %v4773
    %v5197 = vpack.c.b16 %v4777, %v4774
    %v5198 = vpack.c.b16 %v4778, %v4775
    %v5199 = vpack.c.b16 %v4782, %v4779
    %v5200 = vpack.c.b16 %v4783, %v4780
    %v5201 = vpack.c.b16 %v4784, %v4781
    %v5202 = vpack.c.b16 %v4788, %v4785
    %v5203 = vpack.c.b16 %v4789, %v4786
    %v5204 = vpack.c.b16 %v4790, %v4787
    %v5205 = vpack.c.b16 %v4794, %v4791
    %v5206 = vpack.c.b16 %v4795, %v4792
    %v5207 = vpack.c.b16 %v4796, %v4793
    %v5208 = vpack.c.b16 %v4800, %v4797
    %v5209 = vpack.c.b16 %v4801, %v4798
    %v5210 = vpack.c.b16 %v4802, %v4799
    %v5211 = vpack.c.b16 %v4806, %v4803
    %v5212 = vpack.c.b16 %v4807, %v4804
    %v5213 = vpack.c.b16 %v4808, %v4805
    %v5214 = vpack.c.b16 %v4812, %v4809
    %v5215 = vpack.c.b16 %v4813, %v4810
    %v5216 = vpack.c.b16 %v4814, %v4811
    %v5217 = vpack.c.b16 %v4818, %v4815
    %v5218 = vpack.c.b16 %v4819, %v4816
    %v5219 = vpack.c.b16 %v4820, %v4817
    %v5220 = vpack.c.b16 %v4824, %v4821
    %v5221 = vpack.c.b16 %v4825, %v4822
    %v5222 = vpack.c.b16 %v4826, %v4823
    %v5223 = vpack.c.b16 %v4830, %v4827
    %v5224 = vpack.c.b16 %v4831, %v4828
    %v5225 = vpack.c.b16 %v4832, %v4829
    %v5226 = vpack.c.b16 %v4836, %v4833
    %v5227 = vpack.c.b16 %v4837, %v4834
    %v5228 = vpack.c.b16 %v4838, %v4835
    %v5229 = vpack.c.b16 %v4842, %v4839
    %v5230 = vpack.c.b16 %v4843, %v4840
    %v5231 = vpack.c.b16 %v4844, %v4841
    %v5232 = vpack.c.b16 %v4848, %v4845
    %v5233 = vpack.c.b16 %v4849, %v4846
    %v5234 = vpack.c.b16 %v4850, %v4847
    %v5235 = vpack.c.b16 %v4854, %v4851
    %v5236 = vpack.c.b16 %v4855, %v4852
    %v5237 = vpack.c.b16 %v4856, %v4853
    %v5238 = vpack.c.b16 %v4860, %v4857
    %v5239 = vpack.c.b16 %v4861, %v4858
    %v5240 = vpack.c.b16 %v4862, %v4859
    %v5241 = vpack.c.b16 %v4866, %v4863
    %v5242 = vpack.c.b16 %v4867, %v4864
    %v5243 = vpack.c.b16 %v4868, %v4865
    %v5244 = vpack.c.b16 %v4872, %v4869
    %v5245 = vpack.c.b16 %v4873, %v4870
    %v5246 = vpack.c.b16 %v4874, %v4871
    %v5247 = vpack.c.b16 %v4878, %v4875
    %v5248 = vpack.c.b16 %v4879, %v4876
    %v5249 = vpack.c.b16 %v4880, %v4877
    %v5250 = vpack.c.b16 %v4884, %v4881
    %v5251 = vpack.c.b16 %v4885, %v4882
    %v5252 = vpack.c.b16 %v4886, %v4883
    %v5253 = vpack.c.b16 %v4890, %v4887
    %v5254 = vpack.c.b16 %v4891, %v4888
    %v5255 = vpack.c.b16 %v4892, %v4889
    %v5256 = vpack.c.b16 %v4896, %v4893
    %v5257 = vpack.c.b16 %v4897, %v4894
    %v5258 = vpack.c.b16 %v4898, %v4895
    %v5259 = vpack.c.b16 %v4902, %v4899
    %v5260 = vpack.c.b16 %v4903, %v4900
    %v5261 = vpack.c.b16 %v4904, %v4901
    %v5262 = vpack.c.b16 %v4908, %v4905
    %v5263 = vpack.c.b16 %v4909, %v4906
    %v5264 = vpack.c.b16 %v4910, %v4907
    %v5265 = vpack.c.b16 %v4914, %v4911
    %v5266 = vpack.c.b16 %v4915, %v4912
    %v5267 = vpack.c.b16 %v4916, %v4913
    %v5268 = vpack.c.b16 %v4920, %v4917
    %v5269 = vpack.c.b16 %v4921, %v4918
    %v5270 = vpack.c.b16 %v4922, %v4919
    %v5271 = vpack.c.b16 %v4926, %v4923
    %v5272 = vpack.c.b16 %v4927, %v4924
    %v5273 = vpack.c.b16 %v4928, %v4925
    %v5274 = vpack.c.b16 %v4932, %v4929
    %v5275 = vpack.c.b16 %v4933, %v4930
    %v5276 = vpack.c.b16 %v4934, %v4931
    %v5277 = vpack.c.b16 %v4938, %v4935
    %v5278 = vpack.c.b16 %v4939, %v4936
    %v5279 = vpack.c.b16 %v4940, %v4937
    %v5280 = vpack.c.b16 %v4944, %v4941
    %v5281 = vpack.c.b16 %v4945, %v4942
    %v5282 = vpack.c.b16 %v4946, %v4943
    %v5283 = vpack.c.b16 %v4950, %v4947
    %v5284 = vpack.c.b16 %v4951, %v4948
    %v5285 = vpack.c.b16 %v4952, %v4949
    %v5286 = vpack.c.b16 %v4956, %v4953
    %v5287 = vpack.c.b16 %v4957, %v4954
    %v5288 = vpack.c.b16 %v4958, %v4955
    %v5289 = vpack.c.b16 %v4962, %v4959
    %v5290 = vpack.c.b16 %v4963, %v4960
    %v5291 = vpack.c.b16 %v4964, %v4961
    %v5292 = vpack.c.b16 %v4968, %v4965
    %v5293 = vpack.c.b16 %v4969, %v4966
    %v5294 = vpack.c.b16 %v4970, %v4967
    %v5295 = vpack.c.b16 %v4974, %v4971
    %v5296 = vpack.c.b16 %v4975, %v4972
    %v5297 = vpack.c.b16 %v4976, %v4973
    %v5298 = vpack.c.b16 %v4980, %v4977
    %v5299 = vpack.c.b16 %v4981, %v4978
    %v5300 = vpack.c.b16 %v4982, %v4979
    %v5301 = vpack.c.b16 %v4986, %v4983
    %v5302 = vpack.c.b16 %v4987, %v4984
    %v5303 = vpack.c.b16 %v4988, %v4985
    %v5304 = vpack.c.b16 %v4992, %v4989
    %v5305 = vpack.c.b16 %v4993, %v4990
    %v5306 = vpack.c.b16 %v4994, %v4991
    %v5307 = vpack.c.b16 %v4998, %v4995
    %v5308 = vpack.c.b16 %v4999, %v4996
    %v5309 = vpack.c.b16 %v5000, %v4997
    %v5310 = vpack.c.b16 %v5004, %v5001
    %v5311 = vpack.c.b16 %v5005, %v5002
    %v5312 = vpack.c.b16 %v5006, %v5003
    %v5313 = vpack.c.b16 %v5010, %v5007
    %v5314 = vpack.c.b16 %v5011, %v5008
    %v5315 = vpack.c.b16 %v5012, %v5009
    %v5316 = vpack.c.b16 %v5016, %v5013
    %v5317 = vpack.c.b16 %v5017, %v5014
    %v5318 = vpack.c.b16 %v5018, %v5015
    %v5319 = vpack.c.b16 %v5022, %v5019
    %v5320 = vpack.c.b16 %v5023, %v5020
    %v5321 = vpack.c.b16 %v5024, %v5021
    %v5322 = vpack.c.b16 %v5028, %v5025
    %v5323 = vpack.c.b16 %v5029, %v5026
    %v5324 = vpack.c.b16 %v5030, %v5027
    %v5325 = vpack.c.b16 %v5034, %v5031
    %v5326 = vpack.c.b16 %v5035, %v5032
    %v5327 = vpack.c.b16 %v5036, %v5033
    %v5328 = vpack.c.b16 %v5040, %v5037
    %v5329 = vpack.c.b16 %v5041, %v5038
    %v5330 = vpack.c.b16 %v5042, %v5039
    %5619 = vmatprep.subr.bf16.mxu0 %v5065
    %5620 = vmatpush1.bf16.msra.mxu0 %v5064
    %5621 = vmatprep.subr.bf16.mxu0 %v5062
    %5622 = vmatpush1.bf16.msra.mxu0 %v5061
    %5623 = vmatprep.subr.bf16.mxu0 %v5059
    %5624 = vmatpush1.bf16.msra.mxu0 %v5058
    %5625 = vmatprep.subr.bf16.mxu0 %v5056
    %5626 = vmatpush1.bf16.msra.mxu0 %v5055
    %5627 = vmatprep.subr.bf16.mxu0 %v5053
    %5628 = vmatpush1.bf16.msra.mxu0 %v5052
    %5629 = vmatprep.subr.bf16.mxu0 %v5050
    %5630 = vmatpush1.bf16.msra.mxu0 %v5049
    %5631 = vmatprep.subr.bf16.mxu0 %v5047
    %5632 = vmatpush1.bf16.msra.mxu0 %v5046
    %5633 = vmatprep.subr.bf16.mxu0 %v5044
    %5634 = vmatpush1.bf16.msra.mxu0 %v5043
    %5635 = vmatprep.subr.bf16.mxu0 %v5089
    %5636 = vmatpush2.bf16.msra.mxu0 %v5088
    %5637 = vmatprep.subr.bf16.mxu0 %v5086
    %5638 = vmatpush2.bf16.msra.mxu0 %v5085
    %5639 = vmatprep.subr.bf16.mxu0 %v5083
    %5640 = vmatpush2.bf16.msra.mxu0 %v5082
    %5641 = vmatprep.subr.bf16.mxu0 %v5080
    %5642 = vmatpush2.bf16.msra.mxu0 %v5079
    %5643 = vmatprep.subr.bf16.mxu0 %v5077
    %5644 = vmatpush2.bf16.msra.mxu0 %v5076
    %5645 = vmatprep.subr.bf16.mxu0 %v5074
    %5646 = vmatpush2.bf16.msra.mxu0 %v5073
    %5647 = vmatprep.subr.bf16.mxu0 %v5071
    %5648 = vmatpush2.bf16.msra.mxu0 %v5070
    %5649 = vmatprep.subr.bf16.mxu0 %v5068
    %5650 = vmatpush2.bf16.msra.mxu0 %v5067
    %5651 = vmatprep.mubr.bf16.mxu0 %v3587
    %5652 = vmatmul.mubr.bf16.gmra.mxu0 %v3586
    %v5653 = vpop.f32.mrf.mxu0
    %v5654 = vadd.f32 %v4071, %v5653
    %v5655 = vpop.f32.mrf.mxu0
    %v5656 = vadd.f32 %v4075, %v5655
    %v5657 = vpop.f32.mrf.mxu0
    %v5658 = vadd.f32 %v4071, %v5657
    %v5659 = vpop.f32.mrf.mxu0
    %v5660 = vadd.f32 %v4075, %v5659
    %5661 = vmatprep.mubr.bf16.mxu0 %v3599
    %5662 = vmatmul.mubr.bf16.gmra.mxu0 %v3598
    %v5663 = vpop.f32.mrf.mxu0
    %v5664 = vadd.f32 %v4071, %v5663
    %v5665 = vpop.f32.mrf.mxu0
    %v5666 = vadd.f32 %v4075, %v5665
    %v5667 = vpop.f32.mrf.mxu0
    %v5668 = vadd.f32 %v4071, %v5667
    %v5669 = vpop.f32.mrf.mxu0
    %v5670 = vadd.f32 %v4075, %v5669
    %5671 = vmatprep.mubr.bf16.mxu0 %v3611
    %5672 = vmatmul.mubr.bf16.gmra.mxu0 %v3610
    %v5673 = vpop.f32.mrf.mxu0
    %v5674 = vadd.f32 %v4071, %v5673
    %v5675 = vpop.f32.mrf.mxu0
    %v5676 = vadd.f32 %v4075, %v5675
    %v5677 = vpop.f32.mrf.mxu0
    %v5678 = vadd.f32 %v4071, %v5677
    %v5679 = vpop.f32.mrf.mxu0
    %v5680 = vadd.f32 %v4075, %v5679
    %5681 = vmatprep.mubr.bf16.mxu0 %v3623
    %5682 = vmatmul.mubr.bf16.gmra.mxu0 %v3622
    %v5683 = vpop.f32.mrf.mxu0
    %v5684 = vadd.f32 %v4071, %v5683
    %v5685 = vpop.f32.mrf.mxu0
    %v5686 = vadd.f32 %v4075, %v5685
    %v5687 = vpop.f32.mrf.mxu0
    %v5688 = vadd.f32 %v4071, %v5687
    %v5689 = vpop.f32.mrf.mxu0
    %v5690 = vadd.f32 %v4075, %v5689
    %5691 = vmatprep.mubr.bf16.mxu0 %v3635
    %5692 = vmatmul.mubr.bf16.gmra.mxu0 %v3634
    %v5693 = vpop.f32.mrf.mxu0
    %v5694 = vadd.f32 %v4071, %v5693
    %v5695 = vpop.f32.mrf.mxu0
    %v5696 = vadd.f32 %v4075, %v5695
    %v5697 = vpop.f32.mrf.mxu0
    %v5698 = vadd.f32 %v4071, %v5697
    %v5699 = vpop.f32.mrf.mxu0
    %v5700 = vadd.f32 %v4075, %v5699
    %5701 = vmatprep.mubr.bf16.mxu0 %v3647
    %5702 = vmatmul.mubr.bf16.gmra.mxu0 %v3646
    %v5703 = vpop.f32.mrf.mxu0
    %v5704 = vadd.f32 %v4071, %v5703
    %v5705 = vpop.f32.mrf.mxu0
    %v5706 = vadd.f32 %v4075, %v5705
    %v5707 = vpop.f32.mrf.mxu0
    %v5708 = vadd.f32 %v4071, %v5707
    %v5709 = vpop.f32.mrf.mxu0
    %v5710 = vadd.f32 %v4075, %v5709
    %5711 = vmatprep.mubr.bf16.mxu0 %v3659
    %5712 = vmatmul.mubr.bf16.gmra.mxu0 %v3658
    %v5713 = vpop.f32.mrf.mxu0
    %v5714 = vadd.f32 %v4071, %v5713
    %v5715 = vpop.f32.mrf.mxu0
    %v5716 = vadd.f32 %v4075, %v5715
    %v5717 = vpop.f32.mrf.mxu0
    %v5718 = vadd.f32 %v4071, %v5717
    %v5719 = vpop.f32.mrf.mxu0
    %v5720 = vadd.f32 %v4075, %v5719
    %5721 = vmatprep.mubr.bf16.mxu0 %v3671
    %5722 = vmatmul.mubr.bf16.gmra.mxu0 %v3670
    %v5723 = vpop.f32.mrf.mxu0
    %v5724 = vadd.f32 %v4071, %v5723
    %v5725 = vpop.f32.mrf.mxu0
    %v5726 = vadd.f32 %v4075, %v5725
    %v5727 = vpop.f32.mrf.mxu0
    %v5728 = vadd.f32 %v4071, %v5727
    %v5729 = vpop.f32.mrf.mxu0
    %v5730 = vadd.f32 %v4075, %v5729
    %5731 = vdwg.mxu0
    %5732 = vmatprep.subr.bf16.mxu0 %v5113
    %5733 = vmatpush1.bf16.msra.mxu0 %v5112
    %5734 = vmatprep.subr.bf16.mxu0 %v5110
    %5735 = vmatpush1.bf16.msra.mxu0 %v5109
    %5736 = vmatprep.subr.bf16.mxu0 %v5107
    %5737 = vmatpush1.bf16.msra.mxu0 %v5106
    %5738 = vmatprep.subr.bf16.mxu0 %v5104
    %5739 = vmatpush1.bf16.msra.mxu0 %v5103
    %5740 = vmatprep.subr.bf16.mxu0 %v5101
    %5741 = vmatpush1.bf16.msra.mxu0 %v5100
    %5742 = vmatprep.subr.bf16.mxu0 %v5098
    %5743 = vmatpush1.bf16.msra.mxu0 %v5097
    %5744 = vmatprep.subr.bf16.mxu0 %v5095
    %5745 = vmatpush1.bf16.msra.mxu0 %v5094
    %5746 = vmatprep.subr.bf16.mxu0 %v5092
    %5747 = vmatpush1.bf16.msra.mxu0 %v5091
    %5748 = vmatprep.subr.bf16.mxu0 %v5137
    %5749 = vmatpush2.bf16.msra.mxu0 %v5136
    %5750 = vmatprep.subr.bf16.mxu0 %v5134
    %5751 = vmatpush2.bf16.msra.mxu0 %v5133
    %5752 = vmatprep.subr.bf16.mxu0 %v5131
    %5753 = vmatpush2.bf16.msra.mxu0 %v5130
    %5754 = vmatprep.subr.bf16.mxu0 %v5128
    %5755 = vmatpush2.bf16.msra.mxu0 %v5127
    %5756 = vmatprep.subr.bf16.mxu0 %v5125
    %5757 = vmatpush2.bf16.msra.mxu0 %v5124
    %5758 = vmatprep.subr.bf16.mxu0 %v5122
    %5759 = vmatpush2.bf16.msra.mxu0 %v5121
    %5760 = vmatprep.subr.bf16.mxu0 %v5119
    %5761 = vmatpush2.bf16.msra.mxu0 %v5118
    %5762 = vmatprep.subr.bf16.mxu0 %v5116
    %5763 = vmatpush2.bf16.msra.mxu0 %v5115
    %5764 = vmatprep.mubr.bf16.mxu0 %v3589
    %5765 = vmatmul.mubr.bf16.gmra.mxu0 %v3588
    %v5766 = vpop.f32.mrf.mxu0
    %v5767 = vadd.f32 %v5654, %v5766
    %v5768 = vpop.f32.mrf.mxu0
    %v5769 = vadd.f32 %v5656, %v5768
    %v5770 = vpop.f32.mrf.mxu0
    %v5771 = vadd.f32 %v5658, %v5770
    %v5772 = vpop.f32.mrf.mxu0
    %v5773 = vadd.f32 %v5660, %v5772
    %5774 = vmatprep.mubr.bf16.mxu0 %v3601
    %5775 = vmatmul.mubr.bf16.gmra.mxu0 %v3600
    %v5776 = vpop.f32.mrf.mxu0
    %v5777 = vadd.f32 %v5664, %v5776
    %v5778 = vpop.f32.mrf.mxu0
    %v5779 = vadd.f32 %v5666, %v5778
    %v5780 = vpop.f32.mrf.mxu0
    %v5781 = vadd.f32 %v5668, %v5780
    %v5782 = vpop.f32.mrf.mxu0
    %v5783 = vadd.f32 %v5670, %v5782
    %5784 = vmatprep.mubr.bf16.mxu0 %v3613
    %5785 = vmatmul.mubr.bf16.gmra.mxu0 %v3612
    %v5786 = vpop.f32.mrf.mxu0
    %v5787 = vadd.f32 %v5674, %v5786
    %v5788 = vpop.f32.mrf.mxu0
    %v5789 = vadd.f32 %v5676, %v5788
    %v5790 = vpop.f32.mrf.mxu0
    %v5791 = vadd.f32 %v5678, %v5790
    %v5792 = vpop.f32.mrf.mxu0
    %v5793 = vadd.f32 %v5680, %v5792
    %5794 = vmatprep.mubr.bf16.mxu0 %v3625
    %5795 = vmatmul.mubr.bf16.gmra.mxu0 %v3624
    %v5796 = vpop.f32.mrf.mxu0
    %v5797 = vadd.f32 %v5684, %v5796
    %v5798 = vpop.f32.mrf.mxu0
    %v5799 = vadd.f32 %v5686, %v5798
    %v5800 = vpop.f32.mrf.mxu0
    %v5801 = vadd.f32 %v5688, %v5800
    %v5802 = vpop.f32.mrf.mxu0
    %v5803 = vadd.f32 %v5690, %v5802
    %5804 = vmatprep.mubr.bf16.mxu0 %v3637
    %5805 = vmatmul.mubr.bf16.gmra.mxu0 %v3636
    %v5806 = vpop.f32.mrf.mxu0
    %v5807 = vadd.f32 %v5694, %v5806
    %v5808 = vpop.f32.mrf.mxu0
    %v5809 = vadd.f32 %v5696, %v5808
    %v5810 = vpop.f32.mrf.mxu0
    %v5811 = vadd.f32 %v5698, %v5810
    %v5812 = vpop.f32.mrf.mxu0
    %v5813 = vadd.f32 %v5700, %v5812
    %5814 = vmatprep.mubr.bf16.mxu0 %v3649
    %5815 = vmatmul.mubr.bf16.gmra.mxu0 %v3648
    %v5816 = vpop.f32.mrf.mxu0
    %v5817 = vadd.f32 %v5704, %v5816
    %v5818 = vpop.f32.mrf.mxu0
    %v5819 = vadd.f32 %v5706, %v5818
    %v5820 = vpop.f32.mrf.mxu0
    %v5821 = vadd.f32 %v5708, %v5820
    %v5822 = vpop.f32.mrf.mxu0
    %v5823 = vadd.f32 %v5710, %v5822
    %5824 = vmatprep.mubr.bf16.mxu0 %v3661
    %5825 = vmatmul.mubr.bf16.gmra.mxu0 %v3660
    %v5826 = vpop.f32.mrf.mxu0
    %v5827 = vadd.f32 %v5714, %v5826
    %v5828 = vpop.f32.mrf.mxu0
    %v5829 = vadd.f32 %v5716, %v5828
    %v5830 = vpop.f32.mrf.mxu0
    %v5831 = vadd.f32 %v5718, %v5830
    %v5832 = vpop.f32.mrf.mxu0
    %v5833 = vadd.f32 %v5720, %v5832
    %5834 = vmatprep.mubr.bf16.mxu0 %v3673
    %5835 = vmatmul.mubr.bf16.gmra.mxu0 %v3672
    %v5836 = vpop.f32.mrf.mxu0
    %v5837 = vadd.f32 %v5724, %v5836
    %v5838 = vpop.f32.mrf.mxu0
    %v5839 = vadd.f32 %v5726, %v5838
    %v5840 = vpop.f32.mrf.mxu0
    %v5841 = vadd.f32 %v5728, %v5840
    %v5842 = vpop.f32.mrf.mxu0
    %v5843 = vadd.f32 %v5730, %v5842
    %5844 = vdwg.mxu0
    %5845 = vmatprep.subr.bf16.mxu0 %v5161
    %5846 = vmatpush1.bf16.msra.mxu0 %v5160
    %5847 = vmatprep.subr.bf16.mxu0 %v5158
    %5848 = vmatpush1.bf16.msra.mxu0 %v5157
    %5849 = vmatprep.subr.bf16.mxu0 %v5155
    %5850 = vmatpush1.bf16.msra.mxu0 %v5154
    %5851 = vmatprep.subr.bf16.mxu0 %v5152
    %5852 = vmatpush1.bf16.msra.mxu0 %v5151
    %5853 = vmatprep.subr.bf16.mxu0 %v5149
    %5854 = vmatpush1.bf16.msra.mxu0 %v5148
    %5855 = vmatprep.subr.bf16.mxu0 %v5146
    %5856 = vmatpush1.bf16.msra.mxu0 %v5145
    %5857 = vmatprep.subr.bf16.mxu0 %v5143
    %5858 = vmatpush1.bf16.msra.mxu0 %v5142
    %5859 = vmatprep.subr.bf16.mxu0 %v5140
    %5860 = vmatpush1.bf16.msra.mxu0 %v5139
    %5861 = vmatprep.subr.bf16.mxu0 %v5185
    %5862 = vmatpush2.bf16.msra.mxu0 %v5184
    %5863 = vmatprep.subr.bf16.mxu0 %v5182
    %5864 = vmatpush2.bf16.msra.mxu0 %v5181
    %5865 = vmatprep.subr.bf16.mxu0 %v5179
    %5866 = vmatpush2.bf16.msra.mxu0 %v5178
    %5867 = vmatprep.subr.bf16.mxu0 %v5176
    %5868 = vmatpush2.bf16.msra.mxu0 %v5175
    %5869 = vmatprep.subr.bf16.mxu0 %v5173
    %5870 = vmatpush2.bf16.msra.mxu0 %v5172
    %5871 = vmatprep.subr.bf16.mxu0 %v5170
    %5872 = vmatpush2.bf16.msra.mxu0 %v5169
    %5873 = vmatprep.subr.bf16.mxu0 %v5167
    %5874 = vmatpush2.bf16.msra.mxu0 %v5166
    %5875 = vmatprep.subr.bf16.mxu0 %v5164
    %5876 = vmatpush2.bf16.msra.mxu0 %v5163
    %5877 = vmatprep.mubr.bf16.mxu0 %v3591
    %5878 = vmatmul.mubr.bf16.gmra.mxu0 %v3590
    %v5879 = vpop.f32.mrf.mxu0
    %v5880 = vadd.f32 %v5767, %v5879
    %v5881 = vpop.f32.mrf.mxu0
    %v5882 = vadd.f32 %v5769, %v5881
    %v5883 = vpop.f32.mrf.mxu0
    %v5884 = vadd.f32 %v5771, %v5883
    %v5885 = vpop.f32.mrf.mxu0
    %v5886 = vadd.f32 %v5773, %v5885
    %5887 = vmatprep.mubr.bf16.mxu0 %v3603
    %5888 = vmatmul.mubr.bf16.gmra.mxu0 %v3602
    %v5889 = vpop.f32.mrf.mxu0
    %v5890 = vadd.f32 %v5777, %v5889
    %v5891 = vpop.f32.mrf.mxu0
    %v5892 = vadd.f32 %v5779, %v5891
    %v5893 = vpop.f32.mrf.mxu0
    %v5894 = vadd.f32 %v5781, %v5893
    %v5895 = vpop.f32.mrf.mxu0
    %v5896 = vadd.f32 %v5783, %v5895
    %5897 = vmatprep.mubr.bf16.mxu0 %v3615
    %5898 = vmatmul.mubr.bf16.gmra.mxu0 %v3614
    %v5899 = vpop.f32.mrf.mxu0
    %v5900 = vadd.f32 %v5787, %v5899
    %v5901 = vpop.f32.mrf.mxu0
    %v5902 = vadd.f32 %v5789, %v5901
    %v5903 = vpop.f32.mrf.mxu0
    %v5904 = vadd.f32 %v5791, %v5903
    %v5905 = vpop.f32.mrf.mxu0
    %v5906 = vadd.f32 %v5793, %v5905
    %5907 = vmatprep.mubr.bf16.mxu0 %v3627
    %5908 = vmatmul.mubr.bf16.gmra.mxu0 %v3626
    %v5909 = vpop.f32.mrf.mxu0
    %v5910 = vadd.f32 %v5797, %v5909
    %v5911 = vpop.f32.mrf.mxu0
    %v5912 = vadd.f32 %v5799, %v5911
    %v5913 = vpop.f32.mrf.mxu0
    %v5914 = vadd.f32 %v5801, %v5913
    %v5915 = vpop.f32.mrf.mxu0
    %v5916 = vadd.f32 %v5803, %v5915
    %5917 = vmatprep.mubr.bf16.mxu0 %v3639
    %5918 = vmatmul.mubr.bf16.gmra.mxu0 %v3638
    %v5919 = vpop.f32.mrf.mxu0
    %v5920 = vadd.f32 %v5807, %v5919
    %v5921 = vpop.f32.mrf.mxu0
    %v5922 = vadd.f32 %v5809, %v5921
    %v5923 = vpop.f32.mrf.mxu0
    %v5924 = vadd.f32 %v5811, %v5923
    %v5925 = vpop.f32.mrf.mxu0
    %v5926 = vadd.f32 %v5813, %v5925
    %5927 = vmatprep.mubr.bf16.mxu0 %v3651
    %5928 = vmatmul.mubr.bf16.gmra.mxu0 %v3650
    %v5929 = vpop.f32.mrf.mxu0
    %v5930 = vadd.f32 %v5817, %v5929
    %v5931 = vpop.f32.mrf.mxu0
    %v5932 = vadd.f32 %v5819, %v5931
    %v5933 = vpop.f32.mrf.mxu0
    %v5934 = vadd.f32 %v5821, %v5933
    %v5935 = vpop.f32.mrf.mxu0
    %v5936 = vadd.f32 %v5823, %v5935
    %5937 = vmatprep.mubr.bf16.mxu0 %v3663
    %5938 = vmatmul.mubr.bf16.gmra.mxu0 %v3662
    %v5939 = vpop.f32.mrf.mxu0
    %v5940 = vadd.f32 %v5827, %v5939
    %v5941 = vpop.f32.mrf.mxu0
    %v5942 = vadd.f32 %v5829, %v5941
    %v5943 = vpop.f32.mrf.mxu0
    %v5944 = vadd.f32 %v5831, %v5943
    %v5945 = vpop.f32.mrf.mxu0
    %v5946 = vadd.f32 %v5833, %v5945
    %5947 = vmatprep.mubr.bf16.mxu0 %v3675
    %5948 = vmatmul.mubr.bf16.gmra.mxu0 %v3674
    %v5949 = vpop.f32.mrf.mxu0
    %v5950 = vadd.f32 %v5837, %v5949
    %v5951 = vpop.f32.mrf.mxu0
    %v5952 = vadd.f32 %v5839, %v5951
    %v5953 = vpop.f32.mrf.mxu0
    %v5954 = vadd.f32 %v5841, %v5953
    %v5955 = vpop.f32.mrf.mxu0
    %v5956 = vadd.f32 %v5843, %v5955
    %5957 = vdwg.mxu0
    %5958 = vmatprep.subr.bf16.mxu0 %v5209
    %5959 = vmatpush1.bf16.msra.mxu0 %v5208
    %5960 = vmatprep.subr.bf16.mxu0 %v5206
    %5961 = vmatpush1.bf16.msra.mxu0 %v5205
    %5962 = vmatprep.subr.bf16.mxu0 %v5203
    %5963 = vmatpush1.bf16.msra.mxu0 %v5202
    %5964 = vmatprep.subr.bf16.mxu0 %v5200
    %5965 = vmatpush1.bf16.msra.mxu0 %v5199
    %5966 = vmatprep.subr.bf16.mxu0 %v5197
    %5967 = vmatpush1.bf16.msra.mxu0 %v5196
    %5968 = vmatprep.subr.bf16.mxu0 %v5194
    %5969 = vmatpush1.bf16.msra.mxu0 %v5193
    %5970 = vmatprep.subr.bf16.mxu0 %v5191
    %5971 = vmatpush1.bf16.msra.mxu0 %v5190
    %5972 = vmatprep.subr.bf16.mxu0 %v5188
    %5973 = vmatpush1.bf16.msra.mxu0 %v5187
    %5974 = vmatprep.subr.bf16.mxu0 %v5233
    %5975 = vmatpush2.bf16.msra.mxu0 %v5232
    %5976 = vmatprep.subr.bf16.mxu0 %v5230
    %5977 = vmatpush2.bf16.msra.mxu0 %v5229
    %5978 = vmatprep.subr.bf16.mxu0 %v5227
    %5979 = vmatpush2.bf16.msra.mxu0 %v5226
    %5980 = vmatprep.subr.bf16.mxu0 %v5224
    %5981 = vmatpush2.bf16.msra.mxu0 %v5223
    %5982 = vmatprep.subr.bf16.mxu0 %v5221
    %5983 = vmatpush2.bf16.msra.mxu0 %v5220
    %5984 = vmatprep.subr.bf16.mxu0 %v5218
    %5985 = vmatpush2.bf16.msra.mxu0 %v5217
    %5986 = vmatprep.subr.bf16.mxu0 %v5215
    %5987 = vmatpush2.bf16.msra.mxu0 %v5214
    %5988 = vmatprep.subr.bf16.mxu0 %v5212
    %5989 = vmatpush2.bf16.msra.mxu0 %v5211
    %5990 = vmatprep.mubr.bf16.mxu0 %v3593
    %5991 = vmatmul.mubr.bf16.gmra.mxu0 %v3592
    %v5992 = vpop.f32.mrf.mxu0
    %v5993 = vadd.f32 %v5880, %v5992
    %v5994 = vpop.f32.mrf.mxu0
    %v5995 = vadd.f32 %v5882, %v5994
    %v5996 = vpop.f32.mrf.mxu0
    %v5997 = vadd.f32 %v5884, %v5996
    %v5998 = vpop.f32.mrf.mxu0
    %v5999 = vadd.f32 %v5886, %v5998
    %6000 = vmatprep.mubr.bf16.mxu0 %v3605
    %6001 = vmatmul.mubr.bf16.gmra.mxu0 %v3604
    %v6002 = vpop.f32.mrf.mxu0
    %v6003 = vadd.f32 %v5890, %v6002
    %v6004 = vpop.f32.mrf.mxu0
    %v6005 = vadd.f32 %v5892, %v6004
    %v6006 = vpop.f32.mrf.mxu0
    %v6007 = vadd.f32 %v5894, %v6006
    %v6008 = vpop.f32.mrf.mxu0
    %v6009 = vadd.f32 %v5896, %v6008
    %6010 = vmatprep.mubr.bf16.mxu0 %v3617
    %6011 = vmatmul.mubr.bf16.gmra.mxu0 %v3616
    %v6012 = vpop.f32.mrf.mxu0
    %v6013 = vadd.f32 %v5900, %v6012
    %v6014 = vpop.f32.mrf.mxu0
    %v6015 = vadd.f32 %v5902, %v6014
    %v6016 = vpop.f32.mrf.mxu0
    %v6017 = vadd.f32 %v5904, %v6016
    %v6018 = vpop.f32.mrf.mxu0
    %v6019 = vadd.f32 %v5906, %v6018
    %6020 = vmatprep.mubr.bf16.mxu0 %v3629
    %6021 = vmatmul.mubr.bf16.gmra.mxu0 %v3628
    %v6022 = vpop.f32.mrf.mxu0
    %v6023 = vadd.f32 %v5910, %v6022
    %v6024 = vpop.f32.mrf.mxu0
    %v6025 = vadd.f32 %v5912, %v6024
    %v6026 = vpop.f32.mrf.mxu0
    %v6027 = vadd.f32 %v5914, %v6026
    %v6028 = vpop.f32.mrf.mxu0
    %v6029 = vadd.f32 %v5916, %v6028
    %6030 = vmatprep.mubr.bf16.mxu0 %v3641
    %6031 = vmatmul.mubr.bf16.gmra.mxu0 %v3640
    %v6032 = vpop.f32.mrf.mxu0
    %v6033 = vadd.f32 %v5920, %v6032
    %v6034 = vpop.f32.mrf.mxu0
    %v6035 = vadd.f32 %v5922, %v6034
    %v6036 = vpop.f32.mrf.mxu0
    %v6037 = vadd.f32 %v5924, %v6036
    %v6038 = vpop.f32.mrf.mxu0
    %v6039 = vadd.f32 %v5926, %v6038
    %6040 = vmatprep.mubr.bf16.mxu0 %v3653
    %6041 = vmatmul.mubr.bf16.gmra.mxu0 %v3652
    %v6042 = vpop.f32.mrf.mxu0
    %v6043 = vadd.f32 %v5930, %v6042
    %v6044 = vpop.f32.mrf.mxu0
    %v6045 = vadd.f32 %v5932, %v6044
    %v6046 = vpop.f32.mrf.mxu0
    %v6047 = vadd.f32 %v5934, %v6046
    %v6048 = vpop.f32.mrf.mxu0
    %v6049 = vadd.f32 %v5936, %v6048
    %6050 = vmatprep.mubr.bf16.mxu0 %v3665
    %6051 = vmatmul.mubr.bf16.gmra.mxu0 %v3664
    %v6052 = vpop.f32.mrf.mxu0
    %v6053 = vadd.f32 %v5940, %v6052
    %v6054 = vpop.f32.mrf.mxu0
    %v6055 = vadd.f32 %v5942, %v6054
    %v6056 = vpop.f32.mrf.mxu0
    %v6057 = vadd.f32 %v5944, %v6056
    %v6058 = vpop.f32.mrf.mxu0
    %v6059 = vadd.f32 %v5946, %v6058
    %6060 = vmatprep.mubr.bf16.mxu0 %v3677
    %6061 = vmatmul.mubr.bf16.gmra.mxu0 %v3676
    %v6062 = vpop.f32.mrf.mxu0
    %v6063 = vadd.f32 %v5950, %v6062
    %v6064 = vpop.f32.mrf.mxu0
    %v6065 = vadd.f32 %v5952, %v6064
    %v6066 = vpop.f32.mrf.mxu0
    %v6067 = vadd.f32 %v5954, %v6066
    %v6068 = vpop.f32.mrf.mxu0
    %v6069 = vadd.f32 %v5956, %v6068
    %6070 = vdwg.mxu0
    %6071 = vmatprep.subr.bf16.mxu0 %v5257
    %6072 = vmatpush1.bf16.msra.mxu0 %v5256
    %6073 = vmatprep.subr.bf16.mxu0 %v5254
    %6074 = vmatpush1.bf16.msra.mxu0 %v5253
    %6075 = vmatprep.subr.bf16.mxu0 %v5251
    %6076 = vmatpush1.bf16.msra.mxu0 %v5250
    %6077 = vmatprep.subr.bf16.mxu0 %v5248
    %6078 = vmatpush1.bf16.msra.mxu0 %v5247
    %6079 = vmatprep.subr.bf16.mxu0 %v5245
    %6080 = vmatpush1.bf16.msra.mxu0 %v5244
    %6081 = vmatprep.subr.bf16.mxu0 %v5242
    %6082 = vmatpush1.bf16.msra.mxu0 %v5241
    %6083 = vmatprep.subr.bf16.mxu0 %v5239
    %6084 = vmatpush1.bf16.msra.mxu0 %v5238
    %6085 = vmatprep.subr.bf16.mxu0 %v5236
    %6086 = vmatpush1.bf16.msra.mxu0 %v5235
    %6087 = vmatprep.subr.bf16.mxu0 %v5281
    %6088 = vmatpush2.bf16.msra.mxu0 %v5280
    %6089 = vmatprep.subr.bf16.mxu0 %v5278
    %6090 = vmatpush2.bf16.msra.mxu0 %v5277
    %6091 = vmatprep.subr.bf16.mxu0 %v5275
    %6092 = vmatpush2.bf16.msra.mxu0 %v5274
    %6093 = vmatprep.subr.bf16.mxu0 %v5272
    %6094 = vmatpush2.bf16.msra.mxu0 %v5271
    %6095 = vmatprep.subr.bf16.mxu0 %v5269
    %6096 = vmatpush2.bf16.msra.mxu0 %v5268
    %6097 = vmatprep.subr.bf16.mxu0 %v5266
    %6098 = vmatpush2.bf16.msra.mxu0 %v5265
    %6099 = vmatprep.subr.bf16.mxu0 %v5263
    %6100 = vmatpush2.bf16.msra.mxu0 %v5262
    %6101 = vmatprep.subr.bf16.mxu0 %v5260
    %6102 = vmatpush2.bf16.msra.mxu0 %v5259
    %6103 = vmatprep.mubr.bf16.mxu0 %v3595
    %6104 = vmatmul.mubr.bf16.gmra.mxu0 %v3594
    %v6105 = vpop.f32.mrf.mxu0
    %v6106 = vadd.f32 %v5993, %v6105
    %v6107 = vpop.f32.mrf.mxu0
    %v6108 = vadd.f32 %v5995, %v6107
    %v6109 = vpop.f32.mrf.mxu0
    %v6110 = vadd.f32 %v5997, %v6109
    %v6111 = vpop.f32.mrf.mxu0
    %v6112 = vadd.f32 %v5999, %v6111
    %6113 = vmatprep.mubr.bf16.mxu0 %v3607
    %6114 = vmatmul.mubr.bf16.gmra.mxu0 %v3606
    %v6115 = vpop.f32.mrf.mxu0
    %v6116 = vadd.f32 %v6003, %v6115
    %v6117 = vpop.f32.mrf.mxu0
    %v6118 = vadd.f32 %v6005, %v6117
    %v6119 = vpop.f32.mrf.mxu0
    %v6120 = vadd.f32 %v6007, %v6119
    %v6121 = vpop.f32.mrf.mxu0
    %v6122 = vadd.f32 %v6009, %v6121
    %6123 = vmatprep.mubr.bf16.mxu0 %v3619
    %6124 = vmatmul.mubr.bf16.gmra.mxu0 %v3618
    %v6125 = vpop.f32.mrf.mxu0
    %v6126 = vadd.f32 %v6013, %v6125
    %v6127 = vpop.f32.mrf.mxu0
    %v6128 = vadd.f32 %v6015, %v6127
    %v6129 = vpop.f32.mrf.mxu0
    %v6130 = vadd.f32 %v6017, %v6129
    %v6131 = vpop.f32.mrf.mxu0
    %v6132 = vadd.f32 %v6019, %v6131
    %6133 = vmatprep.mubr.bf16.mxu0 %v3631
    %6134 = vmatmul.mubr.bf16.gmra.mxu0 %v3630
    %v6135 = vpop.f32.mrf.mxu0
    %v6136 = vadd.f32 %v6023, %v6135
    %v6137 = vpop.f32.mrf.mxu0
    %v6138 = vadd.f32 %v6025, %v6137
    %v6139 = vpop.f32.mrf.mxu0
    %v6140 = vadd.f32 %v6027, %v6139
    %v6141 = vpop.f32.mrf.mxu0
    %v6142 = vadd.f32 %v6029, %v6141
    %6143 = vmatprep.mubr.bf16.mxu0 %v3643
    %6144 = vmatmul.mubr.bf16.gmra.mxu0 %v3642
    %v6145 = vpop.f32.mrf.mxu0
    %v6146 = vadd.f32 %v6033, %v6145
    %v6147 = vpop.f32.mrf.mxu0
    %v6148 = vadd.f32 %v6035, %v6147
    %v6149 = vpop.f32.mrf.mxu0
    %v6150 = vadd.f32 %v6037, %v6149
    %v6151 = vpop.f32.mrf.mxu0
    %v6152 = vadd.f32 %v6039, %v6151
    %6153 = vmatprep.mubr.bf16.mxu0 %v3655
    %6154 = vmatmul.mubr.bf16.gmra.mxu0 %v3654
    %v6155 = vpop.f32.mrf.mxu0
    %v6156 = vadd.f32 %v6043, %v6155
    %v6157 = vpop.f32.mrf.mxu0
    %v6158 = vadd.f32 %v6045, %v6157
    %v6159 = vpop.f32.mrf.mxu0
    %v6160 = vadd.f32 %v6047, %v6159
    %v6161 = vpop.f32.mrf.mxu0
    %v6162 = vadd.f32 %v6049, %v6161
    %6163 = vmatprep.mubr.bf16.mxu0 %v3667
    %6164 = vmatmul.mubr.bf16.gmra.mxu0 %v3666
    %v6165 = vpop.f32.mrf.mxu0
    %v6166 = vadd.f32 %v6053, %v6165
    %v6167 = vpop.f32.mrf.mxu0
    %v6168 = vadd.f32 %v6055, %v6167
    %v6169 = vpop.f32.mrf.mxu0
    %v6170 = vadd.f32 %v6057, %v6169
    %v6171 = vpop.f32.mrf.mxu0
    %v6172 = vadd.f32 %v6059, %v6171
    %6173 = vmatprep.mubr.bf16.mxu0 %v3679
    %6174 = vmatmul.mubr.bf16.gmra.mxu0 %v3678
    %v6175 = vpop.f32.mrf.mxu0
    %v6176 = vadd.f32 %v6063, %v6175
    %v6177 = vpop.f32.mrf.mxu0
    %v6178 = vadd.f32 %v6065, %v6177
    %v6179 = vpop.f32.mrf.mxu0
    %v6180 = vadd.f32 %v6067, %v6179
    %v6181 = vpop.f32.mrf.mxu0
    %v6182 = vadd.f32 %v6069, %v6181
    %6183 = vdwg.mxu0
    %6184 = vmatprep.subr.bf16.mxu0 %v5305
    %6185 = vmatpush1.bf16.msra.mxu0 %v5304
    %6186 = vmatprep.subr.bf16.mxu0 %v5302
    %6187 = vmatpush1.bf16.msra.mxu0 %v5301
    %6188 = vmatprep.subr.bf16.mxu0 %v5299
    %6189 = vmatpush1.bf16.msra.mxu0 %v5298
    %6190 = vmatprep.subr.bf16.mxu0 %v5296
    %6191 = vmatpush1.bf16.msra.mxu0 %v5295
    %6192 = vmatprep.subr.bf16.mxu0 %v5293
    %6193 = vmatpush1.bf16.msra.mxu0 %v5292
    %6194 = vmatprep.subr.bf16.mxu0 %v5290
    %6195 = vmatpush1.bf16.msra.mxu0 %v5289
    %6196 = vmatprep.subr.bf16.mxu0 %v5287
    %6197 = vmatpush1.bf16.msra.mxu0 %v5286
    %6198 = vmatprep.subr.bf16.mxu0 %v5284
    %6199 = vmatpush1.bf16.msra.mxu0 %v5283
    %6200 = vmatprep.subr.bf16.mxu0 %v5329
    %6201 = vmatpush2.bf16.msra.mxu0 %v5328
    %6202 = vmatprep.subr.bf16.mxu0 %v5326
    %6203 = vmatpush2.bf16.msra.mxu0 %v5325
    %6204 = vmatprep.subr.bf16.mxu0 %v5323
    %6205 = vmatpush2.bf16.msra.mxu0 %v5322
    %6206 = vmatprep.subr.bf16.mxu0 %v5320
    %6207 = vmatpush2.bf16.msra.mxu0 %v5319
    %6208 = vmatprep.subr.bf16.mxu0 %v5317
    %6209 = vmatpush2.bf16.msra.mxu0 %v5316
    %6210 = vmatprep.subr.bf16.mxu0 %v5314
    %6211 = vmatpush2.bf16.msra.mxu0 %v5313
    %6212 = vmatprep.subr.bf16.mxu0 %v5311
    %6213 = vmatpush2.bf16.msra.mxu0 %v5310
    %6214 = vmatprep.subr.bf16.mxu0 %v5308
    %6215 = vmatpush2.bf16.msra.mxu0 %v5307
    %6216 = vmatprep.mubr.bf16.mxu0 %v3597
    %6217 = vmatmul.mubr.bf16.gmra.mxu0 %v3596
    %v6218 = vpop.f32.mrf.mxu0
    %v6219 = vadd.f32 %v6106, %v6218
    %v6220 = vpop.f32.mrf.mxu0
    %v6221 = vadd.f32 %v6108, %v6220
    %v6222 = vpop.f32.mrf.mxu0
    %v6223 = vadd.f32 %v6110, %v6222
    %v6224 = vpop.f32.mrf.mxu0
    %v6225 = vadd.f32 %v6112, %v6224
    %6226 = vmatprep.mubr.bf16.mxu0 %v3609
    %6227 = vmatmul.mubr.bf16.gmra.mxu0 %v3608
    %v6228 = vpop.f32.mrf.mxu0
    %v6229 = vadd.f32 %v6116, %v6228
    %v6230 = vpop.f32.mrf.mxu0
    %v6231 = vadd.f32 %v6118, %v6230
    %v6232 = vpop.f32.mrf.mxu0
    %v6233 = vadd.f32 %v6120, %v6232
    %v6234 = vpop.f32.mrf.mxu0
    %v6235 = vadd.f32 %v6122, %v6234
    %6236 = vmatprep.mubr.bf16.mxu0 %v3621
    %6237 = vmatmul.mubr.bf16.gmra.mxu0 %v3620
    %v6238 = vpop.f32.mrf.mxu0
    %v6239 = vadd.f32 %v6126, %v6238
    %v6240 = vpop.f32.mrf.mxu0
    %v6241 = vadd.f32 %v6128, %v6240
    %v6242 = vpop.f32.mrf.mxu0
    %v6243 = vadd.f32 %v6130, %v6242
    %v6244 = vpop.f32.mrf.mxu0
    %v6245 = vadd.f32 %v6132, %v6244
    %6246 = vmatprep.mubr.bf16.mxu0 %v3633
    %6247 = vmatmul.mubr.bf16.gmra.mxu0 %v3632
    %v6248 = vpop.f32.mrf.mxu0
    %v6249 = vadd.f32 %v6136, %v6248
    %v6250 = vpop.f32.mrf.mxu0
    %v6251 = vadd.f32 %v6138, %v6250
    %v6252 = vpop.f32.mrf.mxu0
    %v6253 = vadd.f32 %v6140, %v6252
    %v6254 = vpop.f32.mrf.mxu0
    %v6255 = vadd.f32 %v6142, %v6254
    %6256 = vmatprep.mubr.bf16.mxu0 %v3645
    %6257 = vmatmul.mubr.bf16.gmra.mxu0 %v3644
    %v6258 = vpop.f32.mrf.mxu0
    %v6259 = vadd.f32 %v6146, %v6258
    %v6260 = vpop.f32.mrf.mxu0
    %v6261 = vadd.f32 %v6148, %v6260
    %v6262 = vpop.f32.mrf.mxu0
    %v6263 = vadd.f32 %v6150, %v6262
    %v6264 = vpop.f32.mrf.mxu0
    %v6265 = vadd.f32 %v6152, %v6264
    %6266 = vmatprep.mubr.bf16.mxu0 %v3657
    %6267 = vmatmul.mubr.bf16.gmra.mxu0 %v3656
    %v6268 = vpop.f32.mrf.mxu0
    %v6269 = vadd.f32 %v6156, %v6268
    %v6270 = vpop.f32.mrf.mxu0
    %v6271 = vadd.f32 %v6158, %v6270
    %v6272 = vpop.f32.mrf.mxu0
    %v6273 = vadd.f32 %v6160, %v6272
    %v6274 = vpop.f32.mrf.mxu0
    %v6275 = vadd.f32 %v6162, %v6274
    %6276 = vmatprep.mubr.bf16.mxu0 %v3669
    %6277 = vmatmul.mubr.bf16.gmra.mxu0 %v3668
    %v6278 = vpop.f32.mrf.mxu0
    %v6279 = vadd.f32 %v6166, %v6278
    %v6280 = vpop.f32.mrf.mxu0
    %v6281 = vadd.f32 %v6168, %v6280
    %v6282 = vpop.f32.mrf.mxu0
    %v6283 = vadd.f32 %v6170, %v6282
    %v6284 = vpop.f32.mrf.mxu0
    %v6285 = vadd.f32 %v6172, %v6284
    %6286 = vmatprep.mubr.bf16.mxu0 %v3681
    %6287 = vmatmul.mubr.bf16.gmra.mxu0 %v3680
    %v6288 = vpop.f32.mrf.mxu0
    %v6289 = vadd.f32 %v6176, %v6288
    %v6290 = vpop.f32.mrf.mxu0
    %v6291 = vadd.f32 %v6178, %v6290
    %v6292 = vpop.f32.mrf.mxu0
    %v6293 = vadd.f32 %v6180, %v6292
    %v6294 = vpop.f32.mrf.mxu0
    %v6295 = vadd.f32 %v6182, %v6294
    %6296 = vdwg.mxu0
    %6297 = vmatprep.subr.bf16.mxu0 0
    %6298 = vmatpush1.bf16.msra.mxu0 %v5066
    %6299 = vmatprep.subr.bf16.mxu0 0
    %6300 = vmatpush1.bf16.msra.mxu0 %v5063
    %6301 = vmatprep.subr.bf16.mxu0 0
    %6302 = vmatpush1.bf16.msra.mxu0 %v5060
    %6303 = vmatprep.subr.bf16.mxu0 0
    %6304 = vmatpush1.bf16.msra.mxu0 %v5057
    %6305 = vmatprep.subr.bf16.mxu0 0
    %6306 = vmatpush1.bf16.msra.mxu0 %v5054
    %6307 = vmatprep.subr.bf16.mxu0 0
    %6308 = vmatpush1.bf16.msra.mxu0 %v5051
    %6309 = vmatprep.subr.bf16.mxu0 0
    %6310 = vmatpush1.bf16.msra.mxu0 %v5048
    %6311 = vmatprep.subr.bf16.mxu0 0
    %6312 = vmatpush1.bf16.msra.mxu0 %v5045
    %6313 = vmatprep.subr.bf16.mxu0 0
    %6314 = vmatpush2.bf16.msra.mxu0 %v5090
    %6315 = vmatprep.subr.bf16.mxu0 0
    %6316 = vmatpush2.bf16.msra.mxu0 %v5087
    %6317 = vmatprep.subr.bf16.mxu0 0
    %6318 = vmatpush2.bf16.msra.mxu0 %v5084
    %6319 = vmatprep.subr.bf16.mxu0 0
    %6320 = vmatpush2.bf16.msra.mxu0 %v5081
    %6321 = vmatprep.subr.bf16.mxu0 0
    %6322 = vmatpush2.bf16.msra.mxu0 %v5078
    %6323 = vmatprep.subr.bf16.mxu0 0
    %6324 = vmatpush2.bf16.msra.mxu0 %v5075
    %6325 = vmatprep.subr.bf16.mxu0 0
    %6326 = vmatpush2.bf16.msra.mxu0 %v5072
    %6327 = vmatprep.subr.bf16.mxu0 0
    %6328 = vmatpush2.bf16.msra.mxu0 %v5069
    %6329 = vmatprep.mubr.bf16.mxu0 %v3587
    %6330 = vmatmul.mubr.bf16.gmra.mxu0 %v3586
    %v6331 = vpop.f32.mrf.mxu0
    %v6332 = vadd.f32 %v4079, %v6331
    %v6333 = vpop.f32.mrf.mxu0
    %v6334 = vpop.f32.mrf.mxu0
    %v6335 = vadd.f32 %v4079, %v6334
    %v6336 = vpop.f32.mrf.mxu0
    %6337 = vmatprep.mubr.bf16.mxu0 %v3599
    %6338 = vmatmul.mubr.bf16.gmra.mxu0 %v3598
    %v6339 = vpop.f32.mrf.mxu0
    %v6340 = vadd.f32 %v4079, %v6339
    %v6341 = vpop.f32.mrf.mxu0
    %v6342 = vpop.f32.mrf.mxu0
    %v6343 = vadd.f32 %v4079, %v6342
    %v6344 = vpop.f32.mrf.mxu0
    %6345 = vmatprep.mubr.bf16.mxu0 %v3611
    %6346 = vmatmul.mubr.bf16.gmra.mxu0 %v3610
    %v6347 = vpop.f32.mrf.mxu0
    %v6348 = vadd.f32 %v4079, %v6347
    %v6349 = vpop.f32.mrf.mxu0
    %v6350 = vpop.f32.mrf.mxu0
    %v6351 = vadd.f32 %v4079, %v6350
    %v6352 = vpop.f32.mrf.mxu0
    %6353 = vmatprep.mubr.bf16.mxu0 %v3623
    %6354 = vmatmul.mubr.bf16.gmra.mxu0 %v3622
    %v6355 = vpop.f32.mrf.mxu0
    %v6356 = vadd.f32 %v4079, %v6355
    %v6357 = vpop.f32.mrf.mxu0
    %v6358 = vpop.f32.mrf.mxu0
    %v6359 = vadd.f32 %v4079, %v6358
    %v6360 = vpop.f32.mrf.mxu0
    %6361 = vmatprep.mubr.bf16.mxu0 %v3635
    %6362 = vmatmul.mubr.bf16.gmra.mxu0 %v3634
    %v6363 = vpop.f32.mrf.mxu0
    %v6364 = vadd.f32 %v4079, %v6363
    %v6365 = vpop.f32.mrf.mxu0
    %v6366 = vpop.f32.mrf.mxu0
    %v6367 = vadd.f32 %v4079, %v6366
    %v6368 = vpop.f32.mrf.mxu0
    %6369 = vmatprep.mubr.bf16.mxu0 %v3647
    %6370 = vmatmul.mubr.bf16.gmra.mxu0 %v3646
    %v6371 = vpop.f32.mrf.mxu0
    %v6372 = vadd.f32 %v4079, %v6371
    %v6373 = vpop.f32.mrf.mxu0
    %v6374 = vpop.f32.mrf.mxu0
    %v6375 = vadd.f32 %v4079, %v6374
    %v6376 = vpop.f32.mrf.mxu0
    %6377 = vmatprep.mubr.bf16.mxu0 %v3659
    %6378 = vmatmul.mubr.bf16.gmra.mxu0 %v3658
    %v6379 = vpop.f32.mrf.mxu0
    %v6380 = vadd.f32 %v4079, %v6379
    %v6381 = vpop.f32.mrf.mxu0
    %v6382 = vpop.f32.mrf.mxu0
    %v6383 = vadd.f32 %v4079, %v6382
    %v6384 = vpop.f32.mrf.mxu0
    %6385 = vmatprep.mubr.bf16.mxu0 %v3671
    %6386 = vmatmul.mubr.bf16.gmra.mxu0 %v3670
    %v6387 = vpop.f32.mrf.mxu0
    %v6388 = vadd.f32 %v4079, %v6387
    %v6389 = vpop.f32.mrf.mxu0
    %v6390 = vpop.f32.mrf.mxu0
    %v6391 = vadd.f32 %v4079, %v6390
    %v6392 = vpop.f32.mrf.mxu0
    %6393 = vdwg.mxu0
    %6394 = vmatprep.subr.bf16.mxu0 0
    %6395 = vmatpush1.bf16.msra.mxu0 %v5114
    %6396 = vmatprep.subr.bf16.mxu0 0
    %6397 = vmatpush1.bf16.msra.mxu0 %v5111
    %6398 = vmatprep.subr.bf16.mxu0 0
    %6399 = vmatpush1.bf16.msra.mxu0 %v5108
    %6400 = vmatprep.subr.bf16.mxu0 0
    %6401 = vmatpush1.bf16.msra.mxu0 %v5105
    %6402 = vmatprep.subr.bf16.mxu0 0
    %6403 = vmatpush1.bf16.msra.mxu0 %v5102
    %6404 = vmatprep.subr.bf16.mxu0 0
    %6405 = vmatpush1.bf16.msra.mxu0 %v5099
    %6406 = vmatprep.subr.bf16.mxu0 0
    %6407 = vmatpush1.bf16.msra.mxu0 %v5096
    %6408 = vmatprep.subr.bf16.mxu0 0
    %6409 = vmatpush1.bf16.msra.mxu0 %v5093
    %6410 = vmatprep.subr.bf16.mxu0 0
    %6411 = vmatpush2.bf16.msra.mxu0 %v5138
    %6412 = vmatprep.subr.bf16.mxu0 0
    %6413 = vmatpush2.bf16.msra.mxu0 %v5135
    %6414 = vmatprep.subr.bf16.mxu0 0
    %6415 = vmatpush2.bf16.msra.mxu0 %v5132
    %6416 = vmatprep.subr.bf16.mxu0 0
    %6417 = vmatpush2.bf16.msra.mxu0 %v5129
    %6418 = vmatprep.subr.bf16.mxu0 0
    %6419 = vmatpush2.bf16.msra.mxu0 %v5126
    %6420 = vmatprep.subr.bf16.mxu0 0
    %6421 = vmatpush2.bf16.msra.mxu0 %v5123
    %6422 = vmatprep.subr.bf16.mxu0 0
    %6423 = vmatpush2.bf16.msra.mxu0 %v5120
    %6424 = vmatprep.subr.bf16.mxu0 0
    %6425 = vmatpush2.bf16.msra.mxu0 %v5117
    %6426 = vmatprep.mubr.bf16.mxu0 %v3589
    %6427 = vmatmul.mubr.bf16.gmra.mxu0 %v3588
    %v6428 = vpop.f32.mrf.mxu0
    %v6429 = vadd.f32 %v6332, %v6428
    %v6430 = vpop.f32.mrf.mxu0
    %v6431 = vpop.f32.mrf.mxu0
    %v6432 = vadd.f32 %v6335, %v6431
    %v6433 = vpop.f32.mrf.mxu0
    %6434 = vmatprep.mubr.bf16.mxu0 %v3601
    %6435 = vmatmul.mubr.bf16.gmra.mxu0 %v3600
    %v6436 = vpop.f32.mrf.mxu0
    %v6437 = vadd.f32 %v6340, %v6436
    %v6438 = vpop.f32.mrf.mxu0
    %v6439 = vpop.f32.mrf.mxu0
    %v6440 = vadd.f32 %v6343, %v6439
    %v6441 = vpop.f32.mrf.mxu0
    %6442 = vmatprep.mubr.bf16.mxu0 %v3613
    %6443 = vmatmul.mubr.bf16.gmra.mxu0 %v3612
    %v6444 = vpop.f32.mrf.mxu0
    %v6445 = vadd.f32 %v6348, %v6444
    %v6446 = vpop.f32.mrf.mxu0
    %v6447 = vpop.f32.mrf.mxu0
    %v6448 = vadd.f32 %v6351, %v6447
    %v6449 = vpop.f32.mrf.mxu0
    %6450 = vmatprep.mubr.bf16.mxu0 %v3625
    %6451 = vmatmul.mubr.bf16.gmra.mxu0 %v3624
    %v6452 = vpop.f32.mrf.mxu0
    %v6453 = vadd.f32 %v6356, %v6452
    %v6454 = vpop.f32.mrf.mxu0
    %v6455 = vpop.f32.mrf.mxu0
    %v6456 = vadd.f32 %v6359, %v6455
    %v6457 = vpop.f32.mrf.mxu0
    %6458 = vmatprep.mubr.bf16.mxu0 %v3637
    %6459 = vmatmul.mubr.bf16.gmra.mxu0 %v3636
    %v6460 = vpop.f32.mrf.mxu0
    %v6461 = vadd.f32 %v6364, %v6460
    %v6462 = vpop.f32.mrf.mxu0
    %v6463 = vpop.f32.mrf.mxu0
    %v6464 = vadd.f32 %v6367, %v6463
    %v6465 = vpop.f32.mrf.mxu0
    %6466 = vmatprep.mubr.bf16.mxu0 %v3649
    %6467 = vmatmul.mubr.bf16.gmra.mxu0 %v3648
    %v6468 = vpop.f32.mrf.mxu0
    %v6469 = vadd.f32 %v6372, %v6468
    %v6470 = vpop.f32.mrf.mxu0
    %v6471 = vpop.f32.mrf.mxu0
    %v6472 = vadd.f32 %v6375, %v6471
    %v6473 = vpop.f32.mrf.mxu0
    %6474 = vmatprep.mubr.bf16.mxu0 %v3661
    %6475 = vmatmul.mubr.bf16.gmra.mxu0 %v3660
    %v6476 = vpop.f32.mrf.mxu0
    %v6477 = vadd.f32 %v6380, %v6476
    %v6478 = vpop.f32.mrf.mxu0
    %v6479 = vpop.f32.mrf.mxu0
    %v6480 = vadd.f32 %v6383, %v6479
    %v6481 = vpop.f32.mrf.mxu0
    %6482 = vmatprep.mubr.bf16.mxu0 %v3673
    %6483 = vmatmul.mubr.bf16.gmra.mxu0 %v3672
    %v6484 = vpop.f32.mrf.mxu0
    %v6485 = vadd.f32 %v6388, %v6484
    %v6486 = vpop.f32.mrf.mxu0
    %v6487 = vpop.f32.mrf.mxu0
    %v6488 = vadd.f32 %v6391, %v6487
    %v6489 = vpop.f32.mrf.mxu0
    %6490 = vdwg.mxu0
    %6491 = vmatprep.subr.bf16.mxu0 0
    %6492 = vmatpush1.bf16.msra.mxu0 %v5162
    %6493 = vmatprep.subr.bf16.mxu0 0
    %6494 = vmatpush1.bf16.msra.mxu0 %v5159
    %6495 = vmatprep.subr.bf16.mxu0 0
    %6496 = vmatpush1.bf16.msra.mxu0 %v5156
    %6497 = vmatprep.subr.bf16.mxu0 0
    %6498 = vmatpush1.bf16.msra.mxu0 %v5153
    %6499 = vmatprep.subr.bf16.mxu0 0
    %6500 = vmatpush1.bf16.msra.mxu0 %v5150
    %6501 = vmatprep.subr.bf16.mxu0 0
    %6502 = vmatpush1.bf16.msra.mxu0 %v5147
    %6503 = vmatprep.subr.bf16.mxu0 0
    %6504 = vmatpush1.bf16.msra.mxu0 %v5144
    %6505 = vmatprep.subr.bf16.mxu0 0
    %6506 = vmatpush1.bf16.msra.mxu0 %v5141
    %6507 = vmatprep.subr.bf16.mxu0 0
    %6508 = vmatpush2.bf16.msra.mxu0 %v5186
    %6509 = vmatprep.subr.bf16.mxu0 0
    %6510 = vmatpush2.bf16.msra.mxu0 %v5183
    %6511 = vmatprep.subr.bf16.mxu0 0
    %6512 = vmatpush2.bf16.msra.mxu0 %v5180
    %6513 = vmatprep.subr.bf16.mxu0 0
    %6514 = vmatpush2.bf16.msra.mxu0 %v5177
    %6515 = vmatprep.subr.bf16.mxu0 0
    %6516 = vmatpush2.bf16.msra.mxu0 %v5174
    %6517 = vmatprep.subr.bf16.mxu0 0
    %6518 = vmatpush2.bf16.msra.mxu0 %v5171
    %6519 = vmatprep.subr.bf16.mxu0 0
    %6520 = vmatpush2.bf16.msra.mxu0 %v5168
    %6521 = vmatprep.subr.bf16.mxu0 0
    %6522 = vmatpush2.bf16.msra.mxu0 %v5165
    %6523 = vmatprep.mubr.bf16.mxu0 %v3591
    %6524 = vmatmul.mubr.bf16.gmra.mxu0 %v3590
    %v6525 = vpop.f32.mrf.mxu0
    %v6526 = vadd.f32 %v6429, %v6525
    %v6527 = vpop.f32.mrf.mxu0
    %v6528 = vpop.f32.mrf.mxu0
    %v6529 = vadd.f32 %v6432, %v6528
    %v6530 = vpop.f32.mrf.mxu0
    %6531 = vmatprep.mubr.bf16.mxu0 %v3603
    %6532 = vmatmul.mubr.bf16.gmra.mxu0 %v3602
    %v6533 = vpop.f32.mrf.mxu0
    %v6534 = vadd.f32 %v6437, %v6533
    %v6535 = vpop.f32.mrf.mxu0
    %v6536 = vpop.f32.mrf.mxu0
    %v6537 = vadd.f32 %v6440, %v6536
    %v6538 = vpop.f32.mrf.mxu0
    %6539 = vmatprep.mubr.bf16.mxu0 %v3615
    %6540 = vmatmul.mubr.bf16.gmra.mxu0 %v3614
    %v6541 = vpop.f32.mrf.mxu0
    %v6542 = vadd.f32 %v6445, %v6541
    %v6543 = vpop.f32.mrf.mxu0
    %v6544 = vpop.f32.mrf.mxu0
    %v6545 = vadd.f32 %v6448, %v6544
    %v6546 = vpop.f32.mrf.mxu0
    %6547 = vmatprep.mubr.bf16.mxu0 %v3627
    %6548 = vmatmul.mubr.bf16.gmra.mxu0 %v3626
    %v6549 = vpop.f32.mrf.mxu0
    %v6550 = vadd.f32 %v6453, %v6549
    %v6551 = vpop.f32.mrf.mxu0
    %v6552 = vpop.f32.mrf.mxu0
    %v6553 = vadd.f32 %v6456, %v6552
    %v6554 = vpop.f32.mrf.mxu0
    %6555 = vmatprep.mubr.bf16.mxu0 %v3639
    %6556 = vmatmul.mubr.bf16.gmra.mxu0 %v3638
    %v6557 = vpop.f32.mrf.mxu0
    %v6558 = vadd.f32 %v6461, %v6557
    %v6559 = vpop.f32.mrf.mxu0
    %v6560 = vpop.f32.mrf.mxu0
    %v6561 = vadd.f32 %v6464, %v6560
    %v6562 = vpop.f32.mrf.mxu0
    %6563 = vmatprep.mubr.bf16.mxu0 %v3651
    %6564 = vmatmul.mubr.bf16.gmra.mxu0 %v3650
    %v6565 = vpop.f32.mrf.mxu0
    %v6566 = vadd.f32 %v6469, %v6565
    %v6567 = vpop.f32.mrf.mxu0
    %v6568 = vpop.f32.mrf.mxu0
    %v6569 = vadd.f32 %v6472, %v6568
    %v6570 = vpop.f32.mrf.mxu0
    %6571 = vmatprep.mubr.bf16.mxu0 %v3663
    %6572 = vmatmul.mubr.bf16.gmra.mxu0 %v3662
    %v6573 = vpop.f32.mrf.mxu0
    %v6574 = vadd.f32 %v6477, %v6573
    %v6575 = vpop.f32.mrf.mxu0
    %v6576 = vpop.f32.mrf.mxu0
    %v6577 = vadd.f32 %v6480, %v6576
    %v6578 = vpop.f32.mrf.mxu0
    %6579 = vmatprep.mubr.bf16.mxu0 %v3675
    %6580 = vmatmul.mubr.bf16.gmra.mxu0 %v3674
    %v6581 = vpop.f32.mrf.mxu0
    %v6582 = vadd.f32 %v6485, %v6581
    %v6583 = vpop.f32.mrf.mxu0
    %v6584 = vpop.f32.mrf.mxu0
    %v6585 = vadd.f32 %v6488, %v6584
    %v6586 = vpop.f32.mrf.mxu0
    %6587 = vdwg.mxu0
    %6588 = vmatprep.subr.bf16.mxu0 0
    %6589 = vmatpush1.bf16.msra.mxu0 %v5210
    %6590 = vmatprep.subr.bf16.mxu0 0
    %6591 = vmatpush1.bf16.msra.mxu0 %v5207
    %6592 = vmatprep.subr.bf16.mxu0 0
    %6593 = vmatpush1.bf16.msra.mxu0 %v5204
    %6594 = vmatprep.subr.bf16.mxu0 0
    %6595 = vmatpush1.bf16.msra.mxu0 %v5201
    %6596 = vmatprep.subr.bf16.mxu0 0
    %6597 = vmatpush1.bf16.msra.mxu0 %v5198
    %6598 = vmatprep.subr.bf16.mxu0 0
    %6599 = vmatpush1.bf16.msra.mxu0 %v5195
    %6600 = vmatprep.subr.bf16.mxu0 0
    %6601 = vmatpush1.bf16.msra.mxu0 %v5192
    %6602 = vmatprep.subr.bf16.mxu0 0
    %6603 = vmatpush1.bf16.msra.mxu0 %v5189
    %6604 = vmatprep.subr.bf16.mxu0 0
    %6605 = vmatpush2.bf16.msra.mxu0 %v5234
    %6606 = vmatprep.subr.bf16.mxu0 0
    %6607 = vmatpush2.bf16.msra.mxu0 %v5231
    %6608 = vmatprep.subr.bf16.mxu0 0
    %6609 = vmatpush2.bf16.msra.mxu0 %v5228
    %6610 = vmatprep.subr.bf16.mxu0 0
    %6611 = vmatpush2.bf16.msra.mxu0 %v5225
    %6612 = vmatprep.subr.bf16.mxu0 0
    %6613 = vmatpush2.bf16.msra.mxu0 %v5222
    %6614 = vmatprep.subr.bf16.mxu0 0
    %6615 = vmatpush2.bf16.msra.mxu0 %v5219
    %6616 = vmatprep.subr.bf16.mxu0 0
    %6617 = vmatpush2.bf16.msra.mxu0 %v5216
    %6618 = vmatprep.subr.bf16.mxu0 0
    %6619 = vmatpush2.bf16.msra.mxu0 %v5213
    %6620 = vmatprep.mubr.bf16.mxu0 %v3593
    %6621 = vmatmul.mubr.bf16.gmra.mxu0 %v3592
    %v6622 = vpop.f32.mrf.mxu0
    %v6623 = vadd.f32 %v6526, %v6622
    %v6624 = vpop.f32.mrf.mxu0
    %v6625 = vpop.f32.mrf.mxu0
    %v6626 = vadd.f32 %v6529, %v6625
    %v6627 = vpop.f32.mrf.mxu0
    %6628 = vmatprep.mubr.bf16.mxu0 %v3605
    %6629 = vmatmul.mubr.bf16.gmra.mxu0 %v3604
    %v6630 = vpop.f32.mrf.mxu0
    %v6631 = vadd.f32 %v6534, %v6630
    %v6632 = vpop.f32.mrf.mxu0
    %v6633 = vpop.f32.mrf.mxu0
    %v6634 = vadd.f32 %v6537, %v6633
    %v6635 = vpop.f32.mrf.mxu0
    %6636 = vmatprep.mubr.bf16.mxu0 %v3617
    %6637 = vmatmul.mubr.bf16.gmra.mxu0 %v3616
    %v6638 = vpop.f32.mrf.mxu0
    %v6639 = vadd.f32 %v6542, %v6638
    %v6640 = vpop.f32.mrf.mxu0
    %v6641 = vpop.f32.mrf.mxu0
    %v6642 = vadd.f32 %v6545, %v6641
    %v6643 = vpop.f32.mrf.mxu0
    %6644 = vmatprep.mubr.bf16.mxu0 %v3629
    %6645 = vmatmul.mubr.bf16.gmra.mxu0 %v3628
    %v6646 = vpop.f32.mrf.mxu0
    %v6647 = vadd.f32 %v6550, %v6646
    %v6648 = vpop.f32.mrf.mxu0
    %v6649 = vpop.f32.mrf.mxu0
    %v6650 = vadd.f32 %v6553, %v6649
    %v6651 = vpop.f32.mrf.mxu0
    %6652 = vmatprep.mubr.bf16.mxu0 %v3641
    %6653 = vmatmul.mubr.bf16.gmra.mxu0 %v3640
    %v6654 = vpop.f32.mrf.mxu0
    %v6655 = vadd.f32 %v6558, %v6654
    %v6656 = vpop.f32.mrf.mxu0
    %v6657 = vpop.f32.mrf.mxu0
    %v6658 = vadd.f32 %v6561, %v6657
    %v6659 = vpop.f32.mrf.mxu0
    %6660 = vmatprep.mubr.bf16.mxu0 %v3653
    %6661 = vmatmul.mubr.bf16.gmra.mxu0 %v3652
    %v6662 = vpop.f32.mrf.mxu0
    %v6663 = vadd.f32 %v6566, %v6662
    %v6664 = vpop.f32.mrf.mxu0
    %v6665 = vpop.f32.mrf.mxu0
    %v6666 = vadd.f32 %v6569, %v6665
    %v6667 = vpop.f32.mrf.mxu0
    %6668 = vmatprep.mubr.bf16.mxu0 %v3665
    %6669 = vmatmul.mubr.bf16.gmra.mxu0 %v3664
    %v6670 = vpop.f32.mrf.mxu0
    %v6671 = vadd.f32 %v6574, %v6670
    %v6672 = vpop.f32.mrf.mxu0
    %v6673 = vpop.f32.mrf.mxu0
    %v6674 = vadd.f32 %v6577, %v6673
    %v6675 = vpop.f32.mrf.mxu0
    %6676 = vmatprep.mubr.bf16.mxu0 %v3677
    %6677 = vmatmul.mubr.bf16.gmra.mxu0 %v3676
    %v6678 = vpop.f32.mrf.mxu0
    %v6679 = vadd.f32 %v6582, %v6678
    %v6680 = vpop.f32.mrf.mxu0
    %v6681 = vpop.f32.mrf.mxu0
    %v6682 = vadd.f32 %v6585, %v6681
    %v6683 = vpop.f32.mrf.mxu0
    %6684 = vdwg.mxu0
    %6685 = vmatprep.subr.bf16.mxu0 0
    %6686 = vmatpush1.bf16.msra.mxu0 %v5258
    %6687 = vmatprep.subr.bf16.mxu0 0
    %6688 = vmatpush1.bf16.msra.mxu0 %v5255
    %6689 = vmatprep.subr.bf16.mxu0 0
    %6690 = vmatpush1.bf16.msra.mxu0 %v5252
    %6691 = vmatprep.subr.bf16.mxu0 0
    %6692 = vmatpush1.bf16.msra.mxu0 %v5249
    %6693 = vmatprep.subr.bf16.mxu0 0
    %6694 = vmatpush1.bf16.msra.mxu0 %v5246
    %6695 = vmatprep.subr.bf16.mxu0 0
    %6696 = vmatpush1.bf16.msra.mxu0 %v5243
    %6697 = vmatprep.subr.bf16.mxu0 0
    %6698 = vmatpush1.bf16.msra.mxu0 %v5240
    %6699 = vmatprep.subr.bf16.mxu0 0
    %6700 = vmatpush1.bf16.msra.mxu0 %v5237
    %6701 = vmatprep.subr.bf16.mxu0 0
    %6702 = vmatpush2.bf16.msra.mxu0 %v5282
    %6703 = vmatprep.subr.bf16.mxu0 0
    %6704 = vmatpush2.bf16.msra.mxu0 %v5279
    %6705 = vmatprep.subr.bf16.mxu0 0
    %6706 = vmatpush2.bf16.msra.mxu0 %v5276
    %6707 = vmatprep.subr.bf16.mxu0 0
    %6708 = vmatpush2.bf16.msra.mxu0 %v5273
    %6709 = vmatprep.subr.bf16.mxu0 0
    %6710 = vmatpush2.bf16.msra.mxu0 %v5270
    %6711 = vmatprep.subr.bf16.mxu0 0
    %6712 = vmatpush2.bf16.msra.mxu0 %v5267
    %6713 = vmatprep.subr.bf16.mxu0 0
    %6714 = vmatpush2.bf16.msra.mxu0 %v5264
    %6715 = vmatprep.subr.bf16.mxu0 0
    %6716 = vmatpush2.bf16.msra.mxu0 %v5261
    %6717 = vmatprep.mubr.bf16.mxu0 %v3595
    %6718 = vmatmul.mubr.bf16.gmra.mxu0 %v3594
    %v6719 = vpop.f32.mrf.mxu0
    %v6720 = vadd.f32 %v6623, %v6719
    %v6721 = vpop.f32.mrf.mxu0
    %v6722 = vpop.f32.mrf.mxu0
    %v6723 = vadd.f32 %v6626, %v6722
    %v6724 = vpop.f32.mrf.mxu0
    %6725 = vmatprep.mubr.bf16.mxu0 %v3607
    %6726 = vmatmul.mubr.bf16.gmra.mxu0 %v3606
    %v6727 = vpop.f32.mrf.mxu0
    %v6728 = vadd.f32 %v6631, %v6727
    %v6729 = vpop.f32.mrf.mxu0
    %v6730 = vpop.f32.mrf.mxu0
    %v6731 = vadd.f32 %v6634, %v6730
    %v6732 = vpop.f32.mrf.mxu0
    %6733 = vmatprep.mubr.bf16.mxu0 %v3619
    %6734 = vmatmul.mubr.bf16.gmra.mxu0 %v3618
    %v6735 = vpop.f32.mrf.mxu0
    %v6736 = vadd.f32 %v6639, %v6735
    %v6737 = vpop.f32.mrf.mxu0
    %v6738 = vpop.f32.mrf.mxu0
    %v6739 = vadd.f32 %v6642, %v6738
    %v6740 = vpop.f32.mrf.mxu0
    %6741 = vmatprep.mubr.bf16.mxu0 %v3631
    %6742 = vmatmul.mubr.bf16.gmra.mxu0 %v3630
    %v6743 = vpop.f32.mrf.mxu0
    %v6744 = vadd.f32 %v6647, %v6743
    %v6745 = vpop.f32.mrf.mxu0
    %v6746 = vpop.f32.mrf.mxu0
    %v6747 = vadd.f32 %v6650, %v6746
    %v6748 = vpop.f32.mrf.mxu0
    %6749 = vmatprep.mubr.bf16.mxu0 %v3643
    %6750 = vmatmul.mubr.bf16.gmra.mxu0 %v3642
    %v6751 = vpop.f32.mrf.mxu0
    %v6752 = vadd.f32 %v6655, %v6751
    %v6753 = vpop.f32.mrf.mxu0
    %v6754 = vpop.f32.mrf.mxu0
    %v6755 = vadd.f32 %v6658, %v6754
    %v6756 = vpop.f32.mrf.mxu0
    %6757 = vmatprep.mubr.bf16.mxu0 %v3655
    %6758 = vmatmul.mubr.bf16.gmra.mxu0 %v3654
    %v6759 = vpop.f32.mrf.mxu0
    %v6760 = vadd.f32 %v6663, %v6759
    %v6761 = vpop.f32.mrf.mxu0
    %v6762 = vpop.f32.mrf.mxu0
    %v6763 = vadd.f32 %v6666, %v6762
    %v6764 = vpop.f32.mrf.mxu0
    %6765 = vmatprep.mubr.bf16.mxu0 %v3667
    %6766 = vmatmul.mubr.bf16.gmra.mxu0 %v3666
    %v6767 = vpop.f32.mrf.mxu0
    %v6768 = vadd.f32 %v6671, %v6767
    %v6769 = vpop.f32.mrf.mxu0
    %v6770 = vpop.f32.mrf.mxu0
    %v6771 = vadd.f32 %v6674, %v6770
    %v6772 = vpop.f32.mrf.mxu0
    %6773 = vmatprep.mubr.bf16.mxu0 %v3679
    %6774 = vmatmul.mubr.bf16.gmra.mxu0 %v3678
    %v6775 = vpop.f32.mrf.mxu0
    %v6776 = vadd.f32 %v6679, %v6775
    %v6777 = vpop.f32.mrf.mxu0
    %v6778 = vpop.f32.mrf.mxu0
    %v6779 = vadd.f32 %v6682, %v6778
    %v6780 = vpop.f32.mrf.mxu0
    %6781 = vdwg.mxu0
    %6782 = vmatprep.subr.bf16.mxu0 0
    %6783 = vmatpush1.bf16.msra.mxu0 %v5306
    %6784 = vmatprep.subr.bf16.mxu0 0
    %6785 = vmatpush1.bf16.msra.mxu0 %v5303
    %6786 = vmatprep.subr.bf16.mxu0 0
    %6787 = vmatpush1.bf16.msra.mxu0 %v5300
    %6788 = vmatprep.subr.bf16.mxu0 0
    %6789 = vmatpush1.bf16.msra.mxu0 %v5297
    %6790 = vmatprep.subr.bf16.mxu0 0
    %6791 = vmatpush1.bf16.msra.mxu0 %v5294
    %6792 = vmatprep.subr.bf16.mxu0 0
    %6793 = vmatpush1.bf16.msra.mxu0 %v5291
    %6794 = vmatprep.subr.bf16.mxu0 0
    %6795 = vmatpush1.bf16.msra.mxu0 %v5288
    %6796 = vmatprep.subr.bf16.mxu0 0
    %6797 = vmatpush1.bf16.msra.mxu0 %v5285
    %6798 = vmatprep.subr.bf16.mxu0 0
    %6799 = vmatpush2.bf16.msra.mxu0 %v5330
    %6800 = vmatprep.subr.bf16.mxu0 0
    %6801 = vmatpush2.bf16.msra.mxu0 %v5327
    %6802 = vmatprep.subr.bf16.mxu0 0
    %6803 = vmatpush2.bf16.msra.mxu0 %v5324
    %6804 = vmatprep.subr.bf16.mxu0 0
    %6805 = vmatpush2.bf16.msra.mxu0 %v5321
    %6806 = vmatprep.subr.bf16.mxu0 0
    %6807 = vmatpush2.bf16.msra.mxu0 %v5318
    %6808 = vmatprep.subr.bf16.mxu0 0
    %6809 = vmatpush2.bf16.msra.mxu0 %v5315
    %6810 = vmatprep.subr.bf16.mxu0 0
    %6811 = vmatpush2.bf16.msra.mxu0 %v5312
    %6812 = vmatprep.subr.bf16.mxu0 0
    %6813 = vmatpush2.bf16.msra.mxu0 %v5309
    %6814 = vmatprep.mubr.bf16.mxu0 %v3597
    %6815 = vmatmul.mubr.bf16.gmra.mxu0 %v3596
    %v6816 = vpop.f32.mrf.mxu0
    %v6817 = vadd.f32 %v6720, %v6816
    %v6818 = vpop.f32.mrf.mxu0
    %v6819 = vpop.f32.mrf.mxu0
    %v6820 = vadd.f32 %v6723, %v6819
    %v6821 = vpop.f32.mrf.mxu0
    %6822 = vmatprep.mubr.bf16.mxu0 %v3609
    %6823 = vmatmul.mubr.bf16.gmra.mxu0 %v3608
    %v6824 = vpop.f32.mrf.mxu0
    %v6825 = vadd.f32 %v6728, %v6824
    %v6826 = vpop.f32.mrf.mxu0
    %v6827 = vpop.f32.mrf.mxu0
    %v6828 = vadd.f32 %v6731, %v6827
    %v6829 = vpop.f32.mrf.mxu0
    %6830 = vmatprep.mubr.bf16.mxu0 %v3621
    %6831 = vmatmul.mubr.bf16.gmra.mxu0 %v3620
    %v6832 = vpop.f32.mrf.mxu0
    %v6833 = vadd.f32 %v6736, %v6832
    %v6834 = vpop.f32.mrf.mxu0
    %v6835 = vpop.f32.mrf.mxu0
    %v6836 = vadd.f32 %v6739, %v6835
    %v6837 = vpop.f32.mrf.mxu0
    %6838 = vmatprep.mubr.bf16.mxu0 %v3633
    %6839 = vmatmul.mubr.bf16.gmra.mxu0 %v3632
    %v6840 = vpop.f32.mrf.mxu0
    %v6841 = vadd.f32 %v6744, %v6840
    %v6842 = vpop.f32.mrf.mxu0
    %v6843 = vpop.f32.mrf.mxu0
    %v6844 = vadd.f32 %v6747, %v6843
    %v6845 = vpop.f32.mrf.mxu0
    %6846 = vmatprep.mubr.bf16.mxu0 %v3645
    %6847 = vmatmul.mubr.bf16.gmra.mxu0 %v3644
    %v6848 = vpop.f32.mrf.mxu0
    %v6849 = vadd.f32 %v6752, %v6848
    %v6850 = vpop.f32.mrf.mxu0
    %v6851 = vpop.f32.mrf.mxu0
    %v6852 = vadd.f32 %v6755, %v6851
    %v6853 = vpop.f32.mrf.mxu0
    %6854 = vmatprep.mubr.bf16.mxu0 %v3657
    %6855 = vmatmul.mubr.bf16.gmra.mxu0 %v3656
    %v6856 = vpop.f32.mrf.mxu0
    %v6857 = vadd.f32 %v6760, %v6856
    %v6858 = vpop.f32.mrf.mxu0
    %v6859 = vpop.f32.mrf.mxu0
    %v6860 = vadd.f32 %v6763, %v6859
    %v6861 = vpop.f32.mrf.mxu0
    %6862 = vmatprep.mubr.bf16.mxu0 %v3669
    %6863 = vmatmul.mubr.bf16.gmra.mxu0 %v3668
    %v6864 = vpop.f32.mrf.mxu0
    %v6865 = vadd.f32 %v6768, %v6864
    %v6866 = vpop.f32.mrf.mxu0
    %v6867 = vpop.f32.mrf.mxu0
    %v6868 = vadd.f32 %v6771, %v6867
    %v6869 = vpop.f32.mrf.mxu0
    %6870 = vmatprep.mubr.bf16.mxu0 %v3681
    %6871 = vmatmul.mubr.bf16.gmra.mxu0 %v3680
    %v6872 = vpop.f32.mrf.mxu0
    %v6873 = vadd.f32 %v6776, %v6872
    %v6874 = vpop.f32.mrf.mxu0
    %v6875 = vpop.f32.mrf.mxu0
    %v6876 = vadd.f32 %v6779, %v6875
    %v6877 = vpop.f32.mrf.mxu0
    %6878 = vdwg.mxu0
    %6879 = vst [vmem:[#allocation11] sm:$0xff] %v6219
    %6880 = vst [vmem:[#allocation11 + $0x8] sm:$0xff] %v6221
    %6881 = vst [vmem:[#allocation11 + $0x10] sm:$0xff] %v6817
    %6882 = vst [vmem:[#allocation11 + $0x18] sm:$0xff] %v6223
    %6883 = vst [vmem:[#allocation11 + $0x20] sm:$0xff] %v6225
    %6884 = vst [vmem:[#allocation11 + $0x28] sm:$0xff] %v6820
    %6885 = vst [vmem:[#allocation11 + $0x30] sm:$0xff] %v6229
    %6886 = vst [vmem:[#allocation11 + $0x38] sm:$0xff] %v6231
    %6887 = vst [vmem:[#allocation11 + $0x40] sm:$0xff] %v6825
    %6888 = vst [vmem:[#allocation11 + $0x48] sm:$0xff] %v6233
    %6889 = vst [vmem:[#allocation11 + $0x50] sm:$0xff] %v6235
    %6890 = vst [vmem:[#allocation11 + $0x58] sm:$0xff] %v6828
    %6891 = vst [vmem:[#allocation11 + $0x60] sm:$0xff] %v6239
    %6892 = vst [vmem:[#allocation11 + $0x68] sm:$0xff] %v6241
    %6893 = vst [vmem:[#allocation11 + $0x70] sm:$0xff] %v6833
    %6894 = vst [vmem:[#allocation11 + $0x78] sm:$0xff] %v6243
    %6895 = vst [vmem:[#allocation11 + $0x80] sm:$0xff] %v6245
    %6896 = vst [vmem:[#allocation11 + $0x88] sm:$0xff] %v6836
    %6897 = vst [vmem:[#allocation11 + $0x90] sm:$0xff] %v6249
    %6898 = vst [vmem:[#allocation11 + $0x98] sm:$0xff] %v6251
    %6899 = vst [vmem:[#allocation11 + $0xa0] sm:$0xff] %v6841
    %6900 = vst [vmem:[#allocation11 + $0xa8] sm:$0xff] %v6253
    %6901 = vst [vmem:[#allocation11 + $0xb0] sm:$0xff] %v6255
    %6902 = vst [vmem:[#allocation11 + $0xb8] sm:$0xff] %v6844
    %6903 = vst [vmem:[#allocation11 + $0xc0] sm:$0xff] %v6259
    %6904 = vst [vmem:[#allocation11 + $0xc8] sm:$0xff] %v6261
    %6905 = vst [vmem:[#allocation11 + $0xd0] sm:$0xff] %v6849
    %6906 = vst [vmem:[#allocation11 + $0xd8] sm:$0xff] %v6263
    %6907 = vst [vmem:[#allocation11 + $0xe0] sm:$0xff] %v6265
    %6908 = vst [vmem:[#allocation11 + $0xe8] sm:$0xff] %v6852
    %6909 = vst [vmem:[#allocation11 + $0xf0] sm:$0xff] %v6269
    %6910 = vst [vmem:[#allocation11 + $0xf8] sm:$0xff] %v6271
    %6911 = vst [vmem:[#allocation11 + $0x100] sm:$0xff] %v6857
    %6912 = vst [vmem:[#allocation11 + $0x108] sm:$0xff] %v6273
    %6913 = vst [vmem:[#allocation11 + $0x110] sm:$0xff] %v6275
    %6914 = vst [vmem:[#allocation11 + $0x118] sm:$0xff] %v6860
    %6915 = vst [vmem:[#allocation11 + $0x120] sm:$0xff] %v6279
    %6916 = vst [vmem:[#allocation11 + $0x128] sm:$0xff] %v6281
    %6917 = vst [vmem:[#allocation11 + $0x130] sm:$0xff] %v6865
    %6918 = vst [vmem:[#allocation11 + $0x138] sm:$0xff] %v6283
    %6919 = vst [vmem:[#allocation11 + $0x140] sm:$0xff] %v6285
    %6920 = vst [vmem:[#allocation11 + $0x148] sm:$0xff] %v6868
    %6921 = vst [vmem:[#allocation11 + $0x150] sm:$0xff] %v6289
    %6922 = vst [vmem:[#allocation11 + $0x158] sm:$0xff] %v6291
    %6923 = vst [vmem:[#allocation11 + $0x160] sm:$0xff] %v6873
    %6924 = vst [vmem:[#allocation11 + $0x168] sm:$0xff] %v6293
    %6925 = vst [vmem:[#allocation11 + $0x170] sm:$0xff] %v6295
    %6926 = vst [vmem:[#allocation11 + $0x178] sm:$0xff] %v6876
    // Predicated region
    $region42: #{tpu_custom_call.1} parent=1 // pred_check
      _
    $region43: #{tpu_custom_call.1} parent=1 // pred_check_branch
      %6928 = sbr.rel (0) target = $region45
    $region44: #{tpu_custom_call.1} parent=1 // pred_region
      %s6930 = ssub.s32 6144, 6144
      %6931 = vsyncadd [#allocation4], %s6930
      %s6932 = sshll.u32 [#allocation11], 4
      %s6933 = int_to_ptr.vmem [resolvable:$true] %s6932
      %6938 = dma.vmem_to_hbm [thread:$0]  %s6933, 6144, %s5, [#allocation4], 384, 384, 24
    $region45: #{tpu_custom_call.1} parent=1 // pred_fallthru
      _
    // Predicated region
    $region46: #{tpu_custom_call.1} parent=1 // pred_check
      _
    $region47: #{tpu_custom_call.1} parent=1 // pred_check_branch
      %6940 = sbr.rel (0) target = $region49
    $region48: #{tpu_custom_call.1} parent=1 // pred_region
      %6941 = dma.done [#allocation4], 6144
    $region49: #{tpu_custom_call.1} parent=1 // pred_fallthru
      _
    %6942 = vsyncpa [#allocation3], 1
    %6943 = vsyncpa [#allocation6], 1
    %6944 = vsyncpa [#allocation9], 1
    %6945 = vsyncpa [#allocation4], 1

</llo_original>
